<compile_context>
chip_gen: v7x
topology: tpu7x:2x2x1
jax: 0.10.0
libtpu: 0.0.40
codegen_flags: <defaults>
</compile_context>

<pallas_src>
import functools

import jax
import jax.numpy as jnp
from jax.experimental import pallas as pl
from jax.experimental.pallas import tpu as pltpu


# ---------------------------------------------------------------------------
# Kernel 1: fused ReLU + dilated depthwise + pointwise 1x1 conv
#           + per-image partial sums for the (global) BatchNorm statistics.
#
#   y[n, h, w, co] = sum_t sum_ci ReLU(x)[n, h + kh*d - p, w + kw*d - p, ci]
#                                 * W_eff[t, ci, co]
#
# Grid: one step per batch image (parallel).  Per step:
#   x_ref    : (1, H, W, C_in)       f32   unpadded NHWC image
#   w_ref    : (KH*KW, C_in, C_out)  bf16  folded per-tap weights
#   y_ref    : (1, Ho, Wo, C_out)    f32   pre-BN conv output
#   s1_ref   : (1, 1, C_out)         f32   sum over (Ho*Wo) of y
#   s2_ref   : (1, 1, C_out)         f32   sum over (Ho*Wo) of y^2
#   xpad_ref : (Hp, Wp, C_in)        f32   VMEM scratch: zero-padded ReLU(x)
# ---------------------------------------------------------------------------
def fused_conv_kernel(x_ref, w_ref, y_ref, s1_ref, s2_ref, xpad_ref, *,
                      kh_size, kw_size, dilation, padding):
    _, H, W, C_in = x_ref.shape
    _, Ho, Wo, C_out = y_ref.shape

    # Conv zero-padding folded here (ReLU(0) == 0, so padding after ReLU is
    # identical to PyTorch's "ReLU then zero-padded conv").
    xpad_ref[...] = jnp.zeros(xpad_ref.shape, xpad_ref.dtype)
    xpad_ref[padding:padding + H, padding:padding + W, :] = (
        jnp.maximum(x_ref[0], 0.0))

    w = w_ref[...]                                   # (T, C_in, C_out) bf16
    acc = None                                       # (Ho*Wo, C_out) f32
    for kh in range(kh_size):                        # static tap loop (3x3 / 5x5)
        for kw in range(kw_size):
            t = kh * kw_size + kw
            # TODO(synk): stride > 1 would subsample these tap windows.
            patch = xpad_ref[kh * dilation:kh * dilation + Ho,
                             kw * dilation:kw * dilation + Wo, :]
            patch = patch.reshape(Ho * Wo, C_in).astype(jnp.bfloat16)
            contrib = jnp.dot(patch, w[t], preferred_element_type=jnp.float32)
            acc = contrib if acc is None else acc + contrib

    y_ref[...] = acc.reshape(1, Ho, Wo, C_out)
    # Per-image partial sums -> reduced across the batch in the wrapper
    # (correct global training-mode BN statistics even though we tile).
    s1_ref[...] = jnp.sum(acc, axis=0, keepdims=True).reshape(1, 1, C_out)
    s2_ref[...] = jnp.sum(acc * acc, axis=0, keepdims=True).reshape(1, 1, C_out)


# ---------------------------------------------------------------------------
# Kernel 2: BatchNorm apply as a single lane-dense FMA.
#   y_ref/out_ref : (TR, Wo*C_out)  -- lane axis is Wo*C_out (128 for the demo),
#   scale/shift   : (1,  Wo*C_out)  -- gamma*rsqrt(var+eps), beta - mean*scale,
#                                      pre-tiled per lane in the wrapper.
# ---------------------------------------------------------------------------
def bn_apply_kernel(y_ref, scale_ref, shift_ref, out_ref):
    out_ref[...] = y_ref[...] * scale_ref[...] + shift_ref[...]


def _pick_row_tile(rows, lanes, bytes_per_elem=4, budget=8 * 1024 * 1024):
    """Largest row tile that divides `rows` and keeps buffers well under VMEM."""
    for t in (1024, 512, 256, 128, 64, 32, 16, 8):
        if rows % t == 0 and t * lanes * bytes_per_elem * 4 <= budget:
            return t
    return rows


# ---------------------------------------------------------------------------
# Wrapper (PyTorch-compatible NCHW in / NCHW out).
# ---------------------------------------------------------------------------
def dil_conv_forward(x_nchw, w_dw, w_pw, gamma, beta, *,
                     kernel_size, stride, padding, dilation, eps=1e-5):
    """x_nchw: (N, C_in, H, W); w_dw: (C_in, 1, KH, KW); w_pw: (C_out, C_in, 1, 1)."""
    N, C_in, H, W = x_nchw.shape
    C_out = w_pw.shape[0]
    KH = KW = kernel_size
    # TODO(synk): strided (stride=2) tap subsampling not implemented.
    assert stride == 1, "only stride=1 is supported"
    Ho = (H + 2 * padding - dilation * (KH - 1) - 1) // stride + 1
    Wo = (W + 2 * padding - dilation * (KW - 1) - 1) // stride + 1
    Hp, Wp = H + 2 * padding, W + 2 * padding

    # NCHW -> NHWC (channels minor, TPU-friendly for the tap matmuls).
    # TODO(synk): could be folded into the kernel via an in-VMEM transpose.
    x = jnp.transpose(x_nchw, (0, 2, 3, 1)).astype(jnp.float32)

    # Fold depthwise + pointwise weights: W_eff[t, ci, co] = w_dw[ci,0,t] * w_pw[co,ci].
    w_dw_taps = jnp.transpose(w_dw[:, 0].reshape(C_in, KH * KW), (1, 0))     # (T, C_in)
    w_pw_mat = jnp.transpose(w_pw[:, :, 0, 0], (1, 0))                       # (C_in, C_out)
    w_eff = (w_dw_taps[:, :, None] * w_pw_mat[None, :, :]).astype(jnp.bfloat16)

    cparams = pltpu.CompilerParams(dimension_semantics=("parallel",),
                                   vmem_limit_bytes=32 * 1024 * 1024)

    flops1 = 2 * N * Ho * Wo * KH * KW * C_in * C_out + N * H * W * C_in
    bytes1 = (x.size * 4 + w_eff.size * 2 + N * Ho * Wo * C_out * 4
              + 2 * N * C_out * 4)

    y, s1, s2 = pl.pallas_call(
        functools.partial(fused_conv_kernel, kh_size=KH, kw_size=KW,
                          dilation=dilation, padding=padding),
        out_shape=(jax.ShapeDtypeStruct((N, Ho, Wo, C_out), jnp.float32),
                   jax.ShapeDtypeStruct((N, 1, C_out), jnp.float32),
                   jax.ShapeDtypeStruct((N, 1, C_out), jnp.float32)),
        grid_spec=pltpu.PrefetchScalarGridSpec(
            num_scalar_prefetch=0,
            grid=(N,),
            in_specs=[pl.BlockSpec((1, H, W, C_in), lambda n: (n, 0, 0, 0)),
                      pl.BlockSpec((KH * KW, C_in, C_out), lambda n: (0, 0, 0))],
            out_specs=[pl.BlockSpec((1, Ho, Wo, C_out), lambda n: (n, 0, 0, 0)),
                       pl.BlockSpec((1, 1, C_out), lambda n: (n, 0, 0)),
                       pl.BlockSpec((1, 1, C_out), lambda n: (n, 0, 0))],
            scratch_shapes=[pltpu.VMEM((Hp, Wp, C_in), jnp.float32)]),
        compiler_params=cparams,
        cost_estimate=pl.CostEstimate(flops=int(flops1), transcendentals=0,
                                      bytes_accessed=int(bytes1)),
    )(x, w_eff)

    # Global training-mode BatchNorm statistics (biased variance over N,H,W).
    m_total = N * Ho * Wo
    mean = jnp.sum(s1[:, 0, :], axis=0) / m_total                     # (C_out,)
    var = jnp.maximum(jnp.sum(s2[:, 0, :], axis=0) / m_total - mean * mean, 0.0)
    scale = gamma.astype(jnp.float32) * jax.lax.rsqrt(var + eps)
    shift = beta.astype(jnp.float32) - mean * scale
    # TODO(synk): running_mean/running_var buffer updates (training side effect)
    # are not emitted; they do not affect the forward output.

    # Lane-dense BN apply: view y as (N*Ho, Wo*C_out) -- free contiguous reshape.
    R, L = N * Ho, Wo * C_out
    y2 = y.reshape(R, L)
    scale_row = jnp.tile(scale, Wo).reshape(1, L)
    shift_row = jnp.tile(shift, Wo).reshape(1, L)

    TR = _pick_row_tile(R, L)
    out2 = pl.pallas_call(
        bn_apply_kernel,
        out_shape=jax.ShapeDtypeStruct((R, L), jnp.float32),
        grid_spec=pltpu.PrefetchScalarGridSpec(
            num_scalar_prefetch=0,
            grid=(R // TR,),
            in_specs=[pl.BlockSpec((TR, L), lambda i: (i, 0)),
                      pl.BlockSpec((1, L), lambda i: (0, 0)),
                      pl.BlockSpec((1, L), lambda i: (0, 0))],
            out_specs=pl.BlockSpec((TR, L), lambda i: (i, 0))),
        compiler_params=cparams,
        cost_estimate=pl.CostEstimate(flops=2 * R * L, transcendentals=0,
                                      bytes_accessed=2 * R * L * 4 + 2 * L * 4),
    )(y2, scale_row, shift_row)

    out_nhwc = out2.reshape(N, Ho, Wo, C_out)
    return jnp.transpose(out_nhwc, (0, 3, 1, 2))       # back to NCHW


# ---------------------------------------------------------------------------
# Pure-JAX reference (f32) for a sanity check.
# ---------------------------------------------------------------------------
def _reference(x, w_dw, w_pw, gamma, beta, *, stride, padding, dilation, eps=1e-5):
    r = jnp.maximum(x, 0.0)
    dw = jax.lax.conv_general_dilated(
        r, w_dw, window_strides=(stride, stride),
        padding=[(padding, padding), (padding, padding)],
        rhs_dilation=(dilation, dilation),
        dimension_numbers=("NCHW", "OIHW", "NCHW"),
        feature_group_count=x.shape[1])
    pw = jax.lax.conv_general_dilated(
        dw, w_pw, window_strides=(1, 1), padding="VALID",
        dimension_numbers=("NCHW", "OIHW", "NCHW"))
    mean = pw.mean(axis=(0, 2, 3), keepdims=True)
    var = pw.var(axis=(0, 2, 3), keepdims=True)            # biased, training-mode BN
    g = gamma.reshape(1, -1, 1, 1)
    b = beta.reshape(1, -1, 1, 1)
    return (pw - mean) * jax.lax.rsqrt(var + eps) * g + b


if __name__ == "__main__":
    # DilConv(C_in=4, C_out=8, kernel_size=3, stride=1, padding=2, dilation=2)
    N, C_in, C_out, H, W = 2, 4, 8, 16, 16
    kernel_size, stride, padding, dilation = 3, 1, 2, 2

    key = jax.random.PRNGKey(0)
    kx, kdw, kpw = jax.random.split(key, 3)

    x = jax.random.normal(kx, (N, C_in, H, W), dtype=jnp.float32)
    w_dw = 0.1 * jax.random.normal(kdw, (C_in, 1, kernel_size, kernel_size),
                                   dtype=jnp.float32)
    w_pw = 0.1 * jax.random.normal(kpw, (C_out, C_in, 1, 1), dtype=jnp.float32)
    gamma = jnp.ones((C_out,), jnp.float32)      # BatchNorm2d default init
    beta = jnp.zeros((C_out,), jnp.float32)

    out = dil_conv_forward(x, w_dw, w_pw, gamma, beta,
                           kernel_size=kernel_size, stride=stride,
                           padding=padding, dilation=dilation)
    jax.block_until_ready(out)
    assert out.shape == (N, C_out, H, W), out.shape

    ref = _reference(x, w_dw, w_pw, gamma, beta,
                     stride=stride, padding=padding, dilation=dilation)
    max_err = float(jnp.max(jnp.abs(out - ref)))
    # bf16 MXU operands vs f32 reference -> relaxed tolerance on BN-normalized output.
    assert max_err < 0.1, f"max abs error vs reference: {max_err}"

    print("KERNEL_OK")
</pallas_src>

<mosaic_0001>
module attributes {stable_mosaic.version = 11 : i64} {
  func.func @fused_conv_kernel(%arg0: i32, %arg1: memref<1x16x16x4xf32, #tpu.memory_space<vmem>>, %arg2: memref<9x4x8xbf16, #tpu.memory_space<vmem>>, %arg3: memref<1x16x16x8xf32, #tpu.memory_space<vmem>>, %arg4: memref<1x1x8xf32, #tpu.memory_space<vmem>>, %arg5: memref<1x1x8xf32, #tpu.memory_space<vmem>>, %arg6: memref<20x20x4xf32, #tpu.memory_space<vmem>>) attributes {dimension_semantics = [#tpu.dimension_semantics<parallel>], iteration_bounds = array<i64: 2>, scalar_prefetch = 0 : i64, scratch_operands = 1 : i64, tpu.core_type = #tpu.core_type<tc>, window_params = [{transform_indices = @transform_0, window_bounds = array<i64: 1, 16, 16, 4>}, {pipeline_mode = #tpu.pipeline_mode<synchronous>, transform_indices = @transform_1, window_bounds = array<i64: 9, 4, 8>}, {transform_indices = @transform_2, window_bounds = array<i64: 1, 16, 16, 8>}, {transform_indices = @transform_3, window_bounds = array<i64: 1, 1, 8>}, {transform_indices = @transform_4, window_bounds = array<i64: 1, 1, 8>}]} {
    %cst = arith.constant 0.000000e+00 : f32
    %0 = vector.broadcast %cst : f32 to vector<20x20x4xf32>
    %c0 = arith.constant 0 : index
    %c0_0 = arith.constant 0 : index
    %c0_1 = arith.constant 0 : index
    %1 = vector.load %arg6[%c0, %c0_0, %c0_1] : memref<20x20x4xf32, #tpu.memory_space<vmem>>, vector<20x20x4xf32>
    tpu.vector_store %arg6[%c0, %c0_0, %c0_1], %0 {strides = array<i32>} : memref<20x20x4xf32, #tpu.memory_space<vmem>>, vector<20x20x4xf32>,
    %c0_2 = arith.constant 0 : index
    %c0_3 = arith.constant 0 : index
    %c0_4 = arith.constant 0 : index
    %c0_5 = arith.constant 0 : index
    %2 = vector.load %arg1[%c0_2, %c0_3, %c0_4, %c0_5] : memref<1x16x16x4xf32, #tpu.memory_space<vmem>>, vector<1x16x16x4xf32>
    %3 = vector.shape_cast %2 : vector<1x16x16x4xf32> to vector<16x16x4xf32>
    %cst_6 = arith.constant 0.000000e+00 : f32
    %4 = vector.broadcast %cst_6 : f32 to vector<16x16x4xf32>
    %5 = arith.maximumf %3, %4 : vector<16x16x4xf32>
    %c2 = arith.constant 2 : index
    %c2_7 = arith.constant 2 : index
    %c0_8 = arith.constant 0 : index
    %6 = vector.load %arg6[%c2, %c2_7, %c0_8] : memref<20x20x4xf32, #tpu.memory_space<vmem>>, vector<16x16x4xf32>
    tpu.vector_store %arg6[%c2, %c2_7, %c0_8], %5 {strides = array<i32>} : memref<20x20x4xf32, #tpu.memory_space<vmem>>, vector<16x16x4xf32>,
    %c0_9 = arith.constant 0 : index
    %c0_10 = arith.constant 0 : index
    %c0_11 = arith.constant 0 : index
    %7 = vector.load %arg2[%c0_9, %c0_10, %c0_11] : memref<9x4x8xbf16, #tpu.memory_space<vmem>>, vector<9x4x8xbf16>
    %c0_12 = arith.constant 0 : index
    %c0_13 = arith.constant 0 : index
    %c0_14 = arith.constant 0 : index
    %8 = vector.load %arg6[%c0_12, %c0_13, %c0_14] : memref<20x20x4xf32, #tpu.memory_space<vmem>>, vector<16x16x4xf32>
    %9 = vector.shape_cast %8 : vector<16x16x4xf32> to vector<256x4xf32>
    %10 = arith.truncf %9 : vector<256x4xf32> to vector<256x4xbf16>
    %11 = vector.extract_strided_slice %7 {offsets = [0, 0, 0], sizes = [1, 4, 8], strides = [1, 1, 1]} : vector<9x4x8xbf16> to vector<1x4x8xbf16>
    %12 = vector.shape_cast %11 : vector<1x4x8xbf16> to vector<4x8xbf16>
    %cst_15 = arith.constant dense<0.000000e+00> : vector<256x8xf32>
    %13 = tpu.matmul %10, %12, %cst_15 {dimension_numbers = #tpu.dot_dimension_numbers<[1], [0], [0], [1], [0, 0, 1, 1], [], []>} : vector<256x4xbf16>, vector<4x8xbf16>, vector<256x8xf32> -> vector<256x8xf32>
    %c0_16 = arith.constant 0 : index
    %c2_17 = arith.constant 2 : index
    %c0_18 = arith.constant 0 : index
    %14 = vector.load %arg6[%c0_16, %c2_17, %c0_18] : memref<20x20x4xf32, #tpu.memory_space<vmem>>, vector<16x16x4xf32>
    %15 = vector.shape_cast %14 : vector<16x16x4xf32> to vector<256x4xf32>
    %16 = arith.truncf %15 : vector<256x4xf32> to vector<256x4xbf16>
    %17 = vector.extract_strided_slice %7 {offsets = [1, 0, 0], sizes = [1, 4, 8], strides = [1, 1, 1]} : vector<9x4x8xbf16> to vector<1x4x8xbf16>
    %18 = vector.shape_cast %17 : vector<1x4x8xbf16> to vector<4x8xbf16>
    %cst_19 = arith.constant dense<0.000000e+00> : vector<256x8xf32>
    %19 = tpu.matmul %16, %18, %cst_19 {dimension_numbers = #tpu.dot_dimension_numbers<[1], [0], [0], [1], [0, 0, 1, 1], [], []>} : vector<256x4xbf16>, vector<4x8xbf16>, vector<256x8xf32> -> vector<256x8xf32>
    %20 = arith.addf %13, %19 : vector<256x8xf32>
    %c0_20 = arith.constant 0 : index
    %c4 = arith.constant 4 : index
    %c0_21 = arith.constant 0 : index
    %21 = vector.load %arg6[%c0_20, %c4, %c0_21] : memref<20x20x4xf32, #tpu.memory_space<vmem>>, vector<16x16x4xf32>
    %22 = vector.shape_cast %21 : vector<16x16x4xf32> to vector<256x4xf32>
    %23 = arith.truncf %22 : vector<256x4xf32> to vector<256x4xbf16>
    %24 = vector.extract_strided_slice %7 {offsets = [2, 0, 0], sizes = [1, 4, 8], strides = [1, 1, 1]} : vector<9x4x8xbf16> to vector<1x4x8xbf16>
    %25 = vector.shape_cast %24 : vector<1x4x8xbf16> to vector<4x8xbf16>
    %cst_22 = arith.constant dense<0.000000e+00> : vector<256x8xf32>
    %26 = tpu.matmul %23, %25, %cst_22 {dimension_numbers = #tpu.dot_dimension_numbers<[1], [0], [0], [1], [0, 0, 1, 1], [], []>} : vector<256x4xbf16>, vector<4x8xbf16>, vector<256x8xf32> -> vector<256x8xf32>
    %27 = arith.addf %20, %26 : vector<256x8xf32>
    %c2_23 = arith.constant 2 : index
    %c0_24 = arith.constant 0 : index
    %c0_25 = arith.constant 0 : index
    %28 = vector.load %arg6[%c2_23, %c0_24, %c0_25] : memref<20x20x4xf32, #tpu.memory_space<vmem>>, vector<16x16x4xf32>
    %29 = vector.shape_cast %28 : vector<16x16x4xf32> to vector<256x4xf32>
    %30 = arith.truncf %29 : vector<256x4xf32> to vector<256x4xbf16>
    %31 = vector.extract_strided_slice %7 {offsets = [3, 0, 0], sizes = [1, 4, 8], strides = [1, 1, 1]} : vector<9x4x8xbf16> to vector<1x4x8xbf16>
    %32 = vector.shape_cast %31 : vector<1x4x8xbf16> to vector<4x8xbf16>
    %cst_26 = arith.constant dense<0.000000e+00> : vector<256x8xf32>
    %33 = tpu.matmul %30, %32, %cst_26 {dimension_numbers = #tpu.dot_dimension_numbers<[1], [0], [0], [1], [0, 0, 1, 1], [], []>} : vector<256x4xbf16>, vector<4x8xbf16>, vector<256x8xf32> -> vector<256x8xf32>
    %34 = arith.addf %27, %33 : vector<256x8xf32>
    %c2_27 = arith.constant 2 : index
    %c2_28 = arith.constant 2 : index
    %c0_29 = arith.constant 0 : index
    %35 = vector.load %arg6[%c2_27, %c2_28, %c0_29] : memref<20x20x4xf32, #tpu.memory_space<vmem>>, vector<16x16x4xf32>
    %36 = vector.shape_cast %35 : vector<16x16x4xf32> to vector<256x4xf32>
    %37 = arith.truncf %36 : vector<256x4xf32> to vector<256x4xbf16>
    %38 = vector.extract_strided_slice %7 {offsets = [4, 0, 0], sizes = [1, 4, 8], strides = [1, 1, 1]} : vector<9x4x8xbf16> to vector<1x4x8xbf16>
    %39 = vector.shape_cast %38 : vector<1x4x8xbf16> to vector<4x8xbf16>
    %cst_30 = arith.constant dense<0.000000e+00> : vector<256x8xf32>
    %40 = tpu.matmul %37, %39, %cst_30 {dimension_numbers = #tpu.dot_dimension_numbers<[1], [0], [0], [1], [0, 0, 1, 1], [], []>} : vector<256x4xbf16>, vector<4x8xbf16>, vector<256x8xf32> -> vector<256x8xf32>
    %41 = arith.addf %34, %40 : vector<256x8xf32>
    %c2_31 = arith.constant 2 : index
    %c4_32 = arith.constant 4 : index
    %c0_33 = arith.constant 0 : index
    %42 = vector.load %arg6[%c2_31, %c4_32, %c0_33] : memref<20x20x4xf32, #tpu.memory_space<vmem>>, vector<16x16x4xf32>
    %43 = vector.shape_cast %42 : vector<16x16x4xf32> to vector<256x4xf32>
    %44 = arith.truncf %43 : vector<256x4xf32> to vector<256x4xbf16>
    %45 = vector.extract_strided_slice %7 {offsets = [5, 0, 0], sizes = [1, 4, 8], strides = [1, 1, 1]} : vector<9x4x8xbf16> to vector<1x4x8xbf16>
    %46 = vector.shape_cast %45 : vector<1x4x8xbf16> to vector<4x8xbf16>
    %cst_34 = arith.constant dense<0.000000e+00> : vector<256x8xf32>
    %47 = tpu.matmul %44, %46, %cst_34 {dimension_numbers = #tpu.dot_dimension_numbers<[1], [0], [0], [1], [0, 0, 1, 1], [], []>} : vector<256x4xbf16>, vector<4x8xbf16>, vector<256x8xf32> -> vector<256x8xf32>
    %48 = arith.addf %41, %47 : vector<256x8xf32>
    %c4_35 = arith.constant 4 : index
    %c0_36 = arith.constant 0 : index
    %c0_37 = arith.constant 0 : index
    %49 = vector.load %arg6[%c4_35, %c0_36, %c0_37] : memref<20x20x4xf32, #tpu.memory_space<vmem>>, vector<16x16x4xf32>
    %50 = vector.shape_cast %49 : vector<16x16x4xf32> to vector<256x4xf32>
    %51 = arith.truncf %50 : vector<256x4xf32> to vector<256x4xbf16>
    %52 = vector.extract_strided_slice %7 {offsets = [6, 0, 0], sizes = [1, 4, 8], strides = [1, 1, 1]} : vector<9x4x8xbf16> to vector<1x4x8xbf16>
    %53 = vector.shape_cast %52 : vector<1x4x8xbf16> to vector<4x8xbf16>
    %cst_38 = arith.constant dense<0.000000e+00> : vector<256x8xf32>
    %54 = tpu.matmul %51, %53, %cst_38 {dimension_numbers = #tpu.dot_dimension_numbers<[1], [0], [0], [1], [0, 0, 1, 1], [], []>} : vector<256x4xbf16>, vector<4x8xbf16>, vector<256x8xf32> -> vector<256x8xf32>
    %55 = arith.addf %48, %54 : vector<256x8xf32>
    %c4_39 = arith.constant 4 : index
    %c2_40 = arith.constant 2 : index
    %c0_41 = arith.constant 0 : index
    %56 = vector.load %arg6[%c4_39, %c2_40, %c0_41] : memref<20x20x4xf32, #tpu.memory_space<vmem>>, vector<16x16x4xf32>
    %57 = vector.shape_cast %56 : vector<16x16x4xf32> to vector<256x4xf32>
    %58 = arith.truncf %57 : vector<256x4xf32> to vector<256x4xbf16>
    %59 = vector.extract_strided_slice %7 {offsets = [7, 0, 0], sizes = [1, 4, 8], strides = [1, 1, 1]} : vector<9x4x8xbf16> to vector<1x4x8xbf16>
    %60 = vector.shape_cast %59 : vector<1x4x8xbf16> to vector<4x8xbf16>
    %cst_42 = arith.constant dense<0.000000e+00> : vector<256x8xf32>
    %61 = tpu.matmul %58, %60, %cst_42 {dimension_numbers = #tpu.dot_dimension_numbers<[1], [0], [0], [1], [0, 0, 1, 1], [], []>} : vector<256x4xbf16>, vector<4x8xbf16>, vector<256x8xf32> -> vector<256x8xf32>
    %62 = arith.addf %55, %61 : vector<256x8xf32>
    %c4_43 = arith.constant 4 : index
    %c4_44 = arith.constant 4 : index
    %c0_45 = arith.constant 0 : index
    %63 = vector.load %arg6[%c4_43, %c4_44, %c0_45] : memref<20x20x4xf32, #tpu.memory_space<vmem>>, vector<16x16x4xf32>
    %64 = vector.shape_cast %63 : vector<16x16x4xf32> to vector<256x4xf32>
    %65 = arith.truncf %64 : vector<256x4xf32> to vector<256x4xbf16>
    %66 = vector.extract_strided_slice %7 {offsets = [8, 0, 0], sizes = [1, 4, 8], strides = [1, 1, 1]} : vector<9x4x8xbf16> to vector<1x4x8xbf16>
    %67 = vector.shape_cast %66 : vector<1x4x8xbf16> to vector<4x8xbf16>
    %cst_46 = arith.constant dense<0.000000e+00> : vector<256x8xf32>
    %68 = tpu.matmul %65, %67, %cst_46 {dimension_numbers = #tpu.dot_dimension_numbers<[1], [0], [0], [1], [0, 0, 1, 1], [], []>} : vector<256x4xbf16>, vector<4x8xbf16>, vector<256x8xf32> -> vector<256x8xf32>
    %69 = arith.addf %62, %68 : vector<256x8xf32>
    %70 = vector.shape_cast %69 : vector<256x8xf32> to vector<1x16x16x8xf32>
    %c0_47 = arith.constant 0 : index
    %c0_48 = arith.constant 0 : index
    %c0_49 = arith.constant 0 : index
    %c0_50 = arith.constant 0 : index
    %71 = vector.load %arg3[%c0_47, %c0_48, %c0_49, %c0_50] : memref<1x16x16x8xf32, #tpu.memory_space<vmem>>, vector<1x16x16x8xf32>
    tpu.vector_store %arg3[%c0_47, %c0_48, %c0_49, %c0_50], %70 {strides = array<i32>} : memref<1x16x16x8xf32, #tpu.memory_space<vmem>>, vector<1x16x16x8xf32>,
    %cst_51 = arith.constant dense<0.000000e+00> : vector<8xf32>
    %72 = vector.multi_reduction <add>, %69, %cst_51 [0] : vector<256x8xf32> to vector<8xf32>
    %73 = vector.shape_cast %72 : vector<8xf32> to vector<1x8xf32>
    %74 = vector.shape_cast %73 : vector<1x8xf32> to vector<1x1x8xf32>
    %c0_52 = arith.constant 0 : index
    %c0_53 = arith.constant 0 : index
    %c0_54 = arith.constant 0 : index
    %75 = vector.load %arg4[%c0_52, %c0_53, %c0_54] : memref<1x1x8xf32, #tpu.memory_space<vmem>>, vector<1x1x8xf32>
    tpu.vector_store %arg4[%c0_52, %c0_53, %c0_54], %74 {strides = array<i32>} : memref<1x1x8xf32, #tpu.memory_space<vmem>>, vector<1x1x8xf32>,
    %76 = arith.mulf %69, %69 : vector<256x8xf32>
    %cst_55 = arith.constant dense<0.000000e+00> : vector<8xf32>
    %77 = vector.multi_reduction <add>, %76, %cst_55 [0] : vector<256x8xf32> to vector<8xf32>
    %78 = vector.shape_cast %77 : vector<8xf32> to vector<1x8xf32>
    %79 = vector.shape_cast %78 : vector<1x8xf32> to vector<1x1x8xf32>
    %c0_56 = arith.constant 0 : index
    %c0_57 = arith.constant 0 : index
    %c0_58 = arith.constant 0 : index
    %80 = vector.load %arg5[%c0_56, %c0_57, %c0_58] : memref<1x1x8xf32, #tpu.memory_space<vmem>>, vector<1x1x8xf32>
    tpu.vector_store %arg5[%c0_56, %c0_57, %c0_58], %79 {strides = array<i32>} : memref<1x1x8xf32, #tpu.memory_space<vmem>>, vector<1x1x8xf32>,
    return
  }
  func.func @transform_0(%arg0: i32) -> (i32, i32, i32, i32) {
    %c0_i32 = arith.constant 0 : i32
    %c0_i32_0 = arith.constant 0 : i32
    %c0_i32_1 = arith.constant 0 : i32
    %c0_i32_2 = arith.constant 0 : i32
    return %arg0, %c0_i32, %c0_i32_0, %c0_i32_1 : i32, i32, i32, i32
  }
  func.func @transform_1(%arg0: i32) -> (i32, i32, i32) {
    %c0_i32 = arith.constant 0 : i32
    %c0_i32_0 = arith.constant 0 : i32
    %c0_i32_1 = arith.constant 0 : i32
    %c0_i32_2 = arith.constant 0 : i32
    return %c0_i32, %c0_i32_0, %c0_i32_1 : i32, i32, i32
  }
  func.func @transform_2(%arg0: i32) -> (i32, i32, i32, i32) {
    %c0_i32 = arith.constant 0 : i32
    %c0_i32_0 = arith.constant 0 : i32
    %c0_i32_1 = arith.constant 0 : i32
    %c0_i32_2 = arith.constant 0 : i32
    return %arg0, %c0_i32, %c0_i32_0, %c0_i32_1 : i32, i32, i32, i32
  }
  func.func @transform_3(%arg0: i32) -> (i32, i32, i32) {
    %c0_i32 = arith.constant 0 : i32
    %c0_i32_0 = arith.constant 0 : i32
    %c0_i32_1 = arith.constant 0 : i32
    return %arg0, %c0_i32, %c0_i32_0 : i32, i32, i32
  }
  func.func @transform_4(%arg0: i32) -> (i32, i32, i32) {
    %c0_i32 = arith.constant 0 : i32
    %c0_i32_0 = arith.constant 0 : i32
    %c0_i32_1 = arith.constant 0 : i32
    return %arg0, %c0_i32, %c0_i32_0 : i32, i32, i32
  }
}

</mosaic_0001>

<llo_original>
// kernel: tpu_custom_call.1
$region0: #{tpu_custom_call.1}
  #allocation0 [shape = 'u32[]', space=smem, size = 0x4, offset = 0x4, fixed_abs, tag = 'smem constant byte address 0x4 - core index']
  #allocation1 [shape = 'u32[144,128]{1,0:T(1,128)}', space=vmem, size = 0x12000, scoped, tag = 'internal scratch']
  #allocation2 [shape = 'f32[20,20,4]{2,1,0:T(8,128)}', space=vmem, size = 0x3c000, scoped, tag = 'scratch operand']
  %s0 = inlined_call_operand.vmem [shape: f32[2,16,16,4], index: 0, kind: input, shape index: {}]
  %s1 = inlined_call_operand.vmem [shape: bf16[9,4,8], index: 1, kind: input, shape index: {}]
  %s2 = inlined_call_operand.vmem [shape: f32[2,16,16,8], index: 2, kind: output, shape index: {0}]
  %s3 = inlined_call_operand.hbm [shape: f32[2,1,8], index: 3, kind: output, shape index: {1}]
  %s4 = inlined_call_operand.hbm [shape: f32[2,1,8], index: 4, kind: output, shape index: {2}]
  %5 = xla_tuple %s2, %s3, %s4
  %s6 = sld [smem:[#allocation0]]
  $region57: #{tpu_custom_call.1} parent=0
    _
  %s8 = ssub.s32 1, %s6
  %s9 = scalar_select 0, %s8, %s6
  $region1: #{tpu_custom_call.1} parent=0
    #allocation3 [shape = 'u8[1024]{0}', space=vmem, size = 0x400, scoped, tag = 'output window, operand 1']
    #allocation4 [shape = 's32[2]{0}', space=sflag, size = 0x8, scoped, tag = 'scoped memory for tpu_custom_call.1']
    #allocation5 [shape = 'u8[1024]{0}', space=vmem, size = 0x400, scoped, tag = 'output window, operand 2']
    #allocation6 [shape = 's32[2]{0}', space=sflag, size = 0x8, scoped, tag = 'scoped memory for tpu_custom_call.1']
    %10 = vsyncpa [#allocation4], 0
    %s11 = scalar_lea.sflag [#allocation4], 1
    %12 = vsyncpa %s11, 0
    %13 = vsyncpa [#allocation6], 0
    %s14 = scalar_lea.sflag [#allocation6], 1
    %15 = vsyncpa %s14, 0
    loop: start=0, step=1, limit=4
    $region2: #{tpu_custom_call.1} parent=1 // loop_pre_header
      _
    $region3: #{tpu_custom_call.1} parent=1 // loop_header
      %s17 = sphi 0, %s21
      %p18 = scmp.ge.s32.totalorder %s17, 4
      %s27 = sphi 0, %s29
      %s30 = sphi 0, %s27
      %s31 = sphi 0, %s30
      %s47 = sphi 0, %s31
      %s51 = sphi 0, %s51
      %s53 = sphi 0, %s51
      %s54 = sphi 0, %s53
      %s68 = sphi 0, %s54
      %s74 = sphi 0, %s76
      %s77 = sphi 0, %s74
      %s78 = sphi 0, %s77
      %s94 = sphi 0, %s78
      %s100 = sphi 0, %s102
      %s103 = sphi 0, %s100
      %s104 = sphi 0, %s103
      %s120 = sphi 0, %s104
      %s126 = sphi 0, %s128
      %s129 = sphi 0, %s126
      %s130 = sphi 0, %s129
      %s146 = sphi 0, %s130
    $region4: #{tpu_custom_call.1} parent=1 // loop_header_branch
      %20 = sbr.rel (%p18) target = $region8
    $region5: #{tpu_custom_call.1} parent=1 // loop_body
      %s22 = ssub.s32 %s17, 1
      %s23 = ssub.s32 %s17, 2
      %s24 = sadd.s32 %s17, 1
      %s25 = ssub.s32 %s17, %s24
      %p26 = scmp.eq.s32.totalorder %s25, 0
      %s28 = sadd.s32 %s27, 1
      %s29 = scalar_select %p26, %s27, %s28
      %p32 = pneg %p26
      %p33 = scmp.eq.s32.totalorder %s17, 1
      %p34 = por %p32, %p33
      %p35 = scmp.ne.s32.totalorder %s27, %s30
      %p36 = scmp.eq.s32.totalorder %s17, 0
      %p37 = por %p35, %p36
      %p38 = scmp.ne.s32.totalorder %s27, %s30
      %p39 = scmp.eq.s32.totalorder %s22, 1
      %p40 = por %p38, %p39
      %p41 = scmp.ne.s32.totalorder %s30, %s31
      %p42 = scmp.eq.s32.totalorder %s22, 0
      %p43 = por %p41, %p42
      %p44 = scmp.ne.s32.totalorder %s30, %s31
      %p45 = scmp.eq.s32.totalorder %s23, 1
      %p46 = por %p44, %p45
      %p48 = scmp.ne.s32.totalorder %s31, %s47
      %p49 = scmp.eq.s32.totalorder %s23, 0
      %p50 = por %p48, %p49
      %s52 = sadd.s32 %s51, 1
      %p55 = scmp.eq.s32.totalorder %s17, 1
      %p56 = scmp.ne.s32.totalorder %s51, %s53
      %p57 = scmp.eq.s32.totalorder %s17, 0
      %p58 = por %p56, %p57
      %p59 = scmp.ne.s32.totalorder %s51, %s53
      %p60 = scmp.eq.s32.totalorder %s22, 1
      %p61 = por %p59, %p60
      %p62 = scmp.ne.s32.totalorder %s53, %s54
      %p63 = scmp.eq.s32.totalorder %s22, 0
      %p64 = por %p62, %p63
      %p65 = scmp.ne.s32.totalorder %s53, %s54
      %p66 = scmp.eq.s32.totalorder %s23, 1
      %p67 = por %p65, %p66
      %p69 = scmp.ne.s32.totalorder %s54, %s68
      %p70 = scmp.eq.s32.totalorder %s23, 0
      %p71 = por %p69, %p70
      %s72 = ssub.s32 %s17, %s24
      %p73 = scmp.eq.s32.totalorder %s72, 0
      %s75 = sadd.s32 %s74, 1
      %s76 = scalar_select %p73, %s74, %s75
      %p79 = pneg %p73
      %p80 = scmp.eq.s32.totalorder %s17, 1
      %p81 = por %p79, %p80
      %p82 = scmp.ne.s32.totalorder %s74, %s77
      %p83 = scmp.eq.s32.totalorder %s17, 0
      %p84 = por %p82, %p83
      %p85 = scmp.ne.s32.totalorder %s74, %s77
      %p86 = scmp.eq.s32.totalorder %s22, 1
      %p87 = por %p85, %p86
      %p88 = scmp.ne.s32.totalorder %s77, %s78
      %p89 = scmp.eq.s32.totalorder %s22, 0
      %p90 = por %p88, %p89
      %p91 = scmp.ne.s32.totalorder %s77, %s78
      %p92 = scmp.eq.s32.totalorder %s23, 1
      %p93 = por %p91, %p92
      %p95 = scmp.ne.s32.totalorder %s78, %s94
      %p96 = scmp.eq.s32.totalorder %s23, 0
      %p97 = por %p95, %p96
      %s98 = ssub.s32 %s17, %s24
      %p99 = scmp.eq.s32.totalorder %s98, 0
      %s101 = sadd.s32 %s100, 1
      %s102 = scalar_select %p99, %s100, %s101
      %p105 = pneg %p99
      %p106 = scmp.eq.s32.totalorder %s17, 1
      %p107 = por %p105, %p106
      %p108 = scmp.ne.s32.totalorder %s100, %s103
      %p109 = scmp.eq.s32.totalorder %s17, 0
      %p110 = por %p108, %p109
      %p111 = scmp.ne.s32.totalorder %s100, %s103
      %p112 = scmp.eq.s32.totalorder %s22, 1
      %p113 = por %p111, %p112
      %p114 = scmp.ne.s32.totalorder %s103, %s104
      %p115 = scmp.eq.s32.totalorder %s22, 0
      %p116 = por %p114, %p115
      %p117 = scmp.ne.s32.totalorder %s103, %s104
      %p118 = scmp.eq.s32.totalorder %s23, 1
      %p119 = por %p117, %p118
      %p121 = scmp.ne.s32.totalorder %s104, %s120
      %p122 = scmp.eq.s32.totalorder %s23, 0
      %p123 = por %p121, %p122
      %s124 = ssub.s32 %s17, %s24
      %p125 = scmp.eq.s32.totalorder %s124, 0
      %s127 = sadd.s32 %s126, 1
      %s128 = scalar_select %p125, %s126, %s127
      %p131 = pneg %p125
      %p132 = scmp.eq.s32.totalorder %s17, 1
      %p133 = por %p131, %p132
      %p134 = scmp.ne.s32.totalorder %s126, %s129
      %p135 = scmp.eq.s32.totalorder %s17, 0
      %p136 = por %p134, %p135
      %p137 = scmp.ne.s32.totalorder %s126, %s129
      %p138 = scmp.eq.s32.totalorder %s22, 1
      %p139 = por %p137, %p138
      %p140 = scmp.ne.s32.totalorder %s129, %s130
      %p141 = scmp.eq.s32.totalorder %s22, 0
      %p142 = por %p140, %p141
      %p143 = scmp.ne.s32.totalorder %s129, %s130
      %p144 = scmp.eq.s32.totalorder %s23, 1
      %p145 = por %p143, %p144
      %p147 = scmp.ne.s32.totalorder %s130, %s146
      %p148 = scmp.eq.s32.totalorder %s23, 0
      %p149 = por %p147, %p148
      %p150 = scmp.le.s32.totalorder 1, %s17
      %p151 = scmp.lt.s32.totalorder %s17, 3
      %p152 = pnand %p150, %p151
      %p153 = pneg %p152
      // Predicated region
      $region9: #{tpu_custom_call.1} parent=5 // pred_check
        _
      $region10: #{tpu_custom_call.1} parent=5 // pred_check_branch
        %155 = sbr.rel (%p152) target = $region12
      $region11: #{tpu_custom_call.1} parent=5 // pred_region
        %s156 = ssub.s32 %s17, 1
        // Predicated region
        $region13: #{tpu_custom_call.1} parent=11 // pred_check
          %p157 = pneg %p64
        $region14: #{tpu_custom_call.1} parent=11 // pred_check_branch
          %159 = sbr.rel (%p157) target = $region16
        $region15: #{tpu_custom_call.1} parent=11 // pred_region
          _
        $region16: #{tpu_custom_call.1} parent=11 // pred_fallthru
          _
      $region12: #{tpu_custom_call.1} parent=5 // pred_fallthru
        _
      %p160 = scmp.lt.s32.totalorder %s17, 2
      // Predicated region
      $region17: #{tpu_custom_call.1} parent=5 // pred_check
        %p161 = pneg %p160
      $region18: #{tpu_custom_call.1} parent=5 // pred_check_branch
        %163 = sbr.rel (%p161) target = $region20
      $region19: #{tpu_custom_call.1} parent=5 // pred_region
        // Predicated region
        $region21: #{tpu_custom_call.1} parent=19 // pred_check
          %p164 = pneg %p37
        $region22: #{tpu_custom_call.1} parent=19 // pred_check_branch
          %166 = sbr.rel (%p164) target = $region24
        $region23: #{tpu_custom_call.1} parent=19 // pred_region
          %p167 = scmp.lt.s32.totalorder %s17, 1
          %s168 = scalar_select %p167, %s17, 1
          %s169 = smul.addr %s168, 32
          %s170 = smul.addr %s169, 8
          %s171 = scalar_lea.vmem %s0, %s170
        $region24: #{tpu_custom_call.1} parent=19 // pred_fallthru
          _
      $region20: #{tpu_custom_call.1} parent=5 // pred_fallthru
        _
      %p172 = scmp.le.s32.totalorder 1, %s17
      %p173 = scmp.lt.s32.totalorder %s17, 3
      %p174 = pnand %p172, %p173
      %p175 = pneg %p174
      // Predicated region
      $region25: #{tpu_custom_call.1} parent=5 // pred_check
        _
      $region26: #{tpu_custom_call.1} parent=5 // pred_check_branch
        %177 = sbr.rel (%p174) target = $region28
      $region27: #{tpu_custom_call.1} parent=5 // pred_region
        %s178 = ssub.s32 %s17, 1
        %p179 = scmp.lt.s32.totalorder %s22, 1
        %s180 = scalar_select %p179, %s22, 1
        %s181 = smul.addr %s180, 32
        %s182 = smul.addr %s181, 8
        %s183 = scalar_lea.vmem %s0, %s182
        %p184 = pneg %p43
        %p185 = pneg %p40
        %p186 = pneg %p64
        %p187 = pneg %p61
        %p188 = pneg %p90
        %p189 = pneg %p87
        %p190 = scmp.lt.s32.totalorder %s22, 1
        %s191 = scalar_select %p190, %s22, 1
        %s192 = smul.addr %s191, 32
        %s193 = smul.addr %s192, 8
        %s194 = scalar_lea.vmem %s2, %s193
        %p195 = pneg %p116
        %p196 = pneg %p113
        %s197 = sand.u32 %s103, 1
        %s198 = scalar_lea.sflag [#allocation4], %s197
        %s199 = sand.u32 %s103, 1
        %s200 = scalar_lea.vmem [#allocation3], %s199
        %p201 = pneg %p142
        %p202 = pneg %p139
        %s203 = sand.u32 %s129, 1
        %s204 = scalar_lea.sflag [#allocation6], %s203
        %s205 = sand.u32 %s129, 1
        %s206 = scalar_lea.vmem [#allocation5], %s205
        %p207 = scmp.lt.s32.totalorder %s22, 1
        %s208 = scalar_select %p207, %s22, 1
        %s209 = smul.addr %s208, 32
        %s210 = smul.addr %s209, 8
        %s211 = scalar_lea.vmem %s0, %s210
        %p212 = scmp.lt.s32.totalorder %s22, 1
        %s213 = scalar_select %p212, %s22, 1
        %s214 = smul.addr %s213, 32
        %s215 = smul.addr %s214, 8
        %s216 = scalar_lea.vmem %s2, %s215
        %vm218 = vcmask 31744
        %219 = vst.msk [vmem:[#allocation2] sm:$0xff] %vm218, 0.0
        %220 = vst.msk [vmem:[#allocation2 + $0x8] sm:$0xff] %vm218, 0.0
        %vm221 = vcmask 27648
        %222 = vst.msk [vmem:[#allocation2 + $0x10] sm:$0xf] %vm221, 0.0
        %223 = vst.msk [vmem:[#allocation2 + $0x18] sm:$0xff] %vm218, 0.0
        %224 = vst.msk [vmem:[#allocation2 + $0x20] sm:$0xff] %vm218, 0.0
        %225 = vst.msk [vmem:[#allocation2 + $0x28] sm:$0xf] %vm221, 0.0
        %226 = vst.msk [vmem:[#allocation2 + $0x30] sm:$0xff] %vm218, 0.0
        %227 = vst.msk [vmem:[#allocation2 + $0x38] sm:$0xff] %vm218, 0.0
        %228 = vst.msk [vmem:[#allocation2 + $0x40] sm:$0xf] %vm221, 0.0
        %229 = vst.msk [vmem:[#allocation2 + $0x48] sm:$0xff] %vm218, 0.0
        %230 = vst.msk [vmem:[#allocation2 + $0x50] sm:$0xff] %vm218, 0.0
        %231 = vst.msk [vmem:[#allocation2 + $0x58] sm:$0xf] %vm221, 0.0
        %232 = vst.msk [vmem:[#allocation2 + $0x60] sm:$0xff] %vm218, 0.0
        %233 = vst.msk [vmem:[#allocation2 + $0x68] sm:$0xff] %vm218, 0.0
        %234 = vst.msk [vmem:[#allocation2 + $0x70] sm:$0xf] %vm221, 0.0
        %235 = vst.msk [vmem:[#allocation2 + $0x78] sm:$0xff] %vm218, 0.0
        %236 = vst.msk [vmem:[#allocation2 + $0x80] sm:$0xff] %vm218, 0.0
        %237 = vst.msk [vmem:[#allocation2 + $0x88] sm:$0xf] %vm221, 0.0
        %238 = vst.msk [vmem:[#allocation2 + $0x90] sm:$0xff] %vm218, 0.0
        %239 = vst.msk [vmem:[#allocation2 + $0x98] sm:$0xff] %vm218, 0.0
        %240 = vst.msk [vmem:[#allocation2 + $0xa0] sm:$0xf] %vm221, 0.0
        %241 = vst.msk [vmem:[#allocation2 + $0xa8] sm:$0xff] %vm218, 0.0
        %242 = vst.msk [vmem:[#allocation2 + $0xb0] sm:$0xff] %vm218, 0.0
        %243 = vst.msk [vmem:[#allocation2 + $0xb8] sm:$0xf] %vm221, 0.0
        %244 = vst.msk [vmem:[#allocation2 + $0xc0] sm:$0xff] %vm218, 0.0
        %245 = vst.msk [vmem:[#allocation2 + $0xc8] sm:$0xff] %vm218, 0.0
        %246 = vst.msk [vmem:[#allocation2 + $0xd0] sm:$0xf] %vm221, 0.0
        %247 = vst.msk [vmem:[#allocation2 + $0xd8] sm:$0xff] %vm218, 0.0
        %248 = vst.msk [vmem:[#allocation2 + $0xe0] sm:$0xff] %vm218, 0.0
        %249 = vst.msk [vmem:[#allocation2 + $0xe8] sm:$0xf] %vm221, 0.0
        %250 = vst.msk [vmem:[#allocation2 + $0xf0] sm:$0xff] %vm218, 0.0
        %251 = vst.msk [vmem:[#allocation2 + $0xf8] sm:$0xff] %vm218, 0.0
        %252 = vst.msk [vmem:[#allocation2 + $0x100] sm:$0xf] %vm221, 0.0
        %253 = vst.msk [vmem:[#allocation2 + $0x108] sm:$0xff] %vm218, 0.0
        %254 = vst.msk [vmem:[#allocation2 + $0x110] sm:$0xff] %vm218, 0.0
        %255 = vst.msk [vmem:[#allocation2 + $0x118] sm:$0xf] %vm221, 0.0
        %256 = vst.msk [vmem:[#allocation2 + $0x120] sm:$0xff] %vm218, 0.0
        %257 = vst.msk [vmem:[#allocation2 + $0x128] sm:$0xff] %vm218, 0.0
        %258 = vst.msk [vmem:[#allocation2 + $0x130] sm:$0xf] %vm221, 0.0
        %259 = vst.msk [vmem:[#allocation2 + $0x138] sm:$0xff] %vm218, 0.0
        %260 = vst.msk [vmem:[#allocation2 + $0x140] sm:$0xff] %vm218, 0.0
        %261 = vst.msk [vmem:[#allocation2 + $0x148] sm:$0xf] %vm221, 0.0
        %262 = vst.msk [vmem:[#allocation2 + $0x150] sm:$0xff] %vm218, 0.0
        %263 = vst.msk [vmem:[#allocation2 + $0x158] sm:$0xff] %vm218, 0.0
        %264 = vst.msk [vmem:[#allocation2 + $0x160] sm:$0xf] %vm221, 0.0
        %265 = vst.msk [vmem:[#allocation2 + $0x168] sm:$0xff] %vm218, 0.0
        %266 = vst.msk [vmem:[#allocation2 + $0x170] sm:$0xff] %vm218, 0.0
        %267 = vst.msk [vmem:[#allocation2 + $0x178] sm:$0xf] %vm221, 0.0
        %268 = vst.msk [vmem:[#allocation2 + $0x180] sm:$0xff] %vm218, 0.0
        %269 = vst.msk [vmem:[#allocation2 + $0x188] sm:$0xff] %vm218, 0.0
        %270 = vst.msk [vmem:[#allocation2 + $0x190] sm:$0xf] %vm221, 0.0
        %271 = vst.msk [vmem:[#allocation2 + $0x198] sm:$0xff] %vm218, 0.0
        %272 = vst.msk [vmem:[#allocation2 + $0x1a0] sm:$0xff] %vm218, 0.0
        %273 = vst.msk [vmem:[#allocation2 + $0x1a8] sm:$0xf] %vm221, 0.0
        %274 = vst.msk [vmem:[#allocation2 + $0x1b0] sm:$0xff] %vm218, 0.0
        %275 = vst.msk [vmem:[#allocation2 + $0x1b8] sm:$0xff] %vm218, 0.0
        %276 = vst.msk [vmem:[#allocation2 + $0x1c0] sm:$0xf] %vm221, 0.0
        %277 = vst.msk [vmem:[#allocation2 + $0x1c8] sm:$0xff] %vm218, 0.0
        %278 = vst.msk [vmem:[#allocation2 + $0x1d0] sm:$0xff] %vm218, 0.0
        %279 = vst.msk [vmem:[#allocation2 + $0x1d8] sm:$0xf] %vm221, 0.0
        %v280 = vld [vmem:[%s211] sm:$0xff]
        %v281 = vld [vmem:[%s211 + $0x8] sm:$0xff]
        %v282 = vld [vmem:[%s211 + $0x10] sm:$0xff]
        %v283 = vld [vmem:[%s211 + $0x18] sm:$0xff]
        %v284 = vld [vmem:[%s211 + $0x20] sm:$0xff]
        %v285 = vld [vmem:[%s211 + $0x28] sm:$0xff]
        %v286 = vld [vmem:[%s211 + $0x30] sm:$0xff]
        %v287 = vld [vmem:[%s211 + $0x38] sm:$0xff]
        %v288 = vld [vmem:[%s211 + $0x40] sm:$0xff]
        %v289 = vld [vmem:[%s211 + $0x48] sm:$0xff]
        %v290 = vld [vmem:[%s211 + $0x50] sm:$0xff]
        %v291 = vld [vmem:[%s211 + $0x58] sm:$0xff]
        %v292 = vld [vmem:[%s211 + $0x60] sm:$0xff]
        %v293 = vld [vmem:[%s211 + $0x68] sm:$0xff]
        %v294 = vld [vmem:[%s211 + $0x70] sm:$0xff]
        %v295 = vld [vmem:[%s211 + $0x78] sm:$0xff]
        %v296 = vld [vmem:[%s211 + $0x80] sm:$0xff]
        %v297 = vld [vmem:[%s211 + $0x88] sm:$0xff]
        %v298 = vld [vmem:[%s211 + $0x90] sm:$0xff]
        %v299 = vld [vmem:[%s211 + $0x98] sm:$0xff]
        %v300 = vld [vmem:[%s211 + $0xa0] sm:$0xff]
        %v301 = vld [vmem:[%s211 + $0xa8] sm:$0xff]
        %v302 = vld [vmem:[%s211 + $0xb0] sm:$0xff]
        %v303 = vld [vmem:[%s211 + $0xb8] sm:$0xff]
        %v304 = vld [vmem:[%s211 + $0xc0] sm:$0xff]
        %v305 = vld [vmem:[%s211 + $0xc8] sm:$0xff]
        %v306 = vld [vmem:[%s211 + $0xd0] sm:$0xff]
        %v307 = vld [vmem:[%s211 + $0xd8] sm:$0xff]
        %v308 = vld [vmem:[%s211 + $0xe0] sm:$0xff]
        %v309 = vld [vmem:[%s211 + $0xe8] sm:$0xff]
        %v310 = vld [vmem:[%s211 + $0xf0] sm:$0xff]
        %v311 = vld [vmem:[%s211 + $0xf8] sm:$0xff]
        %v312 = vmax.f32 %v280, 0.0
        %v313 = vmax.f32 %v281, 0.0
        %v314 = vmax.f32 %v282, 0.0
        %v315 = vmax.f32 %v283, 0.0
        %v316 = vmax.f32 %v284, 0.0
        %v317 = vmax.f32 %v285, 0.0
        %v318 = vmax.f32 %v286, 0.0
        %v319 = vmax.f32 %v287, 0.0
        %v320 = vmax.f32 %v288, 0.0
        %v321 = vmax.f32 %v289, 0.0
        %v322 = vmax.f32 %v290, 0.0
        %v323 = vmax.f32 %v291, 0.0
        %v324 = vmax.f32 %v292, 0.0
        %v325 = vmax.f32 %v293, 0.0
        %v326 = vmax.f32 %v294, 0.0
        %v327 = vmax.f32 %v295, 0.0
        %v328 = vmax.f32 %v296, 0.0
        %v329 = vmax.f32 %v297, 0.0
        %v330 = vmax.f32 %v298, 0.0
        %v331 = vmax.f32 %v299, 0.0
        %v332 = vmax.f32 %v300, 0.0
        %v333 = vmax.f32 %v301, 0.0
        %v334 = vmax.f32 %v302, 0.0
        %v335 = vmax.f32 %v303, 0.0
        %v336 = vmax.f32 %v304, 0.0
        %v337 = vmax.f32 %v305, 0.0
        %v338 = vmax.f32 %v306, 0.0
        %v339 = vmax.f32 %v307, 0.0
        %v340 = vmax.f32 %v308, 0.0
        %v341 = vmax.f32 %v309, 0.0
        %v342 = vmax.f32 %v310, 0.0
        %v343 = vmax.f32 %v311, 0.0
        %s344 = scalar_lea.vmem [#allocation2], 48
        %345 = vst.msk [vmem:[%s344 + $0x2] sm:$0xff] %vm218, %v312
        %346 = vst.msk [vmem:[%s344 + $0xa] sm:$0xff] %vm218, %v313
        %347 = vst.msk [vmem:[%s344 + $0x1a] sm:$0xff] %vm218, %v314
        %348 = vst.msk [vmem:[%s344 + $0x22] sm:$0xff] %vm218, %v315
        %349 = vst.msk [vmem:[%s344 + $0x32] sm:$0xff] %vm218, %v316
        %350 = vst.msk [vmem:[%s344 + $0x3a] sm:$0xff] %vm218, %v317
        %351 = vst.msk [vmem:[%s344 + $0x4a] sm:$0xff] %vm218, %v318
        %352 = vst.msk [vmem:[%s344 + $0x52] sm:$0xff] %vm218, %v319
        %353 = vst.msk [vmem:[%s344 + $0x62] sm:$0xff] %vm218, %v320
        %354 = vst.msk [vmem:[%s344 + $0x6a] sm:$0xff] %vm218, %v321
        %355 = vst.msk [vmem:[%s344 + $0x7a] sm:$0xff] %vm218, %v322
        %356 = vst.msk [vmem:[%s344 + $0x82] sm:$0xff] %vm218, %v323
        %357 = vst.msk [vmem:[%s344 + $0x92] sm:$0xff] %vm218, %v324
        %358 = vst.msk [vmem:[%s344 + $0x9a] sm:$0xff] %vm218, %v325
        %359 = vst.msk [vmem:[%s344 + $0xaa] sm:$0xff] %vm218, %v326
        %360 = vst.msk [vmem:[%s344 + $0xb2] sm:$0xff] %vm218, %v327
        %361 = vst.msk [vmem:[%s344 + $0xc2] sm:$0xff] %vm218, %v328
        %362 = vst.msk [vmem:[%s344 + $0xca] sm:$0xff] %vm218, %v329
        %363 = vst.msk [vmem:[%s344 + $0xda] sm:$0xff] %vm218, %v330
        %364 = vst.msk [vmem:[%s344 + $0xe2] sm:$0xff] %vm218, %v331
        %365 = vst.msk [vmem:[%s344 + $0xf2] sm:$0xff] %vm218, %v332
        %366 = vst.msk [vmem:[%s344 + $0xfa] sm:$0xff] %vm218, %v333
        %367 = vst.msk [vmem:[%s344 + $0x10a] sm:$0xff] %vm218, %v334
        %368 = vst.msk [vmem:[%s344 + $0x112] sm:$0xff] %vm218, %v335
        %369 = vst.msk [vmem:[%s344 + $0x122] sm:$0xff] %vm218, %v336
        %370 = vst.msk [vmem:[%s344 + $0x12a] sm:$0xff] %vm218, %v337
        %371 = vst.msk [vmem:[%s344 + $0x13a] sm:$0xff] %vm218, %v338
        %372 = vst.msk [vmem:[%s344 + $0x142] sm:$0xff] %vm218, %v339
        %373 = vst.msk [vmem:[%s344 + $0x152] sm:$0xff] %vm218, %v340
        %374 = vst.msk [vmem:[%s344 + $0x15a] sm:$0xff] %vm218, %v341
        %375 = vst.msk [vmem:[%s344 + $0x16a] sm:$0xff] %vm218, %v342
        %376 = vst.msk [vmem:[%s344 + $0x172] sm:$0xff] %vm218, %v343
        %v377 = vld [vmem:[%s1] sm:$0x3]
        %v378 = vld [vmem:[%s1 + $0x2] sm:$0x3]
        %v379 = vld [vmem:[%s1 + $0x4] sm:$0x3]
        %v380 = vld [vmem:[%s1 + $0x6] sm:$0x3]
        %v381 = vld [vmem:[%s1 + $0x8] sm:$0x3]
        %v382 = vld [vmem:[%s1 + $0xa] sm:$0x3]
        %v383 = vld [vmem:[%s1 + $0xc] sm:$0x3]
        %v384 = vld [vmem:[%s1 + $0xe] sm:$0x3]
        %v385 = vld [vmem:[%s1 + $0x10] sm:$0x3]
        %v386 = vld [vmem:[#allocation2] sm:$0xff]
        %v387 = vld [vmem:[#allocation2 + $0x8] sm:$0xff]
        %v388 = vld [vmem:[#allocation2 + $0x18] sm:$0xff]
        %v389 = vld [vmem:[#allocation2 + $0x20] sm:$0xff]
        %v390 = vld [vmem:[#allocation2 + $0x30] sm:$0xff]
        %v391 = vld [vmem:[#allocation2 + $0x38] sm:$0xff]
        %v392 = vld [vmem:[#allocation2 + $0x48] sm:$0xff]
        %v393 = vld [vmem:[#allocation2 + $0x50] sm:$0xff]
        %v394 = vld [vmem:[#allocation2 + $0x60] sm:$0xff]
        %v395 = vld [vmem:[#allocation2 + $0x68] sm:$0xff]
        %v396 = vld [vmem:[#allocation2 + $0x78] sm:$0xff]
        %v397 = vld [vmem:[#allocation2 + $0x80] sm:$0xff]
        %v398 = vld [vmem:[#allocation2 + $0x90] sm:$0xff]
        %v399 = vld [vmem:[#allocation2 + $0x98] sm:$0xff]
        %v400 = vld [vmem:[#allocation2 + $0xa8] sm:$0xff]
        %v401 = vld [vmem:[#allocation2 + $0xb0] sm:$0xff]
        %v402 = vld [vmem:[#allocation2 + $0xc0] sm:$0xff]
        %v403 = vld [vmem:[#allocation2 + $0xc8] sm:$0xff]
        %v404 = vld [vmem:[#allocation2 + $0xd8] sm:$0xff]
        %v405 = vld [vmem:[#allocation2 + $0xe0] sm:$0xff]
        %v406 = vld [vmem:[#allocation2 + $0xf0] sm:$0xff]
        %v407 = vld [vmem:[#allocation2 + $0xf8] sm:$0xff]
        %v408 = vld [vmem:[#allocation2 + $0x108] sm:$0xff]
        %v409 = vld [vmem:[#allocation2 + $0x110] sm:$0xff]
        %v410 = vld [vmem:[#allocation2 + $0x120] sm:$0xff]
        %v411 = vld [vmem:[#allocation2 + $0x128] sm:$0xff]
        %v412 = vld [vmem:[#allocation2 + $0x138] sm:$0xff]
        %v413 = vld [vmem:[#allocation2 + $0x140] sm:$0xff]
        %v414 = vld [vmem:[#allocation2 + $0x150] sm:$0xff]
        %v415 = vld [vmem:[#allocation2 + $0x158] sm:$0xff]
        %v416 = vld [vmem:[#allocation2 + $0x168] sm:$0xff]
        %v417 = vld [vmem:[#allocation2 + $0x170] sm:$0xff]
        %v418 = vpack.c.bf16 %v387, %v386
        %v419 = vpack.c.bf16 %v389, %v388
        %v420 = vpack.c.bf16 %v391, %v390
        %v421 = vpack.c.bf16 %v393, %v392
        %v422 = vpack.c.bf16 %v395, %v394
        %v423 = vpack.c.bf16 %v397, %v396
        %v424 = vpack.c.bf16 %v399, %v398
        %v425 = vpack.c.bf16 %v401, %v400
        %v426 = vpack.c.bf16 %v403, %v402
        %v427 = vpack.c.bf16 %v405, %v404
        %v428 = vpack.c.bf16 %v407, %v406
        %v429 = vpack.c.bf16 %v409, %v408
        %v430 = vpack.c.bf16 %v411, %v410
        %v431 = vpack.c.bf16 %v413, %v412
        %v432 = vpack.c.bf16 %v415, %v414
        %v433 = vpack.c.bf16 %v417, %v416
        %v434 = vld [vmem:[#allocation2 + $0x2] sm:$0xff]
        %v435 = vld [vmem:[#allocation2 + $0xa] sm:$0xff]
        %v436 = vld [vmem:[#allocation2 + $0x1a] sm:$0xff]
        %v437 = vld [vmem:[#allocation2 + $0x22] sm:$0xff]
        %v438 = vld [vmem:[#allocation2 + $0x32] sm:$0xff]
        %v439 = vld [vmem:[#allocation2 + $0x3a] sm:$0xff]
        %v440 = vld [vmem:[#allocation2 + $0x4a] sm:$0xff]
        %v441 = vld [vmem:[#allocation2 + $0x52] sm:$0xff]
        %v442 = vld [vmem:[#allocation2 + $0x62] sm:$0xff]
        %v443 = vld [vmem:[#allocation2 + $0x6a] sm:$0xff]
        %v444 = vld [vmem:[#allocation2 + $0x7a] sm:$0xff]
        %v445 = vld [vmem:[#allocation2 + $0x82] sm:$0xff]
        %v446 = vld [vmem:[#allocation2 + $0x92] sm:$0xff]
        %v447 = vld [vmem:[#allocation2 + $0x9a] sm:$0xff]
        %v448 = vld [vmem:[#allocation2 + $0xaa] sm:$0xff]
        %v449 = vld [vmem:[#allocation2 + $0xb2] sm:$0xff]
        %v450 = vld [vmem:[#allocation2 + $0xc2] sm:$0xff]
        %v451 = vld [vmem:[#allocation2 + $0xca] sm:$0xff]
        %v452 = vld [vmem:[#allocation2 + $0xda] sm:$0xff]
        %v453 = vld [vmem:[#allocation2 + $0xe2] sm:$0xff]
        %v454 = vld [vmem:[#allocation2 + $0xf2] sm:$0xff]
        %v455 = vld [vmem:[#allocation2 + $0xfa] sm:$0xff]
        %v456 = vld [vmem:[#allocation2 + $0x10a] sm:$0xff]
        %v457 = vld [vmem:[#allocation2 + $0x112] sm:$0xff]
        %v458 = vld [vmem:[#allocation2 + $0x122] sm:$0xff]
        %v459 = vld [vmem:[#allocation2 + $0x12a] sm:$0xff]
        %v460 = vld [vmem:[#allocation2 + $0x13a] sm:$0xff]
        %v461 = vld [vmem:[#allocation2 + $0x142] sm:$0xff]
        %v462 = vld [vmem:[#allocation2 + $0x152] sm:$0xff]
        %v463 = vld [vmem:[#allocation2 + $0x15a] sm:$0xff]
        %v464 = vld [vmem:[#allocation2 + $0x16a] sm:$0xff]
        %v465 = vld [vmem:[#allocation2 + $0x172] sm:$0xff]
        %v466 = vpack.c.bf16 %v435, %v434
        %v467 = vpack.c.bf16 %v437, %v436
        %v468 = vpack.c.bf16 %v439, %v438
        %v469 = vpack.c.bf16 %v441, %v440
        %v470 = vpack.c.bf16 %v443, %v442
        %v471 = vpack.c.bf16 %v445, %v444
        %v472 = vpack.c.bf16 %v447, %v446
        %v473 = vpack.c.bf16 %v449, %v448
        %v474 = vpack.c.bf16 %v451, %v450
        %v475 = vpack.c.bf16 %v453, %v452
        %v476 = vpack.c.bf16 %v455, %v454
        %v477 = vpack.c.bf16 %v457, %v456
        %v478 = vpack.c.bf16 %v459, %v458
        %v479 = vpack.c.bf16 %v461, %v460
        %v480 = vpack.c.bf16 %v463, %v462
        %v481 = vpack.c.bf16 %v465, %v464
        %v483 = vsel %vm218, %v466, 0
        %v486 = vsel %vm218, %v467, 0
        %v489 = vsel %vm218, %v468, 0
        %v492 = vsel %vm218, %v469, 0
        %v495 = vsel %vm218, %v470, 0
        %v498 = vsel %vm218, %v471, 0
        %v501 = vsel %vm218, %v472, 0
        %v504 = vsel %vm218, %v473, 0
        %v507 = vsel %vm218, %v474, 0
        %v510 = vsel %vm218, %v475, 0
        %v513 = vsel %vm218, %v476, 0
        %v516 = vsel %vm218, %v477, 0
        %v519 = vsel %vm218, %v478, 0
        %v522 = vsel %vm218, %v479, 0
        %v525 = vsel %vm218, %v480, 0
        %v528 = vsel %vm218, %v481, 0
        %vm530 = vcmask 1041408
        %v532 = vsel %vm530, %v378, 0
        %534 = vmatprep.subr.bf16.mxu0 0
        %535 = vmatpush1.bf16.msra.mxu0 %v532
        %536 = vmatprep.subr.bf16.mxu0 0
        %537 = vmatpush1.bf16.msra.mxu0 0
        %538 = vmatprep.subr.bf16.mxu0 0
        %539 = vmatpush1.bf16.msra.mxu0 0
        %540 = vmatprep.subr.bf16.mxu0 0
        %541 = vmatpush1.bf16.msra.mxu0 0
        %542 = vmatprep.subr.bf16.mxu0 0
        %543 = vmatpush1.bf16.msra.mxu0 0
        %544 = vmatprep.subr.bf16.mxu0 0
        %545 = vmatpush1.bf16.msra.mxu0 0
        %546 = vmatprep.subr.bf16.mxu0 0
        %547 = vmatpush1.bf16.msra.mxu0 0
        %548 = vmatprep.subr.bf16.mxu0 0
        %549 = vmatpush1.bf16.msra.mxu0 0
        %550 = vmatprep.subr.bf16.mxu0 0
        %551 = vmatpush1.bf16.msra.mxu0 0
        %552 = vmatprep.subr.bf16.mxu0 0
        %553 = vmatpush1.bf16.msra.mxu0 0
        %554 = vmatprep.subr.bf16.mxu0 0
        %555 = vmatpush1.bf16.msra.mxu0 0
        %556 = vmatprep.subr.bf16.mxu0 0
        %557 = vmatpush1.bf16.msra.mxu0 0
        %558 = vmatprep.subr.bf16.mxu0 0
        %559 = vmatpush1.bf16.msra.mxu0 0
        %560 = vmatprep.subr.bf16.mxu0 0
        %561 = vmatpush1.bf16.msra.mxu0 0
        %562 = vmatprep.subr.bf16.mxu0 0
        %563 = vmatpush1.bf16.msra.mxu0 0
        %564 = vmatprep.subr.bf16.mxu0 0
        %565 = vmatpush1.bf16.msra.mxu0 0
        %566 = vmatprep.mubr.bf16.mxu0 0
        %567 = vmatmul.mubr.bf16.gmra.mrb[0].mxu0 %v483
        %v568 = vpop.f32.mrb[0].mxu0
        %v569 = vadd.f32 0.0, %v568
        %v570 = vpop.f32.mrb[0].mxu0
        %v571 = vpop.f32.mrb[0].mxu0
        %v572 = vadd.f32 0.0, %v571
        %v573 = vpop.f32.mrb[0].mxu0
        %574 = vmatprep.mubr.bf16.mxu0 0
        %575 = vmatmul.mubr.bf16.gmra.mrb[0].mxu0 %v486
        %v576 = vpop.f32.mrb[0].mxu0
        %v577 = vadd.f32 0.0, %v576
        %v578 = vpop.f32.mrb[0].mxu0
        %v579 = vpop.f32.mrb[0].mxu0
        %v580 = vadd.f32 0.0, %v579
        %v581 = vpop.f32.mrb[0].mxu0
        %582 = vmatprep.mubr.bf16.mxu0 0
        %583 = vmatmul.mubr.bf16.gmra.mrb[0].mxu0 %v489
        %v584 = vpop.f32.mrb[0].mxu0
        %v585 = vadd.f32 0.0, %v584
        %v586 = vpop.f32.mrb[0].mxu0
        %v587 = vpop.f32.mrb[0].mxu0
        %v588 = vadd.f32 0.0, %v587
        %v589 = vpop.f32.mrb[0].mxu0
        %590 = vmatprep.mubr.bf16.mxu0 0
        %591 = vmatmul.mubr.bf16.gmra.mrb[0].mxu0 %v492
        %v592 = vpop.f32.mrb[0].mxu0
        %v593 = vadd.f32 0.0, %v592
        %v594 = vpop.f32.mrb[0].mxu0
        %v595 = vpop.f32.mrb[0].mxu0
        %v596 = vadd.f32 0.0, %v595
        %v597 = vpop.f32.mrb[0].mxu0
        %598 = vmatprep.mubr.bf16.mxu0 0
        %599 = vmatmul.mubr.bf16.gmra.mrb[0].mxu0 %v495
        %v600 = vpop.f32.mrb[0].mxu0
        %v601 = vadd.f32 0.0, %v600
        %v602 = vpop.f32.mrb[0].mxu0
        %v603 = vpop.f32.mrb[0].mxu0
        %v604 = vadd.f32 0.0, %v603
        %v605 = vpop.f32.mrb[0].mxu0
        %606 = vmatprep.mubr.bf16.mxu0 0
        %607 = vmatmul.mubr.bf16.gmra.mrb[0].mxu0 %v498
        %v608 = vpop.f32.mrb[0].mxu0
        %v609 = vadd.f32 0.0, %v608
        %v610 = vpop.f32.mrb[0].mxu0
        %v611 = vpop.f32.mrb[0].mxu0
        %v612 = vadd.f32 0.0, %v611
        %v613 = vpop.f32.mrb[0].mxu0
        %614 = vmatprep.mubr.bf16.mxu0 0
        %615 = vmatmul.mubr.bf16.gmra.mrb[0].mxu0 %v501
        %v616 = vpop.f32.mrb[0].mxu0
        %v617 = vadd.f32 0.0, %v616
        %v618 = vpop.f32.mrb[0].mxu0
        %v619 = vpop.f32.mrb[0].mxu0
        %v620 = vadd.f32 0.0, %v619
        %v621 = vpop.f32.mrb[0].mxu0
        %622 = vmatprep.mubr.bf16.mxu0 0
        %623 = vmatmul.mubr.bf16.gmra.mrb[0].mxu0 %v504
        %v624 = vpop.f32.mrb[0].mxu0
        %v625 = vadd.f32 0.0, %v624
        %v626 = vpop.f32.mrb[0].mxu0
        %v627 = vpop.f32.mrb[0].mxu0
        %v628 = vadd.f32 0.0, %v627
        %v629 = vpop.f32.mrb[0].mxu0
        %630 = vmatprep.mubr.bf16.mxu0 0
        %631 = vmatmul.mubr.bf16.gmra.mrb[0].mxu0 %v507
        %v632 = vpop.f32.mrb[0].mxu0
        %v633 = vadd.f32 0.0, %v632
        %v634 = vpop.f32.mrb[0].mxu0
        %v635 = vpop.f32.mrb[0].mxu0
        %v636 = vadd.f32 0.0, %v635
        %v637 = vpop.f32.mrb[0].mxu0
        %638 = vmatprep.mubr.bf16.mxu0 0
        %639 = vmatmul.mubr.bf16.gmra.mrb[0].mxu0 %v510
        %v640 = vpop.f32.mrb[0].mxu0
        %v641 = vadd.f32 0.0, %v640
        %v642 = vpop.f32.mrb[0].mxu0
        %v643 = vpop.f32.mrb[0].mxu0
        %v644 = vadd.f32 0.0, %v643
        %v645 = vpop.f32.mrb[0].mxu0
        %646 = vmatprep.mubr.bf16.mxu0 0
        %647 = vmatmul.mubr.bf16.gmra.mrb[0].mxu0 %v513
        %v648 = vpop.f32.mrb[0].mxu0
        %v649 = vadd.f32 0.0, %v648
        %v650 = vpop.f32.mrb[0].mxu0
        %v651 = vpop.f32.mrb[0].mxu0
        %v652 = vadd.f32 0.0, %v651
        %v653 = vpop.f32.mrb[0].mxu0
        %654 = vmatprep.mubr.bf16.mxu0 0
        %655 = vmatmul.mubr.bf16.gmra.mrb[0].mxu0 %v516
        %v656 = vpop.f32.mrb[0].mxu0
        %v657 = vadd.f32 0.0, %v656
        %v658 = vpop.f32.mrb[0].mxu0
        %v659 = vpop.f32.mrb[0].mxu0
        %v660 = vadd.f32 0.0, %v659
        %v661 = vpop.f32.mrb[0].mxu0
        %662 = vmatprep.mubr.bf16.mxu0 0
        %663 = vmatmul.mubr.bf16.gmra.mrb[0].mxu0 %v519
        %v664 = vpop.f32.mrb[0].mxu0
        %v665 = vadd.f32 0.0, %v664
        %v666 = vpop.f32.mrb[0].mxu0
        %v667 = vpop.f32.mrb[0].mxu0
        %v668 = vadd.f32 0.0, %v667
        %v669 = vpop.f32.mrb[0].mxu0
        %670 = vmatprep.mubr.bf16.mxu0 0
        %671 = vmatmul.mubr.bf16.gmra.mrb[0].mxu0 %v522
        %v672 = vpop.f32.mrb[0].mxu0
        %v673 = vadd.f32 0.0, %v672
        %v674 = vpop.f32.mrb[0].mxu0
        %v675 = vpop.f32.mrb[0].mxu0
        %v676 = vadd.f32 0.0, %v675
        %v677 = vpop.f32.mrb[0].mxu0
        %678 = vmatprep.mubr.bf16.mxu0 0
        %679 = vmatmul.mubr.bf16.gmra.mrb[0].mxu0 %v525
        %v680 = vpop.f32.mrb[0].mxu0
        %v681 = vadd.f32 0.0, %v680
        %v682 = vpop.f32.mrb[0].mxu0
        %v683 = vpop.f32.mrb[0].mxu0
        %v684 = vadd.f32 0.0, %v683
        %v685 = vpop.f32.mrb[0].mxu0
        %686 = vmatprep.mubr.bf16.mxu0 0
        %687 = vmatmul.mubr.bf16.gmra.mrb[0].mxu0 %v528
        %v688 = vpop.f32.mrb[0].mxu0
        %v689 = vadd.f32 0.0, %v688
        %v690 = vpop.f32.mrb[0].mxu0
        %v691 = vpop.f32.mrb[0].mxu0
        %v692 = vadd.f32 0.0, %v691
        %v693 = vpop.f32.mrb[0].mxu0
        %694 = vdwg.mxu0
        %v696 = vsel %vm218, %v418, 0
        %v699 = vsel %vm218, %v419, 0
        %v702 = vsel %vm218, %v420, 0
        %v705 = vsel %vm218, %v421, 0
        %v708 = vsel %vm218, %v422, 0
        %v711 = vsel %vm218, %v423, 0
        %v714 = vsel %vm218, %v424, 0
        %v717 = vsel %vm218, %v425, 0
        %v720 = vsel %vm218, %v426, 0
        %v723 = vsel %vm218, %v427, 0
        %v726 = vsel %vm218, %v428, 0
        %v729 = vsel %vm218, %v429, 0
        %v732 = vsel %vm218, %v430, 0
        %v735 = vsel %vm218, %v431, 0
        %v738 = vsel %vm218, %v432, 0
        %v741 = vsel %vm218, %v433, 0
        %v744 = vsel %vm530, %v377, 0
        %746 = vmatprep.subr.bf16.mxu0 0
        %747 = vmatpush1.bf16.msra.mxu0 %v744
        %748 = vmatprep.subr.bf16.mxu0 0
        %749 = vmatpush1.bf16.msra.mxu0 0
        %750 = vmatprep.subr.bf16.mxu0 0
        %751 = vmatpush1.bf16.msra.mxu0 0
        %752 = vmatprep.subr.bf16.mxu0 0
        %753 = vmatpush1.bf16.msra.mxu0 0
        %754 = vmatprep.subr.bf16.mxu0 0
        %755 = vmatpush1.bf16.msra.mxu0 0
        %756 = vmatprep.subr.bf16.mxu0 0
        %757 = vmatpush1.bf16.msra.mxu0 0
        %758 = vmatprep.subr.bf16.mxu0 0
        %759 = vmatpush1.bf16.msra.mxu0 0
        %760 = vmatprep.subr.bf16.mxu0 0
        %761 = vmatpush1.bf16.msra.mxu0 0
        %762 = vmatprep.subr.bf16.mxu0 0
        %763 = vmatpush1.bf16.msra.mxu0 0
        %764 = vmatprep.subr.bf16.mxu0 0
        %765 = vmatpush1.bf16.msra.mxu0 0
        %766 = vmatprep.subr.bf16.mxu0 0
        %767 = vmatpush1.bf16.msra.mxu0 0
        %768 = vmatprep.subr.bf16.mxu0 0
        %769 = vmatpush1.bf16.msra.mxu0 0
        %770 = vmatprep.subr.bf16.mxu0 0
        %771 = vmatpush1.bf16.msra.mxu0 0
        %772 = vmatprep.subr.bf16.mxu0 0
        %773 = vmatpush1.bf16.msra.mxu0 0
        %774 = vmatprep.subr.bf16.mxu0 0
        %775 = vmatpush1.bf16.msra.mxu0 0
        %776 = vmatprep.subr.bf16.mxu0 0
        %777 = vmatpush1.bf16.msra.mxu0 0
        %778 = vmatprep.mubr.bf16.mxu0 0
        %779 = vmatmul.mubr.bf16.gmra.mrb[0].mxu0 %v696
        %v780 = vpop.f32.mrb[0].mxu0
        %v781 = vadd.f32 %v569, %v780
        %v782 = vpop.f32.mrb[0].mxu0
        %v783 = vpop.f32.mrb[0].mxu0
        %v784 = vadd.f32 %v572, %v783
        %v785 = vpop.f32.mrb[0].mxu0
        %786 = vmatprep.mubr.bf16.mxu0 0
        %787 = vmatmul.mubr.bf16.gmra.mrb[0].mxu0 %v699
        %v788 = vpop.f32.mrb[0].mxu0
        %v789 = vadd.f32 %v577, %v788
        %v790 = vpop.f32.mrb[0].mxu0
        %v791 = vpop.f32.mrb[0].mxu0
        %v792 = vadd.f32 %v580, %v791
        %v793 = vpop.f32.mrb[0].mxu0
        %794 = vmatprep.mubr.bf16.mxu0 0
        %795 = vmatmul.mubr.bf16.gmra.mrb[0].mxu0 %v702
        %v796 = vpop.f32.mrb[0].mxu0
        %v797 = vadd.f32 %v585, %v796
        %v798 = vpop.f32.mrb[0].mxu0
        %v799 = vpop.f32.mrb[0].mxu0
        %v800 = vadd.f32 %v588, %v799
        %v801 = vpop.f32.mrb[0].mxu0
        %802 = vmatprep.mubr.bf16.mxu0 0
        %803 = vmatmul.mubr.bf16.gmra.mrb[0].mxu0 %v705
        %v804 = vpop.f32.mrb[0].mxu0
        %v805 = vadd.f32 %v593, %v804
        %v806 = vpop.f32.mrb[0].mxu0
        %v807 = vpop.f32.mrb[0].mxu0
        %v808 = vadd.f32 %v596, %v807
        %v809 = vpop.f32.mrb[0].mxu0
        %810 = vmatprep.mubr.bf16.mxu0 0
        %811 = vmatmul.mubr.bf16.gmra.mrb[0].mxu0 %v708
        %v812 = vpop.f32.mrb[0].mxu0
        %v813 = vadd.f32 %v601, %v812
        %v814 = vpop.f32.mrb[0].mxu0
        %v815 = vpop.f32.mrb[0].mxu0
        %v816 = vadd.f32 %v604, %v815
        %v817 = vpop.f32.mrb[0].mxu0
        %818 = vmatprep.mubr.bf16.mxu0 0
        %819 = vmatmul.mubr.bf16.gmra.mrb[0].mxu0 %v711
        %v820 = vpop.f32.mrb[0].mxu0
        %v821 = vadd.f32 %v609, %v820
        %v822 = vpop.f32.mrb[0].mxu0
        %v823 = vpop.f32.mrb[0].mxu0
        %v824 = vadd.f32 %v612, %v823
        %v825 = vpop.f32.mrb[0].mxu0
        %826 = vmatprep.mubr.bf16.mxu0 0
        %827 = vmatmul.mubr.bf16.gmra.mrb[0].mxu0 %v714
        %v828 = vpop.f32.mrb[0].mxu0
        %v829 = vadd.f32 %v617, %v828
        %v830 = vpop.f32.mrb[0].mxu0
        %v831 = vpop.f32.mrb[0].mxu0
        %v832 = vadd.f32 %v620, %v831
        %v833 = vpop.f32.mrb[0].mxu0
        %834 = vmatprep.mubr.bf16.mxu0 0
        %835 = vmatmul.mubr.bf16.gmra.mrb[0].mxu0 %v717
        %v836 = vpop.f32.mrb[0].mxu0
        %v837 = vadd.f32 %v625, %v836
        %v838 = vpop.f32.mrb[0].mxu0
        %v839 = vpop.f32.mrb[0].mxu0
        %v840 = vadd.f32 %v628, %v839
        %v841 = vpop.f32.mrb[0].mxu0
        %842 = vmatprep.mubr.bf16.mxu0 0
        %843 = vmatmul.mubr.bf16.gmra.mrb[0].mxu0 %v720
        %v844 = vpop.f32.mrb[0].mxu0
        %v845 = vadd.f32 %v633, %v844
        %v846 = vpop.f32.mrb[0].mxu0
        %v847 = vpop.f32.mrb[0].mxu0
        %v848 = vadd.f32 %v636, %v847
        %v849 = vpop.f32.mrb[0].mxu0
        %850 = vmatprep.mubr.bf16.mxu0 0
        %851 = vmatmul.mubr.bf16.gmra.mrb[0].mxu0 %v723
        %v852 = vpop.f32.mrb[0].mxu0
        %v853 = vadd.f32 %v641, %v852
        %v854 = vpop.f32.mrb[0].mxu0
        %v855 = vpop.f32.mrb[0].mxu0
        %v856 = vadd.f32 %v644, %v855
        %v857 = vpop.f32.mrb[0].mxu0
        %858 = vmatprep.mubr.bf16.mxu0 0
        %859 = vmatmul.mubr.bf16.gmra.mrb[0].mxu0 %v726
        %v860 = vpop.f32.mrb[0].mxu0
        %v861 = vadd.f32 %v649, %v860
        %v862 = vpop.f32.mrb[0].mxu0
        %v863 = vpop.f32.mrb[0].mxu0
        %v864 = vadd.f32 %v652, %v863
        %v865 = vpop.f32.mrb[0].mxu0
        %866 = vmatprep.mubr.bf16.mxu0 0
        %867 = vmatmul.mubr.bf16.gmra.mrb[0].mxu0 %v729
        %v868 = vpop.f32.mrb[0].mxu0
        %v869 = vadd.f32 %v657, %v868
        %v870 = vpop.f32.mrb[0].mxu0
        %v871 = vpop.f32.mrb[0].mxu0
        %v872 = vadd.f32 %v660, %v871
        %v873 = vpop.f32.mrb[0].mxu0
        %874 = vmatprep.mubr.bf16.mxu0 0
        %875 = vmatmul.mubr.bf16.gmra.mrb[0].mxu0 %v732
        %v876 = vpop.f32.mrb[0].mxu0
        %v877 = vadd.f32 %v665, %v876
        %v878 = vpop.f32.mrb[0].mxu0
        %v879 = vpop.f32.mrb[0].mxu0
        %v880 = vadd.f32 %v668, %v879
        %v881 = vpop.f32.mrb[0].mxu0
        %882 = vmatprep.mubr.bf16.mxu0 0
        %883 = vmatmul.mubr.bf16.gmra.mrb[0].mxu0 %v735
        %v884 = vpop.f32.mrb[0].mxu0
        %v885 = vadd.f32 %v673, %v884
        %v886 = vpop.f32.mrb[0].mxu0
        %v887 = vpop.f32.mrb[0].mxu0
        %v888 = vadd.f32 %v676, %v887
        %v889 = vpop.f32.mrb[0].mxu0
        %890 = vmatprep.mubr.bf16.mxu0 0
        %891 = vmatmul.mubr.bf16.gmra.mrb[0].mxu0 %v738
        %v892 = vpop.f32.mrb[0].mxu0
        %v893 = vadd.f32 %v681, %v892
        %v894 = vpop.f32.mrb[0].mxu0
        %v895 = vpop.f32.mrb[0].mxu0
        %v896 = vadd.f32 %v684, %v895
        %v897 = vpop.f32.mrb[0].mxu0
        %898 = vmatprep.mubr.bf16.mxu0 0
        %899 = vmatmul.mubr.bf16.gmra.mrb[0].mxu0 %v741
        %v900 = vpop.f32.mrb[0].mxu0
        %v901 = vadd.f32 %v689, %v900
        %v902 = vpop.f32.mrb[0].mxu0
        %v903 = vpop.f32.mrb[0].mxu0
        %v904 = vadd.f32 %v692, %v903
        %v905 = vpop.f32.mrb[0].mxu0
        %906 = vdwg.mxu0
        %v907 = vld [vmem:[#allocation2 + $0x4] sm:$0xff]
        %v908 = vld [vmem:[#allocation2 + $0xc] sm:$0xff]
        %v909 = vld [vmem:[#allocation2 + $0x1c] sm:$0xff]
        %v910 = vld [vmem:[#allocation2 + $0x24] sm:$0xff]
        %v911 = vld [vmem:[#allocation2 + $0x34] sm:$0xff]
        %v912 = vld [vmem:[#allocation2 + $0x3c] sm:$0xff]
        %v913 = vld [vmem:[#allocation2 + $0x4c] sm:$0xff]
        %v914 = vld [vmem:[#allocation2 + $0x54] sm:$0xff]
        %v915 = vld [vmem:[#allocation2 + $0x64] sm:$0xff]
        %v916 = vld [vmem:[#allocation2 + $0x6c] sm:$0xff]
        %v917 = vld [vmem:[#allocation2 + $0x7c] sm:$0xff]
        %v918 = vld [vmem:[#allocation2 + $0x84] sm:$0xff]
        %v919 = vld [vmem:[#allocation2 + $0x94] sm:$0xff]
        %v920 = vld [vmem:[#allocation2 + $0x9c] sm:$0xff]
        %v921 = vld [vmem:[#allocation2 + $0xac] sm:$0xff]
        %v922 = vld [vmem:[#allocation2 + $0xb4] sm:$0xff]
        %v923 = vld [vmem:[#allocation2 + $0xc4] sm:$0xff]
        %v924 = vld [vmem:[#allocation2 + $0xcc] sm:$0xff]
        %v925 = vld [vmem:[#allocation2 + $0xdc] sm:$0xff]
        %v926 = vld [vmem:[#allocation2 + $0xe4] sm:$0xff]
        %v927 = vld [vmem:[#allocation2 + $0xf4] sm:$0xff]
        %v928 = vld [vmem:[#allocation2 + $0xfc] sm:$0xff]
        %v929 = vld [vmem:[#allocation2 + $0x10c] sm:$0xff]
        %v930 = vld [vmem:[#allocation2 + $0x114] sm:$0xff]
        %v931 = vld [vmem:[#allocation2 + $0x124] sm:$0xff]
        %v932 = vld [vmem:[#allocation2 + $0x12c] sm:$0xff]
        %v933 = vld [vmem:[#allocation2 + $0x13c] sm:$0xff]
        %v934 = vld [vmem:[#allocation2 + $0x144] sm:$0xff]
        %v935 = vld [vmem:[#allocation2 + $0x154] sm:$0xff]
        %v936 = vld [vmem:[#allocation2 + $0x15c] sm:$0xff]
        %v937 = vld [vmem:[#allocation2 + $0x16c] sm:$0xff]
        %v938 = vld [vmem:[#allocation2 + $0x174] sm:$0xff]
        %v939 = vpack.c.bf16 %v908, %v907
        %v940 = vpack.c.bf16 %v910, %v909
        %v941 = vpack.c.bf16 %v912, %v911
        %v942 = vpack.c.bf16 %v914, %v913
        %v943 = vpack.c.bf16 %v916, %v915
        %v944 = vpack.c.bf16 %v918, %v917
        %v945 = vpack.c.bf16 %v920, %v919
        %v946 = vpack.c.bf16 %v922, %v921
        %v947 = vpack.c.bf16 %v924, %v923
        %v948 = vpack.c.bf16 %v926, %v925
        %v949 = vpack.c.bf16 %v928, %v927
        %v950 = vpack.c.bf16 %v930, %v929
        %v951 = vpack.c.bf16 %v932, %v931
        %v952 = vpack.c.bf16 %v934, %v933
        %v953 = vpack.c.bf16 %v936, %v935
        %v954 = vpack.c.bf16 %v938, %v937
        %v956 = vsel %vm218, %v939, 0
        %v959 = vsel %vm218, %v940, 0
        %v962 = vsel %vm218, %v941, 0
        %v965 = vsel %vm218, %v942, 0
        %v968 = vsel %vm218, %v943, 0
        %v971 = vsel %vm218, %v944, 0
        %v974 = vsel %vm218, %v945, 0
        %v977 = vsel %vm218, %v946, 0
        %v980 = vsel %vm218, %v947, 0
        %v983 = vsel %vm218, %v948, 0
        %v986 = vsel %vm218, %v949, 0
        %v989 = vsel %vm218, %v950, 0
        %v992 = vsel %vm218, %v951, 0
        %v995 = vsel %vm218, %v952, 0
        %v998 = vsel %vm218, %v953, 0
        %v1001 = vsel %vm218, %v954, 0
        %v1004 = vsel %vm530, %v379, 0
        %1006 = vmatprep.subr.bf16.mxu0 0
        %1007 = vmatpush1.bf16.msra.mxu0 %v1004
        %1008 = vmatprep.subr.bf16.mxu0 0
        %1009 = vmatpush1.bf16.msra.mxu0 0
        %1010 = vmatprep.subr.bf16.mxu0 0
        %1011 = vmatpush1.bf16.msra.mxu0 0
        %1012 = vmatprep.subr.bf16.mxu0 0
        %1013 = vmatpush1.bf16.msra.mxu0 0
        %1014 = vmatprep.subr.bf16.mxu0 0
        %1015 = vmatpush1.bf16.msra.mxu0 0
        %1016 = vmatprep.subr.bf16.mxu0 0
        %1017 = vmatpush1.bf16.msra.mxu0 0
        %1018 = vmatprep.subr.bf16.mxu0 0
        %1019 = vmatpush1.bf16.msra.mxu0 0
        %1020 = vmatprep.subr.bf16.mxu0 0
        %1021 = vmatpush1.bf16.msra.mxu0 0
        %1022 = vmatprep.subr.bf16.mxu0 0
        %1023 = vmatpush1.bf16.msra.mxu0 0
        %1024 = vmatprep.subr.bf16.mxu0 0
        %1025 = vmatpush1.bf16.msra.mxu0 0
        %1026 = vmatprep.subr.bf16.mxu0 0
        %1027 = vmatpush1.bf16.msra.mxu0 0
        %1028 = vmatprep.subr.bf16.mxu0 0
        %1029 = vmatpush1.bf16.msra.mxu0 0
        %1030 = vmatprep.subr.bf16.mxu0 0
        %1031 = vmatpush1.bf16.msra.mxu0 0
        %1032 = vmatprep.subr.bf16.mxu0 0
        %1033 = vmatpush1.bf16.msra.mxu0 0
        %1034 = vmatprep.subr.bf16.mxu0 0
        %1035 = vmatpush1.bf16.msra.mxu0 0
        %1036 = vmatprep.subr.bf16.mxu0 0
        %1037 = vmatpush1.bf16.msra.mxu0 0
        %1038 = vmatprep.mubr.bf16.mxu0 0
        %1039 = vmatmul.mubr.bf16.gmra.mrb[0].mxu0 %v956
        %v1040 = vpop.f32.mrb[0].mxu0
        %v1041 = vadd.f32 0.0, %v1040
        %v1042 = vpop.f32.mrb[0].mxu0
        %v1043 = vpop.f32.mrb[0].mxu0
        %v1044 = vadd.f32 0.0, %v1043
        %v1045 = vpop.f32.mrb[0].mxu0
        %1046 = vmatprep.mubr.bf16.mxu0 0
        %1047 = vmatmul.mubr.bf16.gmra.mrb[0].mxu0 %v959
        %v1048 = vpop.f32.mrb[0].mxu0
        %v1049 = vadd.f32 0.0, %v1048
        %v1050 = vpop.f32.mrb[0].mxu0
        %v1051 = vpop.f32.mrb[0].mxu0
        %v1052 = vadd.f32 0.0, %v1051
        %v1053 = vpop.f32.mrb[0].mxu0
        %1054 = vmatprep.mubr.bf16.mxu0 0
        %1055 = vmatmul.mubr.bf16.gmra.mrb[0].mxu0 %v962
        %v1056 = vpop.f32.mrb[0].mxu0
        %v1057 = vadd.f32 0.0, %v1056
        %v1058 = vpop.f32.mrb[0].mxu0
        %v1059 = vpop.f32.mrb[0].mxu0
        %v1060 = vadd.f32 0.0, %v1059
        %v1061 = vpop.f32.mrb[0].mxu0
        %1062 = vmatprep.mubr.bf16.mxu0 0
        %1063 = vmatmul.mubr.bf16.gmra.mrb[0].mxu0 %v965
        %v1064 = vpop.f32.mrb[0].mxu0
        %v1065 = vadd.f32 0.0, %v1064
        %v1066 = vpop.f32.mrb[0].mxu0
        %v1067 = vpop.f32.mrb[0].mxu0
        %v1068 = vadd.f32 0.0, %v1067
        %v1069 = vpop.f32.mrb[0].mxu0
        %1070 = vmatprep.mubr.bf16.mxu0 0
        %1071 = vmatmul.mubr.bf16.gmra.mrb[0].mxu0 %v968
        %v1072 = vpop.f32.mrb[0].mxu0
        %v1073 = vadd.f32 0.0, %v1072
        %v1074 = vpop.f32.mrb[0].mxu0
        %v1075 = vpop.f32.mrb[0].mxu0
        %v1076 = vadd.f32 0.0, %v1075
        %v1077 = vpop.f32.mrb[0].mxu0
        %1078 = vmatprep.mubr.bf16.mxu0 0
        %1079 = vmatmul.mubr.bf16.gmra.mrb[0].mxu0 %v971
        %v1080 = vpop.f32.mrb[0].mxu0
        %v1081 = vadd.f32 0.0, %v1080
        %v1082 = vpop.f32.mrb[0].mxu0
        %v1083 = vpop.f32.mrb[0].mxu0
        %v1084 = vadd.f32 0.0, %v1083
        %v1085 = vpop.f32.mrb[0].mxu0
        %1086 = vmatprep.mubr.bf16.mxu0 0
        %1087 = vmatmul.mubr.bf16.gmra.mrb[0].mxu0 %v974
        %v1088 = vpop.f32.mrb[0].mxu0
        %v1089 = vadd.f32 0.0, %v1088
        %v1090 = vpop.f32.mrb[0].mxu0
        %v1091 = vpop.f32.mrb[0].mxu0
        %v1092 = vadd.f32 0.0, %v1091
        %v1093 = vpop.f32.mrb[0].mxu0
        %1094 = vmatprep.mubr.bf16.mxu0 0
        %1095 = vmatmul.mubr.bf16.gmra.mrb[0].mxu0 %v977
        %v1096 = vpop.f32.mrb[0].mxu0
        %v1097 = vadd.f32 0.0, %v1096
        %v1098 = vpop.f32.mrb[0].mxu0
        %v1099 = vpop.f32.mrb[0].mxu0
        %v1100 = vadd.f32 0.0, %v1099
        %v1101 = vpop.f32.mrb[0].mxu0
        %1102 = vmatprep.mubr.bf16.mxu0 0
        %1103 = vmatmul.mubr.bf16.gmra.mrb[0].mxu0 %v980
        %v1104 = vpop.f32.mrb[0].mxu0
        %v1105 = vadd.f32 0.0, %v1104
        %v1106 = vpop.f32.mrb[0].mxu0
        %v1107 = vpop.f32.mrb[0].mxu0
        %v1108 = vadd.f32 0.0, %v1107
        %v1109 = vpop.f32.mrb[0].mxu0
        %1110 = vmatprep.mubr.bf16.mxu0 0
        %1111 = vmatmul.mubr.bf16.gmra.mrb[0].mxu0 %v983
        %v1112 = vpop.f32.mrb[0].mxu0
        %v1113 = vadd.f32 0.0, %v1112
        %v1114 = vpop.f32.mrb[0].mxu0
        %v1115 = vpop.f32.mrb[0].mxu0
        %v1116 = vadd.f32 0.0, %v1115
        %v1117 = vpop.f32.mrb[0].mxu0
        %1118 = vmatprep.mubr.bf16.mxu0 0
        %1119 = vmatmul.mubr.bf16.gmra.mrb[0].mxu0 %v986
        %v1120 = vpop.f32.mrb[0].mxu0
        %v1121 = vadd.f32 0.0, %v1120
        %v1122 = vpop.f32.mrb[0].mxu0
        %v1123 = vpop.f32.mrb[0].mxu0
        %v1124 = vadd.f32 0.0, %v1123
        %v1125 = vpop.f32.mrb[0].mxu0
        %1126 = vmatprep.mubr.bf16.mxu0 0
        %1127 = vmatmul.mubr.bf16.gmra.mrb[0].mxu0 %v989
        %v1128 = vpop.f32.mrb[0].mxu0
        %v1129 = vadd.f32 0.0, %v1128
        %v1130 = vpop.f32.mrb[0].mxu0
        %v1131 = vpop.f32.mrb[0].mxu0
        %v1132 = vadd.f32 0.0, %v1131
        %v1133 = vpop.f32.mrb[0].mxu0
        %1134 = vmatprep.mubr.bf16.mxu0 0
        %1135 = vmatmul.mubr.bf16.gmra.mrb[0].mxu0 %v992
        %v1136 = vpop.f32.mrb[0].mxu0
        %v1137 = vadd.f32 0.0, %v1136
        %v1138 = vpop.f32.mrb[0].mxu0
        %v1139 = vpop.f32.mrb[0].mxu0
        %v1140 = vadd.f32 0.0, %v1139
        %v1141 = vpop.f32.mrb[0].mxu0
        %1142 = vmatprep.mubr.bf16.mxu0 0
        %1143 = vmatmul.mubr.bf16.gmra.mrb[0].mxu0 %v995
        %v1144 = vpop.f32.mrb[0].mxu0
        %v1145 = vadd.f32 0.0, %v1144
        %v1146 = vpop.f32.mrb[0].mxu0
        %v1147 = vpop.f32.mrb[0].mxu0
        %v1148 = vadd.f32 0.0, %v1147
        %v1149 = vpop.f32.mrb[0].mxu0
        %1150 = vmatprep.mubr.bf16.mxu0 0
        %1151 = vmatmul.mubr.bf16.gmra.mrb[0].mxu0 %v998
        %v1152 = vpop.f32.mrb[0].mxu0
        %v1153 = vadd.f32 0.0, %v1152
        %v1154 = vpop.f32.mrb[0].mxu0
        %v1155 = vpop.f32.mrb[0].mxu0
        %v1156 = vadd.f32 0.0, %v1155
        %v1157 = vpop.f32.mrb[0].mxu0
        %1158 = vmatprep.mubr.bf16.mxu0 0
        %1159 = vmatmul.mubr.bf16.gmra.mrb[0].mxu0 %v1001
        %v1160 = vpop.f32.mrb[0].mxu0
        %v1161 = vadd.f32 0.0, %v1160
        %v1162 = vpop.f32.mrb[0].mxu0
        %v1163 = vpop.f32.mrb[0].mxu0
        %v1164 = vadd.f32 0.0, %v1163
        %v1165 = vpop.f32.mrb[0].mxu0
        %1166 = vdwg.mxu0
        %v1167 = vadd.f32 %v781, %v1041
        %v1168 = vadd.f32 %v784, %v1044
        %v1169 = vadd.f32 %v789, %v1049
        %v1170 = vadd.f32 %v792, %v1052
        %v1171 = vadd.f32 %v797, %v1057
        %v1172 = vadd.f32 %v800, %v1060
        %v1173 = vadd.f32 %v805, %v1065
        %v1174 = vadd.f32 %v808, %v1068
        %v1175 = vadd.f32 %v813, %v1073
        %v1176 = vadd.f32 %v816, %v1076
        %v1177 = vadd.f32 %v821, %v1081
        %v1178 = vadd.f32 %v824, %v1084
        %v1179 = vadd.f32 %v829, %v1089
        %v1180 = vadd.f32 %v832, %v1092
        %v1181 = vadd.f32 %v837, %v1097
        %v1182 = vadd.f32 %v840, %v1100
        %v1183 = vadd.f32 %v845, %v1105
        %v1184 = vadd.f32 %v848, %v1108
        %v1185 = vadd.f32 %v853, %v1113
        %v1186 = vadd.f32 %v856, %v1116
        %v1187 = vadd.f32 %v861, %v1121
        %v1188 = vadd.f32 %v864, %v1124
        %v1189 = vadd.f32 %v869, %v1129
        %v1190 = vadd.f32 %v872, %v1132
        %v1191 = vadd.f32 %v877, %v1137
        %v1192 = vadd.f32 %v880, %v1140
        %v1193 = vadd.f32 %v885, %v1145
        %v1194 = vadd.f32 %v888, %v1148
        %v1195 = vadd.f32 %v893, %v1153
        %v1196 = vadd.f32 %v896, %v1156
        %v1197 = vadd.f32 %v901, %v1161
        %v1198 = vadd.f32 %v904, %v1164
        %v1199 = vld [vmem:[%s344] sm:$0xff]
        %v1200 = vld [vmem:[%s344 + $0x8] sm:$0xff]
        %v1201 = vld [vmem:[%s344 + $0x18] sm:$0xff]
        %v1202 = vld [vmem:[%s344 + $0x20] sm:$0xff]
        %v1203 = vld [vmem:[%s344 + $0x30] sm:$0xff]
        %v1204 = vld [vmem:[%s344 + $0x38] sm:$0xff]
        %v1205 = vld [vmem:[%s344 + $0x48] sm:$0xff]
        %v1206 = vld [vmem:[%s344 + $0x50] sm:$0xff]
        %v1207 = vld [vmem:[%s344 + $0x60] sm:$0xff]
        %v1208 = vld [vmem:[%s344 + $0x68] sm:$0xff]
        %v1209 = vld [vmem:[%s344 + $0x78] sm:$0xff]
        %v1210 = vld [vmem:[%s344 + $0x80] sm:$0xff]
        %v1211 = vld [vmem:[%s344 + $0x90] sm:$0xff]
        %v1212 = vld [vmem:[%s344 + $0x98] sm:$0xff]
        %v1213 = vld [vmem:[%s344 + $0xa8] sm:$0xff]
        %v1214 = vld [vmem:[%s344 + $0xb0] sm:$0xff]
        %v1215 = vld [vmem:[%s344 + $0xc0] sm:$0xff]
        %v1216 = vld [vmem:[%s344 + $0xc8] sm:$0xff]
        %v1217 = vld [vmem:[%s344 + $0xd8] sm:$0xff]
        %v1218 = vld [vmem:[%s344 + $0xe0] sm:$0xff]
        %v1219 = vld [vmem:[%s344 + $0xf0] sm:$0xff]
        %v1220 = vld [vmem:[%s344 + $0xf8] sm:$0xff]
        %v1221 = vld [vmem:[%s344 + $0x108] sm:$0xff]
        %v1222 = vld [vmem:[%s344 + $0x110] sm:$0xff]
        %v1223 = vld [vmem:[%s344 + $0x120] sm:$0xff]
        %v1224 = vld [vmem:[%s344 + $0x128] sm:$0xff]
        %v1225 = vld [vmem:[%s344 + $0x138] sm:$0xff]
        %v1226 = vld [vmem:[%s344 + $0x140] sm:$0xff]
        %v1227 = vld [vmem:[%s344 + $0x150] sm:$0xff]
        %v1228 = vld [vmem:[%s344 + $0x158] sm:$0xff]
        %v1229 = vld [vmem:[%s344 + $0x168] sm:$0xff]
        %v1230 = vld [vmem:[%s344 + $0x170] sm:$0xff]
        %v1231 = vpack.c.bf16 %v1200, %v1199
        %v1232 = vpack.c.bf16 %v1202, %v1201
        %v1233 = vpack.c.bf16 %v1204, %v1203
        %v1234 = vpack.c.bf16 %v1206, %v1205
        %v1235 = vpack.c.bf16 %v1208, %v1207
        %v1236 = vpack.c.bf16 %v1210, %v1209
        %v1237 = vpack.c.bf16 %v1212, %v1211
        %v1238 = vpack.c.bf16 %v1214, %v1213
        %v1239 = vpack.c.bf16 %v1216, %v1215
        %v1240 = vpack.c.bf16 %v1218, %v1217
        %v1241 = vpack.c.bf16 %v1220, %v1219
        %v1242 = vpack.c.bf16 %v1222, %v1221
        %v1243 = vpack.c.bf16 %v1224, %v1223
        %v1244 = vpack.c.bf16 %v1226, %v1225
        %v1245 = vpack.c.bf16 %v1228, %v1227
        %v1246 = vpack.c.bf16 %v1230, %v1229
        %v1248 = vsel %vm218, %v1231, 0
        %v1251 = vsel %vm218, %v1232, 0
        %v1254 = vsel %vm218, %v1233, 0
        %v1257 = vsel %vm218, %v1234, 0
        %v1260 = vsel %vm218, %v1235, 0
        %v1263 = vsel %vm218, %v1236, 0
        %v1266 = vsel %vm218, %v1237, 0
        %v1269 = vsel %vm218, %v1238, 0
        %v1272 = vsel %vm218, %v1239, 0
        %v1275 = vsel %vm218, %v1240, 0
        %v1278 = vsel %vm218, %v1241, 0
        %v1281 = vsel %vm218, %v1242, 0
        %v1284 = vsel %vm218, %v1243, 0
        %v1287 = vsel %vm218, %v1244, 0
        %v1290 = vsel %vm218, %v1245, 0
        %v1293 = vsel %vm218, %v1246, 0
        %v1296 = vsel %vm530, %v380, 0
        %1298 = vmatprep.subr.bf16.mxu0 0
        %1299 = vmatpush1.bf16.msra.mxu0 %v1296
        %1300 = vmatprep.subr.bf16.mxu0 0
        %1301 = vmatpush1.bf16.msra.mxu0 0
        %1302 = vmatprep.subr.bf16.mxu0 0
        %1303 = vmatpush1.bf16.msra.mxu0 0
        %1304 = vmatprep.subr.bf16.mxu0 0
        %1305 = vmatpush1.bf16.msra.mxu0 0
        %1306 = vmatprep.subr.bf16.mxu0 0
        %1307 = vmatpush1.bf16.msra.mxu0 0
        %1308 = vmatprep.subr.bf16.mxu0 0
        %1309 = vmatpush1.bf16.msra.mxu0 0
        %1310 = vmatprep.subr.bf16.mxu0 0
        %1311 = vmatpush1.bf16.msra.mxu0 0
        %1312 = vmatprep.subr.bf16.mxu0 0
        %1313 = vmatpush1.bf16.msra.mxu0 0
        %1314 = vmatprep.subr.bf16.mxu0 0
        %1315 = vmatpush1.bf16.msra.mxu0 0
        %1316 = vmatprep.subr.bf16.mxu0 0
        %1317 = vmatpush1.bf16.msra.mxu0 0
        %1318 = vmatprep.subr.bf16.mxu0 0
        %1319 = vmatpush1.bf16.msra.mxu0 0
        %1320 = vmatprep.subr.bf16.mxu0 0
        %1321 = vmatpush1.bf16.msra.mxu0 0
        %1322 = vmatprep.subr.bf16.mxu0 0
        %1323 = vmatpush1.bf16.msra.mxu0 0
        %1324 = vmatprep.subr.bf16.mxu0 0
        %1325 = vmatpush1.bf16.msra.mxu0 0
        %1326 = vmatprep.subr.bf16.mxu0 0
        %1327 = vmatpush1.bf16.msra.mxu0 0
        %1328 = vmatprep.subr.bf16.mxu0 0
        %1329 = vmatpush1.bf16.msra.mxu0 0
        %1330 = vmatprep.mubr.bf16.mxu0 0
        %1331 = vmatmul.mubr.bf16.gmra.mrb[0].mxu0 %v1248
        %v1332 = vpop.f32.mrb[0].mxu0
        %v1333 = vadd.f32 0.0, %v1332
        %v1334 = vpop.f32.mrb[0].mxu0
        %v1335 = vpop.f32.mrb[0].mxu0
        %v1336 = vadd.f32 0.0, %v1335
        %v1337 = vpop.f32.mrb[0].mxu0
        %1338 = vmatprep.mubr.bf16.mxu0 0
        %1339 = vmatmul.mubr.bf16.gmra.mrb[0].mxu0 %v1251
        %v1340 = vpop.f32.mrb[0].mxu0
        %v1341 = vadd.f32 0.0, %v1340
        %v1342 = vpop.f32.mrb[0].mxu0
        %v1343 = vpop.f32.mrb[0].mxu0
        %v1344 = vadd.f32 0.0, %v1343
        %v1345 = vpop.f32.mrb[0].mxu0
        %1346 = vmatprep.mubr.bf16.mxu0 0
        %1347 = vmatmul.mubr.bf16.gmra.mrb[0].mxu0 %v1254
        %v1348 = vpop.f32.mrb[0].mxu0
        %v1349 = vadd.f32 0.0, %v1348
        %v1350 = vpop.f32.mrb[0].mxu0
        %v1351 = vpop.f32.mrb[0].mxu0
        %v1352 = vadd.f32 0.0, %v1351
        %v1353 = vpop.f32.mrb[0].mxu0
        %1354 = vmatprep.mubr.bf16.mxu0 0
        %1355 = vmatmul.mubr.bf16.gmra.mrb[0].mxu0 %v1257
        %v1356 = vpop.f32.mrb[0].mxu0
        %v1357 = vadd.f32 0.0, %v1356
        %v1358 = vpop.f32.mrb[0].mxu0
        %v1359 = vpop.f32.mrb[0].mxu0
        %v1360 = vadd.f32 0.0, %v1359
        %v1361 = vpop.f32.mrb[0].mxu0
        %1362 = vmatprep.mubr.bf16.mxu0 0
        %1363 = vmatmul.mubr.bf16.gmra.mrb[0].mxu0 %v1260
        %v1364 = vpop.f32.mrb[0].mxu0
        %v1365 = vadd.f32 0.0, %v1364
        %v1366 = vpop.f32.mrb[0].mxu0
        %v1367 = vpop.f32.mrb[0].mxu0
        %v1368 = vadd.f32 0.0, %v1367
        %v1369 = vpop.f32.mrb[0].mxu0
        %1370 = vmatprep.mubr.bf16.mxu0 0
        %1371 = vmatmul.mubr.bf16.gmra.mrb[0].mxu0 %v1263
        %v1372 = vpop.f32.mrb[0].mxu0
        %v1373 = vadd.f32 0.0, %v1372
        %v1374 = vpop.f32.mrb[0].mxu0
        %v1375 = vpop.f32.mrb[0].mxu0
        %v1376 = vadd.f32 0.0, %v1375
        %v1377 = vpop.f32.mrb[0].mxu0
        %1378 = vmatprep.mubr.bf16.mxu0 0
        %1379 = vmatmul.mubr.bf16.gmra.mrb[0].mxu0 %v1266
        %v1380 = vpop.f32.mrb[0].mxu0
        %v1381 = vadd.f32 0.0, %v1380
        %v1382 = vpop.f32.mrb[0].mxu0
        %v1383 = vpop.f32.mrb[0].mxu0
        %v1384 = vadd.f32 0.0, %v1383
        %v1385 = vpop.f32.mrb[0].mxu0
        %1386 = vmatprep.mubr.bf16.mxu0 0
        %1387 = vmatmul.mubr.bf16.gmra.mrb[0].mxu0 %v1269
        %v1388 = vpop.f32.mrb[0].mxu0
        %v1389 = vadd.f32 0.0, %v1388
        %v1390 = vpop.f32.mrb[0].mxu0
        %v1391 = vpop.f32.mrb[0].mxu0
        %v1392 = vadd.f32 0.0, %v1391
        %v1393 = vpop.f32.mrb[0].mxu0
        %1394 = vmatprep.mubr.bf16.mxu0 0
        %1395 = vmatmul.mubr.bf16.gmra.mrb[0].mxu0 %v1272
        %v1396 = vpop.f32.mrb[0].mxu0
        %v1397 = vadd.f32 0.0, %v1396
        %v1398 = vpop.f32.mrb[0].mxu0
        %v1399 = vpop.f32.mrb[0].mxu0
        %v1400 = vadd.f32 0.0, %v1399
        %v1401 = vpop.f32.mrb[0].mxu0
        %1402 = vmatprep.mubr.bf16.mxu0 0
        %1403 = vmatmul.mubr.bf16.gmra.mrb[0].mxu0 %v1275
        %v1404 = vpop.f32.mrb[0].mxu0
        %v1405 = vadd.f32 0.0, %v1404
        %v1406 = vpop.f32.mrb[0].mxu0
        %v1407 = vpop.f32.mrb[0].mxu0
        %v1408 = vadd.f32 0.0, %v1407
        %v1409 = vpop.f32.mrb[0].mxu0
        %1410 = vmatprep.mubr.bf16.mxu0 0
        %1411 = vmatmul.mubr.bf16.gmra.mrb[0].mxu0 %v1278
        %v1412 = vpop.f32.mrb[0].mxu0
        %v1413 = vadd.f32 0.0, %v1412
        %v1414 = vpop.f32.mrb[0].mxu0
        %v1415 = vpop.f32.mrb[0].mxu0
        %v1416 = vadd.f32 0.0, %v1415
        %v1417 = vpop.f32.mrb[0].mxu0
        %1418 = vmatprep.mubr.bf16.mxu0 0
        %1419 = vmatmul.mubr.bf16.gmra.mrb[0].mxu0 %v1281
        %v1420 = vpop.f32.mrb[0].mxu0
        %v1421 = vadd.f32 0.0, %v1420
        %v1422 = vpop.f32.mrb[0].mxu0
        %v1423 = vpop.f32.mrb[0].mxu0
        %v1424 = vadd.f32 0.0, %v1423
        %v1425 = vpop.f32.mrb[0].mxu0
        %1426 = vmatprep.mubr.bf16.mxu0 0
        %1427 = vmatmul.mubr.bf16.gmra.mrb[0].mxu0 %v1284
        %v1428 = vpop.f32.mrb[0].mxu0
        %v1429 = vadd.f32 0.0, %v1428
        %v1430 = vpop.f32.mrb[0].mxu0
        %v1431 = vpop.f32.mrb[0].mxu0
        %v1432 = vadd.f32 0.0, %v1431
        %v1433 = vpop.f32.mrb[0].mxu0
        %1434 = vmatprep.mubr.bf16.mxu0 0
        %1435 = vmatmul.mubr.bf16.gmra.mrb[0].mxu0 %v1287
        %v1436 = vpop.f32.mrb[0].mxu0
        %v1437 = vadd.f32 0.0, %v1436
        %v1438 = vpop.f32.mrb[0].mxu0
        %v1439 = vpop.f32.mrb[0].mxu0
        %v1440 = vadd.f32 0.0, %v1439
        %v1441 = vpop.f32.mrb[0].mxu0
        %1442 = vmatprep.mubr.bf16.mxu0 0
        %1443 = vmatmul.mubr.bf16.gmra.mrb[0].mxu0 %v1290
        %v1444 = vpop.f32.mrb[0].mxu0
        %v1445 = vadd.f32 0.0, %v1444
        %v1446 = vpop.f32.mrb[0].mxu0
        %v1447 = vpop.f32.mrb[0].mxu0
        %v1448 = vadd.f32 0.0, %v1447
        %v1449 = vpop.f32.mrb[0].mxu0
        %1450 = vmatprep.mubr.bf16.mxu0 0
        %1451 = vmatmul.mubr.bf16.gmra.mrb[0].mxu0 %v1293
        %v1452 = vpop.f32.mrb[0].mxu0
        %v1453 = vadd.f32 0.0, %v1452
        %v1454 = vpop.f32.mrb[0].mxu0
        %v1455 = vpop.f32.mrb[0].mxu0
        %v1456 = vadd.f32 0.0, %v1455
        %v1457 = vpop.f32.mrb[0].mxu0
        %1458 = vdwg.mxu0
        %v1459 = vadd.f32 %v1167, %v1333
        %v1460 = vadd.f32 %v1168, %v1336
        %v1461 = vadd.f32 %v1169, %v1341
        %v1462 = vadd.f32 %v1170, %v1344
        %v1463 = vadd.f32 %v1171, %v1349
        %v1464 = vadd.f32 %v1172, %v1352
        %v1465 = vadd.f32 %v1173, %v1357
        %v1466 = vadd.f32 %v1174, %v1360
        %v1467 = vadd.f32 %v1175, %v1365
        %v1468 = vadd.f32 %v1176, %v1368
        %v1469 = vadd.f32 %v1177, %v1373
        %v1470 = vadd.f32 %v1178, %v1376
        %v1471 = vadd.f32 %v1179, %v1381
        %v1472 = vadd.f32 %v1180, %v1384
        %v1473 = vadd.f32 %v1181, %v1389
        %v1474 = vadd.f32 %v1182, %v1392
        %v1475 = vadd.f32 %v1183, %v1397
        %v1476 = vadd.f32 %v1184, %v1400
        %v1477 = vadd.f32 %v1185, %v1405
        %v1478 = vadd.f32 %v1186, %v1408
        %v1479 = vadd.f32 %v1187, %v1413
        %v1480 = vadd.f32 %v1188, %v1416
        %v1481 = vadd.f32 %v1189, %v1421
        %v1482 = vadd.f32 %v1190, %v1424
        %v1483 = vadd.f32 %v1191, %v1429
        %v1484 = vadd.f32 %v1192, %v1432
        %v1485 = vadd.f32 %v1193, %v1437
        %v1486 = vadd.f32 %v1194, %v1440
        %v1487 = vadd.f32 %v1195, %v1445
        %v1488 = vadd.f32 %v1196, %v1448
        %v1489 = vadd.f32 %v1197, %v1453
        %v1490 = vadd.f32 %v1198, %v1456
        %v1491 = vld [vmem:[%s344 + $0x2] sm:$0xff]
        %v1492 = vld [vmem:[%s344 + $0xa] sm:$0xff]
        %v1493 = vld [vmem:[%s344 + $0x1a] sm:$0xff]
        %v1494 = vld [vmem:[%s344 + $0x22] sm:$0xff]
        %v1495 = vld [vmem:[%s344 + $0x32] sm:$0xff]
        %v1496 = vld [vmem:[%s344 + $0x3a] sm:$0xff]
        %v1497 = vld [vmem:[%s344 + $0x4a] sm:$0xff]
        %v1498 = vld [vmem:[%s344 + $0x52] sm:$0xff]
        %v1499 = vld [vmem:[%s344 + $0x62] sm:$0xff]
        %v1500 = vld [vmem:[%s344 + $0x6a] sm:$0xff]
        %v1501 = vld [vmem:[%s344 + $0x7a] sm:$0xff]
        %v1502 = vld [vmem:[%s344 + $0x82] sm:$0xff]
        %v1503 = vld [vmem:[%s344 + $0x92] sm:$0xff]
        %v1504 = vld [vmem:[%s344 + $0x9a] sm:$0xff]
        %v1505 = vld [vmem:[%s344 + $0xaa] sm:$0xff]
        %v1506 = vld [vmem:[%s344 + $0xb2] sm:$0xff]
        %v1507 = vld [vmem:[%s344 + $0xc2] sm:$0xff]
        %v1508 = vld [vmem:[%s344 + $0xca] sm:$0xff]
        %v1509 = vld [vmem:[%s344 + $0xda] sm:$0xff]
        %v1510 = vld [vmem:[%s344 + $0xe2] sm:$0xff]
        %v1511 = vld [vmem:[%s344 + $0xf2] sm:$0xff]
        %v1512 = vld [vmem:[%s344 + $0xfa] sm:$0xff]
        %v1513 = vld [vmem:[%s344 + $0x10a] sm:$0xff]
        %v1514 = vld [vmem:[%s344 + $0x112] sm:$0xff]
        %v1515 = vld [vmem:[%s344 + $0x122] sm:$0xff]
        %v1516 = vld [vmem:[%s344 + $0x12a] sm:$0xff]
        %v1517 = vld [vmem:[%s344 + $0x13a] sm:$0xff]
        %v1518 = vld [vmem:[%s344 + $0x142] sm:$0xff]
        %v1519 = vld [vmem:[%s344 + $0x152] sm:$0xff]
        %v1520 = vld [vmem:[%s344 + $0x15a] sm:$0xff]
        %v1521 = vld [vmem:[%s344 + $0x16a] sm:$0xff]
        %v1522 = vld [vmem:[%s344 + $0x172] sm:$0xff]
        %v1523 = vpack.c.bf16 %v1492, %v1491
        %v1524 = vpack.c.bf16 %v1494, %v1493
        %v1525 = vpack.c.bf16 %v1496, %v1495
        %v1526 = vpack.c.bf16 %v1498, %v1497
        %v1527 = vpack.c.bf16 %v1500, %v1499
        %v1528 = vpack.c.bf16 %v1502, %v1501
        %v1529 = vpack.c.bf16 %v1504, %v1503
        %v1530 = vpack.c.bf16 %v1506, %v1505
        %v1531 = vpack.c.bf16 %v1508, %v1507
        %v1532 = vpack.c.bf16 %v1510, %v1509
        %v1533 = vpack.c.bf16 %v1512, %v1511
        %v1534 = vpack.c.bf16 %v1514, %v1513
        %v1535 = vpack.c.bf16 %v1516, %v1515
        %v1536 = vpack.c.bf16 %v1518, %v1517
        %v1537 = vpack.c.bf16 %v1520, %v1519
        %v1538 = vpack.c.bf16 %v1522, %v1521
        %v1540 = vsel %vm218, %v1523, 0
        %v1543 = vsel %vm218, %v1524, 0
        %v1546 = vsel %vm218, %v1525, 0
        %v1549 = vsel %vm218, %v1526, 0
        %v1552 = vsel %vm218, %v1527, 0
        %v1555 = vsel %vm218, %v1528, 0
        %v1558 = vsel %vm218, %v1529, 0
        %v1561 = vsel %vm218, %v1530, 0
        %v1564 = vsel %vm218, %v1531, 0
        %v1567 = vsel %vm218, %v1532, 0
        %v1570 = vsel %vm218, %v1533, 0
        %v1573 = vsel %vm218, %v1534, 0
        %v1576 = vsel %vm218, %v1535, 0
        %v1579 = vsel %vm218, %v1536, 0
        %v1582 = vsel %vm218, %v1537, 0
        %v1585 = vsel %vm218, %v1538, 0
        %v1588 = vsel %vm530, %v381, 0
        %1590 = vmatprep.subr.bf16.mxu0 0
        %1591 = vmatpush1.bf16.msra.mxu0 %v1588
        %1592 = vmatprep.subr.bf16.mxu0 0
        %1593 = vmatpush1.bf16.msra.mxu0 0
        %1594 = vmatprep.subr.bf16.mxu0 0
        %1595 = vmatpush1.bf16.msra.mxu0 0
        %1596 = vmatprep.subr.bf16.mxu0 0
        %1597 = vmatpush1.bf16.msra.mxu0 0
        %1598 = vmatprep.subr.bf16.mxu0 0
        %1599 = vmatpush1.bf16.msra.mxu0 0
        %1600 = vmatprep.subr.bf16.mxu0 0
        %1601 = vmatpush1.bf16.msra.mxu0 0
        %1602 = vmatprep.subr.bf16.mxu0 0
        %1603 = vmatpush1.bf16.msra.mxu0 0
        %1604 = vmatprep.subr.bf16.mxu0 0
        %1605 = vmatpush1.bf16.msra.mxu0 0
        %1606 = vmatprep.subr.bf16.mxu0 0
        %1607 = vmatpush1.bf16.msra.mxu0 0
        %1608 = vmatprep.subr.bf16.mxu0 0
        %1609 = vmatpush1.bf16.msra.mxu0 0
        %1610 = vmatprep.subr.bf16.mxu0 0
        %1611 = vmatpush1.bf16.msra.mxu0 0
        %1612 = vmatprep.subr.bf16.mxu0 0
        %1613 = vmatpush1.bf16.msra.mxu0 0
        %1614 = vmatprep.subr.bf16.mxu0 0
        %1615 = vmatpush1.bf16.msra.mxu0 0
        %1616 = vmatprep.subr.bf16.mxu0 0
        %1617 = vmatpush1.bf16.msra.mxu0 0
        %1618 = vmatprep.subr.bf16.mxu0 0
        %1619 = vmatpush1.bf16.msra.mxu0 0
        %1620 = vmatprep.subr.bf16.mxu0 0
        %1621 = vmatpush1.bf16.msra.mxu0 0
        %1622 = vmatprep.mubr.bf16.mxu0 0
        %1623 = vmatmul.mubr.bf16.gmra.mrb[0].mxu0 %v1540
        %v1624 = vpop.f32.mrb[0].mxu0
        %v1625 = vadd.f32 0.0, %v1624
        %v1626 = vpop.f32.mrb[0].mxu0
        %v1627 = vpop.f32.mrb[0].mxu0
        %v1628 = vadd.f32 0.0, %v1627
        %v1629 = vpop.f32.mrb[0].mxu0
        %1630 = vmatprep.mubr.bf16.mxu0 0
        %1631 = vmatmul.mubr.bf16.gmra.mrb[0].mxu0 %v1543
        %v1632 = vpop.f32.mrb[0].mxu0
        %v1633 = vadd.f32 0.0, %v1632
        %v1634 = vpop.f32.mrb[0].mxu0
        %v1635 = vpop.f32.mrb[0].mxu0
        %v1636 = vadd.f32 0.0, %v1635
        %v1637 = vpop.f32.mrb[0].mxu0
        %1638 = vmatprep.mubr.bf16.mxu0 0
        %1639 = vmatmul.mubr.bf16.gmra.mrb[0].mxu0 %v1546
        %v1640 = vpop.f32.mrb[0].mxu0
        %v1641 = vadd.f32 0.0, %v1640
        %v1642 = vpop.f32.mrb[0].mxu0
        %v1643 = vpop.f32.mrb[0].mxu0
        %v1644 = vadd.f32 0.0, %v1643
        %v1645 = vpop.f32.mrb[0].mxu0
        %1646 = vmatprep.mubr.bf16.mxu0 0
        %1647 = vmatmul.mubr.bf16.gmra.mrb[0].mxu0 %v1549
        %v1648 = vpop.f32.mrb[0].mxu0
        %v1649 = vadd.f32 0.0, %v1648
        %v1650 = vpop.f32.mrb[0].mxu0
        %v1651 = vpop.f32.mrb[0].mxu0
        %v1652 = vadd.f32 0.0, %v1651
        %v1653 = vpop.f32.mrb[0].mxu0
        %1654 = vmatprep.mubr.bf16.mxu0 0
        %1655 = vmatmul.mubr.bf16.gmra.mrb[0].mxu0 %v1552
        %v1656 = vpop.f32.mrb[0].mxu0
        %v1657 = vadd.f32 0.0, %v1656
        %v1658 = vpop.f32.mrb[0].mxu0
        %v1659 = vpop.f32.mrb[0].mxu0
        %v1660 = vadd.f32 0.0, %v1659
        %v1661 = vpop.f32.mrb[0].mxu0
        %1662 = vmatprep.mubr.bf16.mxu0 0
        %1663 = vmatmul.mubr.bf16.gmra.mrb[0].mxu0 %v1555
        %v1664 = vpop.f32.mrb[0].mxu0
        %v1665 = vadd.f32 0.0, %v1664
        %v1666 = vpop.f32.mrb[0].mxu0
        %v1667 = vpop.f32.mrb[0].mxu0
        %v1668 = vadd.f32 0.0, %v1667
        %v1669 = vpop.f32.mrb[0].mxu0
        %1670 = vmatprep.mubr.bf16.mxu0 0
        %1671 = vmatmul.mubr.bf16.gmra.mrb[0].mxu0 %v1558
        %v1672 = vpop.f32.mrb[0].mxu0
        %v1673 = vadd.f32 0.0, %v1672
        %v1674 = vpop.f32.mrb[0].mxu0
        %v1675 = vpop.f32.mrb[0].mxu0
        %v1676 = vadd.f32 0.0, %v1675
        %v1677 = vpop.f32.mrb[0].mxu0
        %1678 = vmatprep.mubr.bf16.mxu0 0
        %1679 = vmatmul.mubr.bf16.gmra.mrb[0].mxu0 %v1561
        %v1680 = vpop.f32.mrb[0].mxu0
        %v1681 = vadd.f32 0.0, %v1680
        %v1682 = vpop.f32.mrb[0].mxu0
        %v1683 = vpop.f32.mrb[0].mxu0
        %v1684 = vadd.f32 0.0, %v1683
        %v1685 = vpop.f32.mrb[0].mxu0
        %1686 = vmatprep.mubr.bf16.mxu0 0
        %1687 = vmatmul.mubr.bf16.gmra.mrb[0].mxu0 %v1564
        %v1688 = vpop.f32.mrb[0].mxu0
        %v1689 = vadd.f32 0.0, %v1688
        %v1690 = vpop.f32.mrb[0].mxu0
        %v1691 = vpop.f32.mrb[0].mxu0
        %v1692 = vadd.f32 0.0, %v1691
        %v1693 = vpop.f32.mrb[0].mxu0
        %1694 = vmatprep.mubr.bf16.mxu0 0
        %1695 = vmatmul.mubr.bf16.gmra.mrb[0].mxu0 %v1567
        %v1696 = vpop.f32.mrb[0].mxu0
        %v1697 = vadd.f32 0.0, %v1696
        %v1698 = vpop.f32.mrb[0].mxu0
        %v1699 = vpop.f32.mrb[0].mxu0
        %v1700 = vadd.f32 0.0, %v1699
        %v1701 = vpop.f32.mrb[0].mxu0
        %1702 = vmatprep.mubr.bf16.mxu0 0
        %1703 = vmatmul.mubr.bf16.gmra.mrb[0].mxu0 %v1570
        %v1704 = vpop.f32.mrb[0].mxu0
        %v1705 = vadd.f32 0.0, %v1704
        %v1706 = vpop.f32.mrb[0].mxu0
        %v1707 = vpop.f32.mrb[0].mxu0
        %v1708 = vadd.f32 0.0, %v1707
        %v1709 = vpop.f32.mrb[0].mxu0
        %1710 = vmatprep.mubr.bf16.mxu0 0
        %1711 = vmatmul.mubr.bf16.gmra.mrb[0].mxu0 %v1573
        %v1712 = vpop.f32.mrb[0].mxu0
        %v1713 = vadd.f32 0.0, %v1712
        %v1714 = vpop.f32.mrb[0].mxu0
        %v1715 = vpop.f32.mrb[0].mxu0
        %v1716 = vadd.f32 0.0, %v1715
        %v1717 = vpop.f32.mrb[0].mxu0
        %1718 = vmatprep.mubr.bf16.mxu0 0
        %1719 = vmatmul.mubr.bf16.gmra.mrb[0].mxu0 %v1576
        %v1720 = vpop.f32.mrb[0].mxu0
        %v1721 = vadd.f32 0.0, %v1720
        %v1722 = vpop.f32.mrb[0].mxu0
        %v1723 = vpop.f32.mrb[0].mxu0
        %v1724 = vadd.f32 0.0, %v1723
        %v1725 = vpop.f32.mrb[0].mxu0
        %1726 = vmatprep.mubr.bf16.mxu0 0
        %1727 = vmatmul.mubr.bf16.gmra.mrb[0].mxu0 %v1579
        %v1728 = vpop.f32.mrb[0].mxu0
        %v1729 = vadd.f32 0.0, %v1728
        %v1730 = vpop.f32.mrb[0].mxu0
        %v1731 = vpop.f32.mrb[0].mxu0
        %v1732 = vadd.f32 0.0, %v1731
        %v1733 = vpop.f32.mrb[0].mxu0
        %1734 = vmatprep.mubr.bf16.mxu0 0
        %1735 = vmatmul.mubr.bf16.gmra.mrb[0].mxu0 %v1582
        %v1736 = vpop.f32.mrb[0].mxu0
        %v1737 = vadd.f32 0.0, %v1736
        %v1738 = vpop.f32.mrb[0].mxu0
        %v1739 = vpop.f32.mrb[0].mxu0
        %v1740 = vadd.f32 0.0, %v1739
        %v1741 = vpop.f32.mrb[0].mxu0
        %1742 = vmatprep.mubr.bf16.mxu0 0
        %1743 = vmatmul.mubr.bf16.gmra.mrb[0].mxu0 %v1585
        %v1744 = vpop.f32.mrb[0].mxu0
        %v1745 = vadd.f32 0.0, %v1744
        %v1746 = vpop.f32.mrb[0].mxu0
        %v1747 = vpop.f32.mrb[0].mxu0
        %v1748 = vadd.f32 0.0, %v1747
        %v1749 = vpop.f32.mrb[0].mxu0
        %1750 = vdwg.mxu0
        %v1751 = vadd.f32 %v1459, %v1625
        %v1752 = vadd.f32 %v1460, %v1628
        %v1753 = vadd.f32 %v1461, %v1633
        %v1754 = vadd.f32 %v1462, %v1636
        %v1755 = vadd.f32 %v1463, %v1641
        %v1756 = vadd.f32 %v1464, %v1644
        %v1757 = vadd.f32 %v1465, %v1649
        %v1758 = vadd.f32 %v1466, %v1652
        %v1759 = vadd.f32 %v1467, %v1657
        %v1760 = vadd.f32 %v1468, %v1660
        %v1761 = vadd.f32 %v1469, %v1665
        %v1762 = vadd.f32 %v1470, %v1668
        %v1763 = vadd.f32 %v1471, %v1673
        %v1764 = vadd.f32 %v1472, %v1676
        %v1765 = vadd.f32 %v1473, %v1681
        %v1766 = vadd.f32 %v1474, %v1684
        %v1767 = vadd.f32 %v1475, %v1689
        %v1768 = vadd.f32 %v1476, %v1692
        %v1769 = vadd.f32 %v1477, %v1697
        %v1770 = vadd.f32 %v1478, %v1700
        %v1771 = vadd.f32 %v1479, %v1705
        %v1772 = vadd.f32 %v1480, %v1708
        %v1773 = vadd.f32 %v1481, %v1713
        %v1774 = vadd.f32 %v1482, %v1716
        %v1775 = vadd.f32 %v1483, %v1721
        %v1776 = vadd.f32 %v1484, %v1724
        %v1777 = vadd.f32 %v1485, %v1729
        %v1778 = vadd.f32 %v1486, %v1732
        %v1779 = vadd.f32 %v1487, %v1737
        %v1780 = vadd.f32 %v1488, %v1740
        %v1781 = vadd.f32 %v1489, %v1745
        %v1782 = vadd.f32 %v1490, %v1748
        %v1783 = vld [vmem:[%s344 + $0x4] sm:$0xff]
        %v1784 = vld [vmem:[%s344 + $0xc] sm:$0xff]
        %v1785 = vld [vmem:[%s344 + $0x1c] sm:$0xff]
        %v1786 = vld [vmem:[%s344 + $0x24] sm:$0xff]
        %v1787 = vld [vmem:[%s344 + $0x34] sm:$0xff]
        %v1788 = vld [vmem:[%s344 + $0x3c] sm:$0xff]
        %v1789 = vld [vmem:[%s344 + $0x4c] sm:$0xff]
        %v1790 = vld [vmem:[%s344 + $0x54] sm:$0xff]
        %v1791 = vld [vmem:[%s344 + $0x64] sm:$0xff]
        %v1792 = vld [vmem:[%s344 + $0x6c] sm:$0xff]
        %v1793 = vld [vmem:[%s344 + $0x7c] sm:$0xff]
        %v1794 = vld [vmem:[%s344 + $0x84] sm:$0xff]
        %v1795 = vld [vmem:[%s344 + $0x94] sm:$0xff]
        %v1796 = vld [vmem:[%s344 + $0x9c] sm:$0xff]
        %v1797 = vld [vmem:[%s344 + $0xac] sm:$0xff]
        %v1798 = vld [vmem:[%s344 + $0xb4] sm:$0xff]
        %v1799 = vld [vmem:[%s344 + $0xc4] sm:$0xff]
        %v1800 = vld [vmem:[%s344 + $0xcc] sm:$0xff]
        %v1801 = vld [vmem:[%s344 + $0xdc] sm:$0xff]
        %v1802 = vld [vmem:[%s344 + $0xe4] sm:$0xff]
        %v1803 = vld [vmem:[%s344 + $0xf4] sm:$0xff]
        %v1804 = vld [vmem:[%s344 + $0xfc] sm:$0xff]
        %v1805 = vld [vmem:[%s344 + $0x10c] sm:$0xff]
        %v1806 = vld [vmem:[%s344 + $0x114] sm:$0xff]
        %v1807 = vld [vmem:[%s344 + $0x124] sm:$0xff]
        %v1808 = vld [vmem:[%s344 + $0x12c] sm:$0xff]
        %v1809 = vld [vmem:[%s344 + $0x13c] sm:$0xff]
        %v1810 = vld [vmem:[%s344 + $0x144] sm:$0xff]
        %v1811 = vld [vmem:[%s344 + $0x154] sm:$0xff]
        %v1812 = vld [vmem:[%s344 + $0x15c] sm:$0xff]
        %v1813 = vld [vmem:[%s344 + $0x16c] sm:$0xff]
        %v1814 = vld [vmem:[%s344 + $0x174] sm:$0xff]
        %v1815 = vpack.c.bf16 %v1784, %v1783
        %v1816 = vpack.c.bf16 %v1786, %v1785
        %v1817 = vpack.c.bf16 %v1788, %v1787
        %v1818 = vpack.c.bf16 %v1790, %v1789
        %v1819 = vpack.c.bf16 %v1792, %v1791
        %v1820 = vpack.c.bf16 %v1794, %v1793
        %v1821 = vpack.c.bf16 %v1796, %v1795
        %v1822 = vpack.c.bf16 %v1798, %v1797
        %v1823 = vpack.c.bf16 %v1800, %v1799
        %v1824 = vpack.c.bf16 %v1802, %v1801
        %v1825 = vpack.c.bf16 %v1804, %v1803
        %v1826 = vpack.c.bf16 %v1806, %v1805
        %v1827 = vpack.c.bf16 %v1808, %v1807
        %v1828 = vpack.c.bf16 %v1810, %v1809
        %v1829 = vpack.c.bf16 %v1812, %v1811
        %v1830 = vpack.c.bf16 %v1814, %v1813
        %v1832 = vsel %vm218, %v1815, 0
        %v1835 = vsel %vm218, %v1816, 0
        %v1838 = vsel %vm218, %v1817, 0
        %v1841 = vsel %vm218, %v1818, 0
        %v1844 = vsel %vm218, %v1819, 0
        %v1847 = vsel %vm218, %v1820, 0
        %v1850 = vsel %vm218, %v1821, 0
        %v1853 = vsel %vm218, %v1822, 0
        %v1856 = vsel %vm218, %v1823, 0
        %v1859 = vsel %vm218, %v1824, 0
        %v1862 = vsel %vm218, %v1825, 0
        %v1865 = vsel %vm218, %v1826, 0
        %v1868 = vsel %vm218, %v1827, 0
        %v1871 = vsel %vm218, %v1828, 0
        %v1874 = vsel %vm218, %v1829, 0
        %v1877 = vsel %vm218, %v1830, 0
        %v1880 = vsel %vm530, %v382, 0
        %1882 = vmatprep.subr.bf16.mxu0 0
        %1883 = vmatpush1.bf16.msra.mxu0 %v1880
        %1884 = vmatprep.subr.bf16.mxu0 0
        %1885 = vmatpush1.bf16.msra.mxu0 0
        %1886 = vmatprep.subr.bf16.mxu0 0
        %1887 = vmatpush1.bf16.msra.mxu0 0
        %1888 = vmatprep.subr.bf16.mxu0 0
        %1889 = vmatpush1.bf16.msra.mxu0 0
        %1890 = vmatprep.subr.bf16.mxu0 0
        %1891 = vmatpush1.bf16.msra.mxu0 0
        %1892 = vmatprep.subr.bf16.mxu0 0
        %1893 = vmatpush1.bf16.msra.mxu0 0
        %1894 = vmatprep.subr.bf16.mxu0 0
        %1895 = vmatpush1.bf16.msra.mxu0 0
        %1896 = vmatprep.subr.bf16.mxu0 0
        %1897 = vmatpush1.bf16.msra.mxu0 0
        %1898 = vmatprep.subr.bf16.mxu0 0
        %1899 = vmatpush1.bf16.msra.mxu0 0
        %1900 = vmatprep.subr.bf16.mxu0 0
        %1901 = vmatpush1.bf16.msra.mxu0 0
        %1902 = vmatprep.subr.bf16.mxu0 0
        %1903 = vmatpush1.bf16.msra.mxu0 0
        %1904 = vmatprep.subr.bf16.mxu0 0
        %1905 = vmatpush1.bf16.msra.mxu0 0
        %1906 = vmatprep.subr.bf16.mxu0 0
        %1907 = vmatpush1.bf16.msra.mxu0 0
        %1908 = vmatprep.subr.bf16.mxu0 0
        %1909 = vmatpush1.bf16.msra.mxu0 0
        %1910 = vmatprep.subr.bf16.mxu0 0
        %1911 = vmatpush1.bf16.msra.mxu0 0
        %1912 = vmatprep.subr.bf16.mxu0 0
        %1913 = vmatpush1.bf16.msra.mxu0 0
        %1914 = vmatprep.mubr.bf16.mxu0 0
        %1915 = vmatmul.mubr.bf16.gmra.mrb[0].mxu0 %v1832
        %v1916 = vpop.f32.mrb[0].mxu0
        %v1917 = vadd.f32 0.0, %v1916
        %v1918 = vpop.f32.mrb[0].mxu0
        %v1919 = vpop.f32.mrb[0].mxu0
        %v1920 = vadd.f32 0.0, %v1919
        %v1921 = vpop.f32.mrb[0].mxu0
        %1922 = vmatprep.mubr.bf16.mxu0 0
        %1923 = vmatmul.mubr.bf16.gmra.mrb[0].mxu0 %v1835
        %v1924 = vpop.f32.mrb[0].mxu0
        %v1925 = vadd.f32 0.0, %v1924
        %v1926 = vpop.f32.mrb[0].mxu0
        %v1927 = vpop.f32.mrb[0].mxu0
        %v1928 = vadd.f32 0.0, %v1927
        %v1929 = vpop.f32.mrb[0].mxu0
        %1930 = vmatprep.mubr.bf16.mxu0 0
        %1931 = vmatmul.mubr.bf16.gmra.mrb[0].mxu0 %v1838
        %v1932 = vpop.f32.mrb[0].mxu0
        %v1933 = vadd.f32 0.0, %v1932
        %v1934 = vpop.f32.mrb[0].mxu0
        %v1935 = vpop.f32.mrb[0].mxu0
        %v1936 = vadd.f32 0.0, %v1935
        %v1937 = vpop.f32.mrb[0].mxu0
        %1938 = vmatprep.mubr.bf16.mxu0 0
        %1939 = vmatmul.mubr.bf16.gmra.mrb[0].mxu0 %v1841
        %v1940 = vpop.f32.mrb[0].mxu0
        %v1941 = vadd.f32 0.0, %v1940
        %v1942 = vpop.f32.mrb[0].mxu0
        %v1943 = vpop.f32.mrb[0].mxu0
        %v1944 = vadd.f32 0.0, %v1943
        %v1945 = vpop.f32.mrb[0].mxu0
        %1946 = vmatprep.mubr.bf16.mxu0 0
        %1947 = vmatmul.mubr.bf16.gmra.mrb[0].mxu0 %v1844
        %v1948 = vpop.f32.mrb[0].mxu0
        %v1949 = vadd.f32 0.0, %v1948
        %v1950 = vpop.f32.mrb[0].mxu0
        %v1951 = vpop.f32.mrb[0].mxu0
        %v1952 = vadd.f32 0.0, %v1951
        %v1953 = vpop.f32.mrb[0].mxu0
        %1954 = vmatprep.mubr.bf16.mxu0 0
        %1955 = vmatmul.mubr.bf16.gmra.mrb[0].mxu0 %v1847
        %v1956 = vpop.f32.mrb[0].mxu0
        %v1957 = vadd.f32 0.0, %v1956
        %v1958 = vpop.f32.mrb[0].mxu0
        %v1959 = vpop.f32.mrb[0].mxu0
        %v1960 = vadd.f32 0.0, %v1959
        %v1961 = vpop.f32.mrb[0].mxu0
        %1962 = vmatprep.mubr.bf16.mxu0 0
        %1963 = vmatmul.mubr.bf16.gmra.mrb[0].mxu0 %v1850
        %v1964 = vpop.f32.mrb[0].mxu0
        %v1965 = vadd.f32 0.0, %v1964
        %v1966 = vpop.f32.mrb[0].mxu0
        %v1967 = vpop.f32.mrb[0].mxu0
        %v1968 = vadd.f32 0.0, %v1967
        %v1969 = vpop.f32.mrb[0].mxu0
        %1970 = vmatprep.mubr.bf16.mxu0 0
        %1971 = vmatmul.mubr.bf16.gmra.mrb[0].mxu0 %v1853
        %v1972 = vpop.f32.mrb[0].mxu0
        %v1973 = vadd.f32 0.0, %v1972
        %v1974 = vpop.f32.mrb[0].mxu0
        %v1975 = vpop.f32.mrb[0].mxu0
        %v1976 = vadd.f32 0.0, %v1975
        %v1977 = vpop.f32.mrb[0].mxu0
        %1978 = vmatprep.mubr.bf16.mxu0 0
        %1979 = vmatmul.mubr.bf16.gmra.mrb[0].mxu0 %v1856
        %v1980 = vpop.f32.mrb[0].mxu0
        %v1981 = vadd.f32 0.0, %v1980
        %v1982 = vpop.f32.mrb[0].mxu0
        %v1983 = vpop.f32.mrb[0].mxu0
        %v1984 = vadd.f32 0.0, %v1983
        %v1985 = vpop.f32.mrb[0].mxu0
        %1986 = vmatprep.mubr.bf16.mxu0 0
        %1987 = vmatmul.mubr.bf16.gmra.mrb[0].mxu0 %v1859
        %v1988 = vpop.f32.mrb[0].mxu0
        %v1989 = vadd.f32 0.0, %v1988
        %v1990 = vpop.f32.mrb[0].mxu0
        %v1991 = vpop.f32.mrb[0].mxu0
        %v1992 = vadd.f32 0.0, %v1991
        %v1993 = vpop.f32.mrb[0].mxu0
        %1994 = vmatprep.mubr.bf16.mxu0 0
        %1995 = vmatmul.mubr.bf16.gmra.mrb[0].mxu0 %v1862
        %v1996 = vpop.f32.mrb[0].mxu0
        %v1997 = vadd.f32 0.0, %v1996
        %v1998 = vpop.f32.mrb[0].mxu0
        %v1999 = vpop.f32.mrb[0].mxu0
        %v2000 = vadd.f32 0.0, %v1999
        %v2001 = vpop.f32.mrb[0].mxu0
        %2002 = vmatprep.mubr.bf16.mxu0 0
        %2003 = vmatmul.mubr.bf16.gmra.mrb[0].mxu0 %v1865
        %v2004 = vpop.f32.mrb[0].mxu0
        %v2005 = vadd.f32 0.0, %v2004
        %v2006 = vpop.f32.mrb[0].mxu0
        %v2007 = vpop.f32.mrb[0].mxu0
        %v2008 = vadd.f32 0.0, %v2007
        %v2009 = vpop.f32.mrb[0].mxu0
        %2010 = vmatprep.mubr.bf16.mxu0 0
        %2011 = vmatmul.mubr.bf16.gmra.mrb[0].mxu0 %v1868
        %v2012 = vpop.f32.mrb[0].mxu0
        %v2013 = vadd.f32 0.0, %v2012
        %v2014 = vpop.f32.mrb[0].mxu0
        %v2015 = vpop.f32.mrb[0].mxu0
        %v2016 = vadd.f32 0.0, %v2015
        %v2017 = vpop.f32.mrb[0].mxu0
        %2018 = vmatprep.mubr.bf16.mxu0 0
        %2019 = vmatmul.mubr.bf16.gmra.mrb[0].mxu0 %v1871
        %v2020 = vpop.f32.mrb[0].mxu0
        %v2021 = vadd.f32 0.0, %v2020
        %v2022 = vpop.f32.mrb[0].mxu0
        %v2023 = vpop.f32.mrb[0].mxu0
        %v2024 = vadd.f32 0.0, %v2023
        %v2025 = vpop.f32.mrb[0].mxu0
        %2026 = vmatprep.mubr.bf16.mxu0 0
        %2027 = vmatmul.mubr.bf16.gmra.mrb[0].mxu0 %v1874
        %v2028 = vpop.f32.mrb[0].mxu0
        %v2029 = vadd.f32 0.0, %v2028
        %v2030 = vpop.f32.mrb[0].mxu0
        %v2031 = vpop.f32.mrb[0].mxu0
        %v2032 = vadd.f32 0.0, %v2031
        %v2033 = vpop.f32.mrb[0].mxu0
        %2034 = vmatprep.mubr.bf16.mxu0 0
        %2035 = vmatmul.mubr.bf16.gmra.mrb[0].mxu0 %v1877
        %v2036 = vpop.f32.mrb[0].mxu0
        %v2037 = vadd.f32 0.0, %v2036
        %v2038 = vpop.f32.mrb[0].mxu0
        %v2039 = vpop.f32.mrb[0].mxu0
        %v2040 = vadd.f32 0.0, %v2039
        %v2041 = vpop.f32.mrb[0].mxu0
        %2042 = vdwg.mxu0
        %v2043 = vadd.f32 %v1751, %v1917
        %v2044 = vadd.f32 %v1752, %v1920
        %v2045 = vadd.f32 %v1753, %v1925
        %v2046 = vadd.f32 %v1754, %v1928
        %v2047 = vadd.f32 %v1755, %v1933
        %v2048 = vadd.f32 %v1756, %v1936
        %v2049 = vadd.f32 %v1757, %v1941
        %v2050 = vadd.f32 %v1758, %v1944
        %v2051 = vadd.f32 %v1759, %v1949
        %v2052 = vadd.f32 %v1760, %v1952
        %v2053 = vadd.f32 %v1761, %v1957
        %v2054 = vadd.f32 %v1762, %v1960
        %v2055 = vadd.f32 %v1763, %v1965
        %v2056 = vadd.f32 %v1764, %v1968
        %v2057 = vadd.f32 %v1765, %v1973
        %v2058 = vadd.f32 %v1766, %v1976
        %v2059 = vadd.f32 %v1767, %v1981
        %v2060 = vadd.f32 %v1768, %v1984
        %v2061 = vadd.f32 %v1769, %v1989
        %v2062 = vadd.f32 %v1770, %v1992
        %v2063 = vadd.f32 %v1771, %v1997
        %v2064 = vadd.f32 %v1772, %v2000
        %v2065 = vadd.f32 %v1773, %v2005
        %v2066 = vadd.f32 %v1774, %v2008
        %v2067 = vadd.f32 %v1775, %v2013
        %v2068 = vadd.f32 %v1776, %v2016
        %v2069 = vadd.f32 %v1777, %v2021
        %v2070 = vadd.f32 %v1778, %v2024
        %v2071 = vadd.f32 %v1779, %v2029
        %v2072 = vadd.f32 %v1780, %v2032
        %v2073 = vadd.f32 %v1781, %v2037
        %v2074 = vadd.f32 %v1782, %v2040
        %s2075 = scalar_lea.vmem [#allocation2], 96
        %v2076 = vld [vmem:[%s2075] sm:$0xff]
        %v2077 = vld [vmem:[%s2075 + $0x8] sm:$0xff]
        %v2078 = vld [vmem:[%s2075 + $0x18] sm:$0xff]
        %v2079 = vld [vmem:[%s2075 + $0x20] sm:$0xff]
        %v2080 = vld [vmem:[%s2075 + $0x30] sm:$0xff]
        %v2081 = vld [vmem:[%s2075 + $0x38] sm:$0xff]
        %v2082 = vld [vmem:[%s2075 + $0x48] sm:$0xff]
        %v2083 = vld [vmem:[%s2075 + $0x50] sm:$0xff]
        %v2084 = vld [vmem:[%s2075 + $0x60] sm:$0xff]
        %v2085 = vld [vmem:[%s2075 + $0x68] sm:$0xff]
        %v2086 = vld [vmem:[%s2075 + $0x78] sm:$0xff]
        %v2087 = vld [vmem:[%s2075 + $0x80] sm:$0xff]
        %v2088 = vld [vmem:[%s2075 + $0x90] sm:$0xff]
        %v2089 = vld [vmem:[%s2075 + $0x98] sm:$0xff]
        %v2090 = vld [vmem:[%s2075 + $0xa8] sm:$0xff]
        %v2091 = vld [vmem:[%s2075 + $0xb0] sm:$0xff]
        %v2092 = vld [vmem:[%s2075 + $0xc0] sm:$0xff]
        %v2093 = vld [vmem:[%s2075 + $0xc8] sm:$0xff]
        %v2094 = vld [vmem:[%s2075 + $0xd8] sm:$0xff]
        %v2095 = vld [vmem:[%s2075 + $0xe0] sm:$0xff]
        %v2096 = vld [vmem:[%s2075 + $0xf0] sm:$0xff]
        %v2097 = vld [vmem:[%s2075 + $0xf8] sm:$0xff]
        %v2098 = vld [vmem:[%s2075 + $0x108] sm:$0xff]
        %v2099 = vld [vmem:[%s2075 + $0x110] sm:$0xff]
        %v2100 = vld [vmem:[%s2075 + $0x120] sm:$0xff]
        %v2101 = vld [vmem:[%s2075 + $0x128] sm:$0xff]
        %v2102 = vld [vmem:[%s2075 + $0x138] sm:$0xff]
        %v2103 = vld [vmem:[%s2075 + $0x140] sm:$0xff]
        %v2104 = vld [vmem:[%s2075 + $0x150] sm:$0xff]
        %v2105 = vld [vmem:[%s2075 + $0x158] sm:$0xff]
        %v2106 = vld [vmem:[%s2075 + $0x168] sm:$0xff]
        %v2107 = vld [vmem:[%s2075 + $0x170] sm:$0xff]
        %v2108 = vpack.c.bf16 %v2077, %v2076
        %v2109 = vpack.c.bf16 %v2079, %v2078
        %v2110 = vpack.c.bf16 %v2081, %v2080
        %v2111 = vpack.c.bf16 %v2083, %v2082
        %v2112 = vpack.c.bf16 %v2085, %v2084
        %v2113 = vpack.c.bf16 %v2087, %v2086
        %v2114 = vpack.c.bf16 %v2089, %v2088
        %v2115 = vpack.c.bf16 %v2091, %v2090
        %v2116 = vpack.c.bf16 %v2093, %v2092
        %v2117 = vpack.c.bf16 %v2095, %v2094
        %v2118 = vpack.c.bf16 %v2097, %v2096
        %v2119 = vpack.c.bf16 %v2099, %v2098
        %v2120 = vpack.c.bf16 %v2101, %v2100
        %v2121 = vpack.c.bf16 %v2103, %v2102
        %v2122 = vpack.c.bf16 %v2105, %v2104
        %v2123 = vpack.c.bf16 %v2107, %v2106
        %v2125 = vsel %vm218, %v2108, 0
        %v2128 = vsel %vm218, %v2109, 0
        %v2131 = vsel %vm218, %v2110, 0
        %v2134 = vsel %vm218, %v2111, 0
        %v2137 = vsel %vm218, %v2112, 0
        %v2140 = vsel %vm218, %v2113, 0
        %v2143 = vsel %vm218, %v2114, 0
        %v2146 = vsel %vm218, %v2115, 0
        %v2149 = vsel %vm218, %v2116, 0
        %v2152 = vsel %vm218, %v2117, 0
        %v2155 = vsel %vm218, %v2118, 0
        %v2158 = vsel %vm218, %v2119, 0
        %v2161 = vsel %vm218, %v2120, 0
        %v2164 = vsel %vm218, %v2121, 0
        %v2167 = vsel %vm218, %v2122, 0
        %v2170 = vsel %vm218, %v2123, 0
        %v2173 = vsel %vm530, %v383, 0
        %2175 = vmatprep.subr.bf16.mxu0 0
        %2176 = vmatpush1.bf16.msra.mxu0 %v2173
        %2177 = vmatprep.subr.bf16.mxu0 0
        %2178 = vmatpush1.bf16.msra.mxu0 0
        %2179 = vmatprep.subr.bf16.mxu0 0
        %2180 = vmatpush1.bf16.msra.mxu0 0
        %2181 = vmatprep.subr.bf16.mxu0 0
        %2182 = vmatpush1.bf16.msra.mxu0 0
        %2183 = vmatprep.subr.bf16.mxu0 0
        %2184 = vmatpush1.bf16.msra.mxu0 0
        %2185 = vmatprep.subr.bf16.mxu0 0
        %2186 = vmatpush1.bf16.msra.mxu0 0
        %2187 = vmatprep.subr.bf16.mxu0 0
        %2188 = vmatpush1.bf16.msra.mxu0 0
        %2189 = vmatprep.subr.bf16.mxu0 0
        %2190 = vmatpush1.bf16.msra.mxu0 0
        %2191 = vmatprep.subr.bf16.mxu0 0
        %2192 = vmatpush1.bf16.msra.mxu0 0
        %2193 = vmatprep.subr.bf16.mxu0 0
        %2194 = vmatpush1.bf16.msra.mxu0 0
        %2195 = vmatprep.subr.bf16.mxu0 0
        %2196 = vmatpush1.bf16.msra.mxu0 0
        %2197 = vmatprep.subr.bf16.mxu0 0
        %2198 = vmatpush1.bf16.msra.mxu0 0
        %2199 = vmatprep.subr.bf16.mxu0 0
        %2200 = vmatpush1.bf16.msra.mxu0 0
        %2201 = vmatprep.subr.bf16.mxu0 0
        %2202 = vmatpush1.bf16.msra.mxu0 0
        %2203 = vmatprep.subr.bf16.mxu0 0
        %2204 = vmatpush1.bf16.msra.mxu0 0
        %2205 = vmatprep.subr.bf16.mxu0 0
        %2206 = vmatpush1.bf16.msra.mxu0 0
        %2207 = vmatprep.mubr.bf16.mxu0 0
        %2208 = vmatmul.mubr.bf16.gmra.mrb[0].mxu0 %v2125
        %v2209 = vpop.f32.mrb[0].mxu0
        %v2210 = vadd.f32 0.0, %v2209
        %v2211 = vpop.f32.mrb[0].mxu0
        %v2212 = vpop.f32.mrb[0].mxu0
        %v2213 = vadd.f32 0.0, %v2212
        %v2214 = vpop.f32.mrb[0].mxu0
        %2215 = vmatprep.mubr.bf16.mxu0 0
        %2216 = vmatmul.mubr.bf16.gmra.mrb[0].mxu0 %v2128
        %v2217 = vpop.f32.mrb[0].mxu0
        %v2218 = vadd.f32 0.0, %v2217
        %v2219 = vpop.f32.mrb[0].mxu0
        %v2220 = vpop.f32.mrb[0].mxu0
        %v2221 = vadd.f32 0.0, %v2220
        %v2222 = vpop.f32.mrb[0].mxu0
        %2223 = vmatprep.mubr.bf16.mxu0 0
        %2224 = vmatmul.mubr.bf16.gmra.mrb[0].mxu0 %v2131
        %v2225 = vpop.f32.mrb[0].mxu0
        %v2226 = vadd.f32 0.0, %v2225
        %v2227 = vpop.f32.mrb[0].mxu0
        %v2228 = vpop.f32.mrb[0].mxu0
        %v2229 = vadd.f32 0.0, %v2228
        %v2230 = vpop.f32.mrb[0].mxu0
        %2231 = vmatprep.mubr.bf16.mxu0 0
        %2232 = vmatmul.mubr.bf16.gmra.mrb[0].mxu0 %v2134
        %v2233 = vpop.f32.mrb[0].mxu0
        %v2234 = vadd.f32 0.0, %v2233
        %v2235 = vpop.f32.mrb[0].mxu0
        %v2236 = vpop.f32.mrb[0].mxu0
        %v2237 = vadd.f32 0.0, %v2236
        %v2238 = vpop.f32.mrb[0].mxu0
        %2239 = vmatprep.mubr.bf16.mxu0 0
        %2240 = vmatmul.mubr.bf16.gmra.mrb[0].mxu0 %v2137
        %v2241 = vpop.f32.mrb[0].mxu0
        %v2242 = vadd.f32 0.0, %v2241
        %v2243 = vpop.f32.mrb[0].mxu0
        %v2244 = vpop.f32.mrb[0].mxu0
        %v2245 = vadd.f32 0.0, %v2244
        %v2246 = vpop.f32.mrb[0].mxu0
        %2247 = vmatprep.mubr.bf16.mxu0 0
        %2248 = vmatmul.mubr.bf16.gmra.mrb[0].mxu0 %v2140
        %v2249 = vpop.f32.mrb[0].mxu0
        %v2250 = vadd.f32 0.0, %v2249
        %v2251 = vpop.f32.mrb[0].mxu0
        %v2252 = vpop.f32.mrb[0].mxu0
        %v2253 = vadd.f32 0.0, %v2252
        %v2254 = vpop.f32.mrb[0].mxu0
        %2255 = vmatprep.mubr.bf16.mxu0 0
        %2256 = vmatmul.mubr.bf16.gmra.mrb[0].mxu0 %v2143
        %v2257 = vpop.f32.mrb[0].mxu0
        %v2258 = vadd.f32 0.0, %v2257
        %v2259 = vpop.f32.mrb[0].mxu0
        %v2260 = vpop.f32.mrb[0].mxu0
        %v2261 = vadd.f32 0.0, %v2260
        %v2262 = vpop.f32.mrb[0].mxu0
        %2263 = vmatprep.mubr.bf16.mxu0 0
        %2264 = vmatmul.mubr.bf16.gmra.mrb[0].mxu0 %v2146
        %v2265 = vpop.f32.mrb[0].mxu0
        %v2266 = vadd.f32 0.0, %v2265
        %v2267 = vpop.f32.mrb[0].mxu0
        %v2268 = vpop.f32.mrb[0].mxu0
        %v2269 = vadd.f32 0.0, %v2268
        %v2270 = vpop.f32.mrb[0].mxu0
        %2271 = vmatprep.mubr.bf16.mxu0 0
        %2272 = vmatmul.mubr.bf16.gmra.mrb[0].mxu0 %v2149
        %v2273 = vpop.f32.mrb[0].mxu0
        %v2274 = vadd.f32 0.0, %v2273
        %v2275 = vpop.f32.mrb[0].mxu0
        %v2276 = vpop.f32.mrb[0].mxu0
        %v2277 = vadd.f32 0.0, %v2276
        %v2278 = vpop.f32.mrb[0].mxu0
        %2279 = vmatprep.mubr.bf16.mxu0 0
        %2280 = vmatmul.mubr.bf16.gmra.mrb[0].mxu0 %v2152
        %v2281 = vpop.f32.mrb[0].mxu0
        %v2282 = vadd.f32 0.0, %v2281
        %v2283 = vpop.f32.mrb[0].mxu0
        %v2284 = vpop.f32.mrb[0].mxu0
        %v2285 = vadd.f32 0.0, %v2284
        %v2286 = vpop.f32.mrb[0].mxu0
        %2287 = vmatprep.mubr.bf16.mxu0 0
        %2288 = vmatmul.mubr.bf16.gmra.mrb[0].mxu0 %v2155
        %v2289 = vpop.f32.mrb[0].mxu0
        %v2290 = vadd.f32 0.0, %v2289
        %v2291 = vpop.f32.mrb[0].mxu0
        %v2292 = vpop.f32.mrb[0].mxu0
        %v2293 = vadd.f32 0.0, %v2292
        %v2294 = vpop.f32.mrb[0].mxu0
        %2295 = vmatprep.mubr.bf16.mxu0 0
        %2296 = vmatmul.mubr.bf16.gmra.mrb[0].mxu0 %v2158
        %v2297 = vpop.f32.mrb[0].mxu0
        %v2298 = vadd.f32 0.0, %v2297
        %v2299 = vpop.f32.mrb[0].mxu0
        %v2300 = vpop.f32.mrb[0].mxu0
        %v2301 = vadd.f32 0.0, %v2300
        %v2302 = vpop.f32.mrb[0].mxu0
        %2303 = vmatprep.mubr.bf16.mxu0 0
        %2304 = vmatmul.mubr.bf16.gmra.mrb[0].mxu0 %v2161
        %v2305 = vpop.f32.mrb[0].mxu0
        %v2306 = vadd.f32 0.0, %v2305
        %v2307 = vpop.f32.mrb[0].mxu0
        %v2308 = vpop.f32.mrb[0].mxu0
        %v2309 = vadd.f32 0.0, %v2308
        %v2310 = vpop.f32.mrb[0].mxu0
        %2311 = vmatprep.mubr.bf16.mxu0 0
        %2312 = vmatmul.mubr.bf16.gmra.mrb[0].mxu0 %v2164
        %v2313 = vpop.f32.mrb[0].mxu0
        %v2314 = vadd.f32 0.0, %v2313
        %v2315 = vpop.f32.mrb[0].mxu0
        %v2316 = vpop.f32.mrb[0].mxu0
        %v2317 = vadd.f32 0.0, %v2316
        %v2318 = vpop.f32.mrb[0].mxu0
        %2319 = vmatprep.mubr.bf16.mxu0 0
        %2320 = vmatmul.mubr.bf16.gmra.mrb[0].mxu0 %v2167
        %v2321 = vpop.f32.mrb[0].mxu0
        %v2322 = vadd.f32 0.0, %v2321
        %v2323 = vpop.f32.mrb[0].mxu0
        %v2324 = vpop.f32.mrb[0].mxu0
        %v2325 = vadd.f32 0.0, %v2324
        %v2326 = vpop.f32.mrb[0].mxu0
        %2327 = vmatprep.mubr.bf16.mxu0 0
        %2328 = vmatmul.mubr.bf16.gmra.mrb[0].mxu0 %v2170
        %v2329 = vpop.f32.mrb[0].mxu0
        %v2330 = vadd.f32 0.0, %v2329
        %v2331 = vpop.f32.mrb[0].mxu0
        %v2332 = vpop.f32.mrb[0].mxu0
        %v2333 = vadd.f32 0.0, %v2332
        %v2334 = vpop.f32.mrb[0].mxu0
        %2335 = vdwg.mxu0
        %v2336 = vadd.f32 %v2043, %v2210
        %v2337 = vadd.f32 %v2044, %v2213
        %v2338 = vadd.f32 %v2045, %v2218
        %v2339 = vadd.f32 %v2046, %v2221
        %v2340 = vadd.f32 %v2047, %v2226
        %v2341 = vadd.f32 %v2048, %v2229
        %v2342 = vadd.f32 %v2049, %v2234
        %v2343 = vadd.f32 %v2050, %v2237
        %v2344 = vadd.f32 %v2051, %v2242
        %v2345 = vadd.f32 %v2052, %v2245
        %v2346 = vadd.f32 %v2053, %v2250
        %v2347 = vadd.f32 %v2054, %v2253
        %v2348 = vadd.f32 %v2055, %v2258
        %v2349 = vadd.f32 %v2056, %v2261
        %v2350 = vadd.f32 %v2057, %v2266
        %v2351 = vadd.f32 %v2058, %v2269
        %v2352 = vadd.f32 %v2059, %v2274
        %v2353 = vadd.f32 %v2060, %v2277
        %v2354 = vadd.f32 %v2061, %v2282
        %v2355 = vadd.f32 %v2062, %v2285
        %v2356 = vadd.f32 %v2063, %v2290
        %v2357 = vadd.f32 %v2064, %v2293
        %v2358 = vadd.f32 %v2065, %v2298
        %v2359 = vadd.f32 %v2066, %v2301
        %v2360 = vadd.f32 %v2067, %v2306
        %v2361 = vadd.f32 %v2068, %v2309
        %v2362 = vadd.f32 %v2069, %v2314
        %v2363 = vadd.f32 %v2070, %v2317
        %v2364 = vadd.f32 %v2071, %v2322
        %v2365 = vadd.f32 %v2072, %v2325
        %v2366 = vadd.f32 %v2073, %v2330
        %v2367 = vadd.f32 %v2074, %v2333
        %v2368 = vld [vmem:[%s2075 + $0x2] sm:$0xff]
        %v2369 = vld [vmem:[%s2075 + $0xa] sm:$0xff]
        %v2370 = vld [vmem:[%s2075 + $0x1a] sm:$0xff]
        %v2371 = vld [vmem:[%s2075 + $0x22] sm:$0xff]
        %v2372 = vld [vmem:[%s2075 + $0x32] sm:$0xff]
        %v2373 = vld [vmem:[%s2075 + $0x3a] sm:$0xff]
        %v2374 = vld [vmem:[%s2075 + $0x4a] sm:$0xff]
        %v2375 = vld [vmem:[%s2075 + $0x52] sm:$0xff]
        %v2376 = vld [vmem:[%s2075 + $0x62] sm:$0xff]
        %v2377 = vld [vmem:[%s2075 + $0x6a] sm:$0xff]
        %v2378 = vld [vmem:[%s2075 + $0x7a] sm:$0xff]
        %v2379 = vld [vmem:[%s2075 + $0x82] sm:$0xff]
        %v2380 = vld [vmem:[%s2075 + $0x92] sm:$0xff]
        %v2381 = vld [vmem:[%s2075 + $0x9a] sm:$0xff]
        %v2382 = vld [vmem:[%s2075 + $0xaa] sm:$0xff]
        %v2383 = vld [vmem:[%s2075 + $0xb2] sm:$0xff]
        %v2384 = vld [vmem:[%s2075 + $0xc2] sm:$0xff]
        %v2385 = vld [vmem:[%s2075 + $0xca] sm:$0xff]
        %v2386 = vld [vmem:[%s2075 + $0xda] sm:$0xff]
        %v2387 = vld [vmem:[%s2075 + $0xe2] sm:$0xff]
        %v2388 = vld [vmem:[%s2075 + $0xf2] sm:$0xff]
        %v2389 = vld [vmem:[%s2075 + $0xfa] sm:$0xff]
        %v2390 = vld [vmem:[%s2075 + $0x10a] sm:$0xff]
        %v2391 = vld [vmem:[%s2075 + $0x112] sm:$0xff]
        %v2392 = vld [vmem:[%s2075 + $0x122] sm:$0xff]
        %v2393 = vld [vmem:[%s2075 + $0x12a] sm:$0xff]
        %v2394 = vld [vmem:[%s2075 + $0x13a] sm:$0xff]
        %v2395 = vld [vmem:[%s2075 + $0x142] sm:$0xff]
        %v2396 = vld [vmem:[%s2075 + $0x152] sm:$0xff]
        %v2397 = vld [vmem:[%s2075 + $0x15a] sm:$0xff]
        %v2398 = vld [vmem:[%s2075 + $0x16a] sm:$0xff]
        %v2399 = vld [vmem:[%s2075 + $0x172] sm:$0xff]
        %v2400 = vpack.c.bf16 %v2369, %v2368
        %v2401 = vpack.c.bf16 %v2371, %v2370
        %v2402 = vpack.c.bf16 %v2373, %v2372
        %v2403 = vpack.c.bf16 %v2375, %v2374
        %v2404 = vpack.c.bf16 %v2377, %v2376
        %v2405 = vpack.c.bf16 %v2379, %v2378
        %v2406 = vpack.c.bf16 %v2381, %v2380
        %v2407 = vpack.c.bf16 %v2383, %v2382
        %v2408 = vpack.c.bf16 %v2385, %v2384
        %v2409 = vpack.c.bf16 %v2387, %v2386
        %v2410 = vpack.c.bf16 %v2389, %v2388
        %v2411 = vpack.c.bf16 %v2391, %v2390
        %v2412 = vpack.c.bf16 %v2393, %v2392
        %v2413 = vpack.c.bf16 %v2395, %v2394
        %v2414 = vpack.c.bf16 %v2397, %v2396
        %v2415 = vpack.c.bf16 %v2399, %v2398
        %v2417 = vsel %vm218, %v2400, 0
        %v2420 = vsel %vm218, %v2401, 0
        %v2423 = vsel %vm218, %v2402, 0
        %v2426 = vsel %vm218, %v2403, 0
        %v2429 = vsel %vm218, %v2404, 0
        %v2432 = vsel %vm218, %v2405, 0
        %v2435 = vsel %vm218, %v2406, 0
        %v2438 = vsel %vm218, %v2407, 0
        %v2441 = vsel %vm218, %v2408, 0
        %v2444 = vsel %vm218, %v2409, 0
        %v2447 = vsel %vm218, %v2410, 0
        %v2450 = vsel %vm218, %v2411, 0
        %v2453 = vsel %vm218, %v2412, 0
        %v2456 = vsel %vm218, %v2413, 0
        %v2459 = vsel %vm218, %v2414, 0
        %v2462 = vsel %vm218, %v2415, 0
        %v2465 = vsel %vm530, %v384, 0
        %2467 = vmatprep.subr.bf16.mxu0 0
        %2468 = vmatpush1.bf16.msra.mxu0 %v2465
        %2469 = vmatprep.subr.bf16.mxu0 0
        %2470 = vmatpush1.bf16.msra.mxu0 0
        %2471 = vmatprep.subr.bf16.mxu0 0
        %2472 = vmatpush1.bf16.msra.mxu0 0
        %2473 = vmatprep.subr.bf16.mxu0 0
        %2474 = vmatpush1.bf16.msra.mxu0 0
        %2475 = vmatprep.subr.bf16.mxu0 0
        %2476 = vmatpush1.bf16.msra.mxu0 0
        %2477 = vmatprep.subr.bf16.mxu0 0
        %2478 = vmatpush1.bf16.msra.mxu0 0
        %2479 = vmatprep.subr.bf16.mxu0 0
        %2480 = vmatpush1.bf16.msra.mxu0 0
        %2481 = vmatprep.subr.bf16.mxu0 0
        %2482 = vmatpush1.bf16.msra.mxu0 0
        %2483 = vmatprep.subr.bf16.mxu0 0
        %2484 = vmatpush1.bf16.msra.mxu0 0
        %2485 = vmatprep.subr.bf16.mxu0 0
        %2486 = vmatpush1.bf16.msra.mxu0 0
        %2487 = vmatprep.subr.bf16.mxu0 0
        %2488 = vmatpush1.bf16.msra.mxu0 0
        %2489 = vmatprep.subr.bf16.mxu0 0
        %2490 = vmatpush1.bf16.msra.mxu0 0
        %2491 = vmatprep.subr.bf16.mxu0 0
        %2492 = vmatpush1.bf16.msra.mxu0 0
        %2493 = vmatprep.subr.bf16.mxu0 0
        %2494 = vmatpush1.bf16.msra.mxu0 0
        %2495 = vmatprep.subr.bf16.mxu0 0
        %2496 = vmatpush1.bf16.msra.mxu0 0
        %2497 = vmatprep.subr.bf16.mxu0 0
        %2498 = vmatpush1.bf16.msra.mxu0 0
        %2499 = vmatprep.mubr.bf16.mxu0 0
        %2500 = vmatmul.mubr.bf16.gmra.mrb[0].mxu0 %v2417
        %v2501 = vpop.f32.mrb[0].mxu0
        %v2502 = vadd.f32 0.0, %v2501
        %v2503 = vpop.f32.mrb[0].mxu0
        %v2504 = vpop.f32.mrb[0].mxu0
        %v2505 = vadd.f32 0.0, %v2504
        %v2506 = vpop.f32.mrb[0].mxu0
        %2507 = vmatprep.mubr.bf16.mxu0 0
        %2508 = vmatmul.mubr.bf16.gmra.mrb[0].mxu0 %v2420
        %v2509 = vpop.f32.mrb[0].mxu0
        %v2510 = vadd.f32 0.0, %v2509
        %v2511 = vpop.f32.mrb[0].mxu0
        %v2512 = vpop.f32.mrb[0].mxu0
        %v2513 = vadd.f32 0.0, %v2512
        %v2514 = vpop.f32.mrb[0].mxu0
        %2515 = vmatprep.mubr.bf16.mxu0 0
        %2516 = vmatmul.mubr.bf16.gmra.mrb[0].mxu0 %v2423
        %v2517 = vpop.f32.mrb[0].mxu0
        %v2518 = vadd.f32 0.0, %v2517
        %v2519 = vpop.f32.mrb[0].mxu0
        %v2520 = vpop.f32.mrb[0].mxu0
        %v2521 = vadd.f32 0.0, %v2520
        %v2522 = vpop.f32.mrb[0].mxu0
        %2523 = vmatprep.mubr.bf16.mxu0 0
        %2524 = vmatmul.mubr.bf16.gmra.mrb[0].mxu0 %v2426
        %v2525 = vpop.f32.mrb[0].mxu0
        %v2526 = vadd.f32 0.0, %v2525
        %v2527 = vpop.f32.mrb[0].mxu0
        %v2528 = vpop.f32.mrb[0].mxu0
        %v2529 = vadd.f32 0.0, %v2528
        %v2530 = vpop.f32.mrb[0].mxu0
        %2531 = vmatprep.mubr.bf16.mxu0 0
        %2532 = vmatmul.mubr.bf16.gmra.mrb[0].mxu0 %v2429
        %v2533 = vpop.f32.mrb[0].mxu0
        %v2534 = vadd.f32 0.0, %v2533
        %v2535 = vpop.f32.mrb[0].mxu0
        %v2536 = vpop.f32.mrb[0].mxu0
        %v2537 = vadd.f32 0.0, %v2536
        %v2538 = vpop.f32.mrb[0].mxu0
        %2539 = vmatprep.mubr.bf16.mxu0 0
        %2540 = vmatmul.mubr.bf16.gmra.mrb[0].mxu0 %v2432
        %v2541 = vpop.f32.mrb[0].mxu0
        %v2542 = vadd.f32 0.0, %v2541
        %v2543 = vpop.f32.mrb[0].mxu0
        %v2544 = vpop.f32.mrb[0].mxu0
        %v2545 = vadd.f32 0.0, %v2544
        %v2546 = vpop.f32.mrb[0].mxu0
        %2547 = vmatprep.mubr.bf16.mxu0 0
        %2548 = vmatmul.mubr.bf16.gmra.mrb[0].mxu0 %v2435
        %v2549 = vpop.f32.mrb[0].mxu0
        %v2550 = vadd.f32 0.0, %v2549
        %v2551 = vpop.f32.mrb[0].mxu0
        %v2552 = vpop.f32.mrb[0].mxu0
        %v2553 = vadd.f32 0.0, %v2552
        %v2554 = vpop.f32.mrb[0].mxu0
        %2555 = vmatprep.mubr.bf16.mxu0 0
        %2556 = vmatmul.mubr.bf16.gmra.mrb[0].mxu0 %v2438
        %v2557 = vpop.f32.mrb[0].mxu0
        %v2558 = vadd.f32 0.0, %v2557
        %v2559 = vpop.f32.mrb[0].mxu0
        %v2560 = vpop.f32.mrb[0].mxu0
        %v2561 = vadd.f32 0.0, %v2560
        %v2562 = vpop.f32.mrb[0].mxu0
        %2563 = vmatprep.mubr.bf16.mxu0 0
        %2564 = vmatmul.mubr.bf16.gmra.mrb[0].mxu0 %v2441
        %v2565 = vpop.f32.mrb[0].mxu0
        %v2566 = vadd.f32 0.0, %v2565
        %v2567 = vpop.f32.mrb[0].mxu0
        %v2568 = vpop.f32.mrb[0].mxu0
        %v2569 = vadd.f32 0.0, %v2568
        %v2570 = vpop.f32.mrb[0].mxu0
        %2571 = vmatprep.mubr.bf16.mxu0 0
        %2572 = vmatmul.mubr.bf16.gmra.mrb[0].mxu0 %v2444
        %v2573 = vpop.f32.mrb[0].mxu0
        %v2574 = vadd.f32 0.0, %v2573
        %v2575 = vpop.f32.mrb[0].mxu0
        %v2576 = vpop.f32.mrb[0].mxu0
        %v2577 = vadd.f32 0.0, %v2576
        %v2578 = vpop.f32.mrb[0].mxu0
        %2579 = vmatprep.mubr.bf16.mxu0 0
        %2580 = vmatmul.mubr.bf16.gmra.mrb[0].mxu0 %v2447
        %v2581 = vpop.f32.mrb[0].mxu0
        %v2582 = vadd.f32 0.0, %v2581
        %v2583 = vpop.f32.mrb[0].mxu0
        %v2584 = vpop.f32.mrb[0].mxu0
        %v2585 = vadd.f32 0.0, %v2584
        %v2586 = vpop.f32.mrb[0].mxu0
        %2587 = vmatprep.mubr.bf16.mxu0 0
        %2588 = vmatmul.mubr.bf16.gmra.mrb[0].mxu0 %v2450
        %v2589 = vpop.f32.mrb[0].mxu0
        %v2590 = vadd.f32 0.0, %v2589
        %v2591 = vpop.f32.mrb[0].mxu0
        %v2592 = vpop.f32.mrb[0].mxu0
        %v2593 = vadd.f32 0.0, %v2592
        %v2594 = vpop.f32.mrb[0].mxu0
        %2595 = vmatprep.mubr.bf16.mxu0 0
        %2596 = vmatmul.mubr.bf16.gmra.mrb[0].mxu0 %v2453
        %v2597 = vpop.f32.mrb[0].mxu0
        %v2598 = vadd.f32 0.0, %v2597
        %v2599 = vpop.f32.mrb[0].mxu0
        %v2600 = vpop.f32.mrb[0].mxu0
        %v2601 = vadd.f32 0.0, %v2600
        %v2602 = vpop.f32.mrb[0].mxu0
        %2603 = vmatprep.mubr.bf16.mxu0 0
        %2604 = vmatmul.mubr.bf16.gmra.mrb[0].mxu0 %v2456
        %v2605 = vpop.f32.mrb[0].mxu0
        %v2606 = vadd.f32 0.0, %v2605
        %v2607 = vpop.f32.mrb[0].mxu0
        %v2608 = vpop.f32.mrb[0].mxu0
        %v2609 = vadd.f32 0.0, %v2608
        %v2610 = vpop.f32.mrb[0].mxu0
        %2611 = vmatprep.mubr.bf16.mxu0 0
        %2612 = vmatmul.mubr.bf16.gmra.mrb[0].mxu0 %v2459
        %v2613 = vpop.f32.mrb[0].mxu0
        %v2614 = vadd.f32 0.0, %v2613
        %v2615 = vpop.f32.mrb[0].mxu0
        %v2616 = vpop.f32.mrb[0].mxu0
        %v2617 = vadd.f32 0.0, %v2616
        %v2618 = vpop.f32.mrb[0].mxu0
        %2619 = vmatprep.mubr.bf16.mxu0 0
        %2620 = vmatmul.mubr.bf16.gmra.mrb[0].mxu0 %v2462
        %v2621 = vpop.f32.mrb[0].mxu0
        %v2622 = vadd.f32 0.0, %v2621
        %v2623 = vpop.f32.mrb[0].mxu0
        %v2624 = vpop.f32.mrb[0].mxu0
        %v2625 = vadd.f32 0.0, %v2624
        %v2626 = vpop.f32.mrb[0].mxu0
        %2627 = vdwg.mxu0
        %v2628 = vadd.f32 %v2336, %v2502
        %v2629 = vadd.f32 %v2337, %v2505
        %v2630 = vadd.f32 %v2338, %v2510
        %v2631 = vadd.f32 %v2339, %v2513
        %v2632 = vadd.f32 %v2340, %v2518
        %v2633 = vadd.f32 %v2341, %v2521
        %v2634 = vadd.f32 %v2342, %v2526
        %v2635 = vadd.f32 %v2343, %v2529
        %v2636 = vadd.f32 %v2344, %v2534
        %v2637 = vadd.f32 %v2345, %v2537
        %v2638 = vadd.f32 %v2346, %v2542
        %v2639 = vadd.f32 %v2347, %v2545
        %v2640 = vadd.f32 %v2348, %v2550
        %v2641 = vadd.f32 %v2349, %v2553
        %v2642 = vadd.f32 %v2350, %v2558
        %v2643 = vadd.f32 %v2351, %v2561
        %v2644 = vadd.f32 %v2352, %v2566
        %v2645 = vadd.f32 %v2353, %v2569
        %v2646 = vadd.f32 %v2354, %v2574
        %v2647 = vadd.f32 %v2355, %v2577
        %v2648 = vadd.f32 %v2356, %v2582
        %v2649 = vadd.f32 %v2357, %v2585
        %v2650 = vadd.f32 %v2358, %v2590
        %v2651 = vadd.f32 %v2359, %v2593
        %v2652 = vadd.f32 %v2360, %v2598
        %v2653 = vadd.f32 %v2361, %v2601
        %v2654 = vadd.f32 %v2362, %v2606
        %v2655 = vadd.f32 %v2363, %v2609
        %v2656 = vadd.f32 %v2364, %v2614
        %v2657 = vadd.f32 %v2365, %v2617
        %v2658 = vadd.f32 %v2366, %v2622
        %v2659 = vadd.f32 %v2367, %v2625
        %v2660 = vld [vmem:[%s2075 + $0x4] sm:$0xff]
        %v2661 = vld [vmem:[%s2075 + $0xc] sm:$0xff]
        %v2662 = vld [vmem:[%s2075 + $0x1c] sm:$0xff]
        %v2663 = vld [vmem:[%s2075 + $0x24] sm:$0xff]
        %v2664 = vld [vmem:[%s2075 + $0x34] sm:$0xff]
        %v2665 = vld [vmem:[%s2075 + $0x3c] sm:$0xff]
        %v2666 = vld [vmem:[%s2075 + $0x4c] sm:$0xff]
        %v2667 = vld [vmem:[%s2075 + $0x54] sm:$0xff]
        %v2668 = vld [vmem:[%s2075 + $0x64] sm:$0xff]
        %v2669 = vld [vmem:[%s2075 + $0x6c] sm:$0xff]
        %v2670 = vld [vmem:[%s2075 + $0x7c] sm:$0xff]
        %v2671 = vld [vmem:[%s2075 + $0x84] sm:$0xff]
        %v2672 = vld [vmem:[%s2075 + $0x94] sm:$0xff]
        %v2673 = vld [vmem:[%s2075 + $0x9c] sm:$0xff]
        %v2674 = vld [vmem:[%s2075 + $0xac] sm:$0xff]
        %v2675 = vld [vmem:[%s2075 + $0xb4] sm:$0xff]
        %v2676 = vld [vmem:[%s2075 + $0xc4] sm:$0xff]
        %v2677 = vld [vmem:[%s2075 + $0xcc] sm:$0xff]
        %v2678 = vld [vmem:[%s2075 + $0xdc] sm:$0xff]
        %v2679 = vld [vmem:[%s2075 + $0xe4] sm:$0xff]
        %v2680 = vld [vmem:[%s2075 + $0xf4] sm:$0xff]
        %v2681 = vld [vmem:[%s2075 + $0xfc] sm:$0xff]
        %v2682 = vld [vmem:[%s2075 + $0x10c] sm:$0xff]
        %v2683 = vld [vmem:[%s2075 + $0x114] sm:$0xff]
        %v2684 = vld [vmem:[%s2075 + $0x124] sm:$0xff]
        %v2685 = vld [vmem:[%s2075 + $0x12c] sm:$0xff]
        %v2686 = vld [vmem:[%s2075 + $0x13c] sm:$0xff]
        %v2687 = vld [vmem:[%s2075 + $0x144] sm:$0xff]
        %v2688 = vld [vmem:[%s2075 + $0x154] sm:$0xff]
        %v2689 = vld [vmem:[%s2075 + $0x15c] sm:$0xff]
        %v2690 = vld [vmem:[%s2075 + $0x16c] sm:$0xff]
        %v2691 = vld [vmem:[%s2075 + $0x174] sm:$0xff]
        %v2692 = vpack.c.bf16 %v2661, %v2660
        %v2693 = vpack.c.bf16 %v2663, %v2662
        %v2694 = vpack.c.bf16 %v2665, %v2664
        %v2695 = vpack.c.bf16 %v2667, %v2666
        %v2696 = vpack.c.bf16 %v2669, %v2668
        %v2697 = vpack.c.bf16 %v2671, %v2670
        %v2698 = vpack.c.bf16 %v2673, %v2672
        %v2699 = vpack.c.bf16 %v2675, %v2674
        %v2700 = vpack.c.bf16 %v2677, %v2676
        %v2701 = vpack.c.bf16 %v2679, %v2678
        %v2702 = vpack.c.bf16 %v2681, %v2680
        %v2703 = vpack.c.bf16 %v2683, %v2682
        %v2704 = vpack.c.bf16 %v2685, %v2684
        %v2705 = vpack.c.bf16 %v2687, %v2686
        %v2706 = vpack.c.bf16 %v2689, %v2688
        %v2707 = vpack.c.bf16 %v2691, %v2690
        %v2709 = vsel %vm218, %v2692, 0
        %v2712 = vsel %vm218, %v2693, 0
        %v2715 = vsel %vm218, %v2694, 0
        %v2718 = vsel %vm218, %v2695, 0
        %v2721 = vsel %vm218, %v2696, 0
        %v2724 = vsel %vm218, %v2697, 0
        %v2727 = vsel %vm218, %v2698, 0
        %v2730 = vsel %vm218, %v2699, 0
        %v2733 = vsel %vm218, %v2700, 0
        %v2736 = vsel %vm218, %v2701, 0
        %v2739 = vsel %vm218, %v2702, 0
        %v2742 = vsel %vm218, %v2703, 0
        %v2745 = vsel %vm218, %v2704, 0
        %v2748 = vsel %vm218, %v2705, 0
        %v2751 = vsel %vm218, %v2706, 0
        %v2754 = vsel %vm218, %v2707, 0
        %v2757 = vsel %vm530, %v385, 0
        %2759 = vmatprep.subr.bf16.mxu0 0
        %2760 = vmatpush1.bf16.msra.mxu0 %v2757
        %2761 = vmatprep.subr.bf16.mxu0 0
        %2762 = vmatpush1.bf16.msra.mxu0 0
        %2763 = vmatprep.subr.bf16.mxu0 0
        %2764 = vmatpush1.bf16.msra.mxu0 0
        %2765 = vmatprep.subr.bf16.mxu0 0
        %2766 = vmatpush1.bf16.msra.mxu0 0
        %2767 = vmatprep.subr.bf16.mxu0 0
        %2768 = vmatpush1.bf16.msra.mxu0 0
        %2769 = vmatprep.subr.bf16.mxu0 0
        %2770 = vmatpush1.bf16.msra.mxu0 0
        %2771 = vmatprep.subr.bf16.mxu0 0
        %2772 = vmatpush1.bf16.msra.mxu0 0
        %2773 = vmatprep.subr.bf16.mxu0 0
        %2774 = vmatpush1.bf16.msra.mxu0 0
        %2775 = vmatprep.subr.bf16.mxu0 0
        %2776 = vmatpush1.bf16.msra.mxu0 0
        %2777 = vmatprep.subr.bf16.mxu0 0
        %2778 = vmatpush1.bf16.msra.mxu0 0
        %2779 = vmatprep.subr.bf16.mxu0 0
        %2780 = vmatpush1.bf16.msra.mxu0 0
        %2781 = vmatprep.subr.bf16.mxu0 0
        %2782 = vmatpush1.bf16.msra.mxu0 0
        %2783 = vmatprep.subr.bf16.mxu0 0
        %2784 = vmatpush1.bf16.msra.mxu0 0
        %2785 = vmatprep.subr.bf16.mxu0 0
        %2786 = vmatpush1.bf16.msra.mxu0 0
        %2787 = vmatprep.subr.bf16.mxu0 0
        %2788 = vmatpush1.bf16.msra.mxu0 0
        %2789 = vmatprep.subr.bf16.mxu0 0
        %2790 = vmatpush1.bf16.msra.mxu0 0
        %2791 = vmatprep.mubr.bf16.mxu0 0
        %2792 = vmatmul.mubr.bf16.gmra.mrb[0].mxu0 %v2709
        %v2793 = vpop.f32.mrb[0].mxu0
        %v2794 = vadd.f32 0.0, %v2793
        %v2795 = vpop.f32.mrb[0].mxu0
        %v2796 = vpop.f32.mrb[0].mxu0
        %v2797 = vadd.f32 0.0, %v2796
        %v2798 = vpop.f32.mrb[0].mxu0
        %2799 = vmatprep.mubr.bf16.mxu0 0
        %2800 = vmatmul.mubr.bf16.gmra.mrb[0].mxu0 %v2712
        %v2801 = vpop.f32.mrb[0].mxu0
        %v2802 = vadd.f32 0.0, %v2801
        %v2803 = vpop.f32.mrb[0].mxu0
        %v2804 = vpop.f32.mrb[0].mxu0
        %v2805 = vadd.f32 0.0, %v2804
        %v2806 = vpop.f32.mrb[0].mxu0
        %2807 = vmatprep.mubr.bf16.mxu0 0
        %2808 = vmatmul.mubr.bf16.gmra.mrb[0].mxu0 %v2715
        %v2809 = vpop.f32.mrb[0].mxu0
        %v2810 = vadd.f32 0.0, %v2809
        %v2811 = vpop.f32.mrb[0].mxu0
        %v2812 = vpop.f32.mrb[0].mxu0
        %v2813 = vadd.f32 0.0, %v2812
        %v2814 = vpop.f32.mrb[0].mxu0
        %2815 = vmatprep.mubr.bf16.mxu0 0
        %2816 = vmatmul.mubr.bf16.gmra.mrb[0].mxu0 %v2718
        %v2817 = vpop.f32.mrb[0].mxu0
        %v2818 = vadd.f32 0.0, %v2817
        %v2819 = vpop.f32.mrb[0].mxu0
        %v2820 = vpop.f32.mrb[0].mxu0
        %v2821 = vadd.f32 0.0, %v2820
        %v2822 = vpop.f32.mrb[0].mxu0
        %2823 = vmatprep.mubr.bf16.mxu0 0
        %2824 = vmatmul.mubr.bf16.gmra.mrb[0].mxu0 %v2721
        %v2825 = vpop.f32.mrb[0].mxu0
        %v2826 = vadd.f32 0.0, %v2825
        %v2827 = vpop.f32.mrb[0].mxu0
        %v2828 = vpop.f32.mrb[0].mxu0
        %v2829 = vadd.f32 0.0, %v2828
        %v2830 = vpop.f32.mrb[0].mxu0
        %2831 = vmatprep.mubr.bf16.mxu0 0
        %2832 = vmatmul.mubr.bf16.gmra.mrb[0].mxu0 %v2724
        %v2833 = vpop.f32.mrb[0].mxu0
        %v2834 = vadd.f32 0.0, %v2833
        %v2835 = vpop.f32.mrb[0].mxu0
        %v2836 = vpop.f32.mrb[0].mxu0
        %v2837 = vadd.f32 0.0, %v2836
        %v2838 = vpop.f32.mrb[0].mxu0
        %2839 = vmatprep.mubr.bf16.mxu0 0
        %2840 = vmatmul.mubr.bf16.gmra.mrb[0].mxu0 %v2727
        %v2841 = vpop.f32.mrb[0].mxu0
        %v2842 = vadd.f32 0.0, %v2841
        %v2843 = vpop.f32.mrb[0].mxu0
        %v2844 = vpop.f32.mrb[0].mxu0
        %v2845 = vadd.f32 0.0, %v2844
        %v2846 = vpop.f32.mrb[0].mxu0
        %2847 = vmatprep.mubr.bf16.mxu0 0
        %2848 = vmatmul.mubr.bf16.gmra.mrb[0].mxu0 %v2730
        %v2849 = vpop.f32.mrb[0].mxu0
        %v2850 = vadd.f32 0.0, %v2849
        %v2851 = vpop.f32.mrb[0].mxu0
        %v2852 = vpop.f32.mrb[0].mxu0
        %v2853 = vadd.f32 0.0, %v2852
        %v2854 = vpop.f32.mrb[0].mxu0
        %2855 = vmatprep.mubr.bf16.mxu0 0
        %2856 = vmatmul.mubr.bf16.gmra.mrb[0].mxu0 %v2733
        %v2857 = vpop.f32.mrb[0].mxu0
        %v2858 = vadd.f32 0.0, %v2857
        %v2859 = vpop.f32.mrb[0].mxu0
        %v2860 = vpop.f32.mrb[0].mxu0
        %v2861 = vadd.f32 0.0, %v2860
        %v2862 = vpop.f32.mrb[0].mxu0
        %2863 = vmatprep.mubr.bf16.mxu0 0
        %2864 = vmatmul.mubr.bf16.gmra.mrb[0].mxu0 %v2736
        %v2865 = vpop.f32.mrb[0].mxu0
        %v2866 = vadd.f32 0.0, %v2865
        %v2867 = vpop.f32.mrb[0].mxu0
        %v2868 = vpop.f32.mrb[0].mxu0
        %v2869 = vadd.f32 0.0, %v2868
        %v2870 = vpop.f32.mrb[0].mxu0
        %2871 = vmatprep.mubr.bf16.mxu0 0
        %2872 = vmatmul.mubr.bf16.gmra.mrb[0].mxu0 %v2739
        %v2873 = vpop.f32.mrb[0].mxu0
        %v2874 = vadd.f32 0.0, %v2873
        %v2875 = vpop.f32.mrb[0].mxu0
        %v2876 = vpop.f32.mrb[0].mxu0
        %v2877 = vadd.f32 0.0, %v2876
        %v2878 = vpop.f32.mrb[0].mxu0
        %2879 = vmatprep.mubr.bf16.mxu0 0
        %2880 = vmatmul.mubr.bf16.gmra.mrb[0].mxu0 %v2742
        %v2881 = vpop.f32.mrb[0].mxu0
        %v2882 = vadd.f32 0.0, %v2881
        %v2883 = vpop.f32.mrb[0].mxu0
        %v2884 = vpop.f32.mrb[0].mxu0
        %v2885 = vadd.f32 0.0, %v2884
        %v2886 = vpop.f32.mrb[0].mxu0
        %2887 = vmatprep.mubr.bf16.mxu0 0
        %2888 = vmatmul.mubr.bf16.gmra.mrb[0].mxu0 %v2745
        %v2889 = vpop.f32.mrb[0].mxu0
        %v2890 = vadd.f32 0.0, %v2889
        %v2891 = vpop.f32.mrb[0].mxu0
        %v2892 = vpop.f32.mrb[0].mxu0
        %v2893 = vadd.f32 0.0, %v2892
        %v2894 = vpop.f32.mrb[0].mxu0
        %2895 = vmatprep.mubr.bf16.mxu0 0
        %2896 = vmatmul.mubr.bf16.gmra.mrb[0].mxu0 %v2748
        %v2897 = vpop.f32.mrb[0].mxu0
        %v2898 = vadd.f32 0.0, %v2897
        %v2899 = vpop.f32.mrb[0].mxu0
        %v2900 = vpop.f32.mrb[0].mxu0
        %v2901 = vadd.f32 0.0, %v2900
        %v2902 = vpop.f32.mrb[0].mxu0
        %2903 = vmatprep.mubr.bf16.mxu0 0
        %2904 = vmatmul.mubr.bf16.gmra.mrb[0].mxu0 %v2751
        %v2905 = vpop.f32.mrb[0].mxu0
        %v2906 = vadd.f32 0.0, %v2905
        %v2907 = vpop.f32.mrb[0].mxu0
        %v2908 = vpop.f32.mrb[0].mxu0
        %v2909 = vadd.f32 0.0, %v2908
        %v2910 = vpop.f32.mrb[0].mxu0
        %2911 = vmatprep.mubr.bf16.mxu0 0
        %2912 = vmatmul.mubr.bf16.gmra.mrb[0].mxu0 %v2754
        %v2913 = vpop.f32.mrb[0].mxu0
        %v2914 = vadd.f32 0.0, %v2913
        %v2915 = vpop.f32.mrb[0].mxu0
        %v2916 = vpop.f32.mrb[0].mxu0
        %v2917 = vadd.f32 0.0, %v2916
        %v2918 = vpop.f32.mrb[0].mxu0
        %2919 = vdwg.mxu0
        %v2920 = vadd.f32 %v2628, %v2794
        %v2921 = vadd.f32 %v2629, %v2797
        %v2922 = vadd.f32 %v2630, %v2802
        %v2923 = vadd.f32 %v2631, %v2805
        %v2924 = vadd.f32 %v2632, %v2810
        %v2925 = vadd.f32 %v2633, %v2813
        %v2926 = vadd.f32 %v2634, %v2818
        %v2927 = vadd.f32 %v2635, %v2821
        %v2928 = vadd.f32 %v2636, %v2826
        %v2929 = vadd.f32 %v2637, %v2829
        %v2930 = vadd.f32 %v2638, %v2834
        %v2931 = vadd.f32 %v2639, %v2837
        %v2932 = vadd.f32 %v2640, %v2842
        %v2933 = vadd.f32 %v2641, %v2845
        %v2934 = vadd.f32 %v2642, %v2850
        %v2935 = vadd.f32 %v2643, %v2853
        %v2936 = vadd.f32 %v2644, %v2858
        %v2937 = vadd.f32 %v2645, %v2861
        %v2938 = vadd.f32 %v2646, %v2866
        %v2939 = vadd.f32 %v2647, %v2869
        %v2940 = vadd.f32 %v2648, %v2874
        %v2941 = vadd.f32 %v2649, %v2877
        %v2942 = vadd.f32 %v2650, %v2882
        %v2943 = vadd.f32 %v2651, %v2885
        %v2944 = vadd.f32 %v2652, %v2890
        %v2945 = vadd.f32 %v2653, %v2893
        %v2946 = vadd.f32 %v2654, %v2898
        %v2947 = vadd.f32 %v2655, %v2901
        %v2948 = vadd.f32 %v2656, %v2906
        %v2949 = vadd.f32 %v2657, %v2909
        %v2950 = vadd.f32 %v2658, %v2914
        %v2951 = vadd.f32 %v2659, %v2917
        %vm2952 = vcmask 64512
        %2953 = vst.msk [vmem:[%s216] sm:$0xff] %vm2952, %v2920
        %2954 = vst.msk [vmem:[%s216 + $0x8] sm:$0xff] %vm2952, %v2921
        %2955 = vst.msk [vmem:[%s216 + $0x10] sm:$0xff] %vm2952, %v2922
        %2956 = vst.msk [vmem:[%s216 + $0x18] sm:$0xff] %vm2952, %v2923
        %2957 = vst.msk [vmem:[%s216 + $0x20] sm:$0xff] %vm2952, %v2924
        %2958 = vst.msk [vmem:[%s216 + $0x28] sm:$0xff] %vm2952, %v2925
        %2959 = vst.msk [vmem:[%s216 + $0x30] sm:$0xff] %vm2952, %v2926
        %2960 = vst.msk [vmem:[%s216 + $0x38] sm:$0xff] %vm2952, %v2927
        %2961 = vst.msk [vmem:[%s216 + $0x40] sm:$0xff] %vm2952, %v2928
        %2962 = vst.msk [vmem:[%s216 + $0x48] sm:$0xff] %vm2952, %v2929
        %2963 = vst.msk [vmem:[%s216 + $0x50] sm:$0xff] %vm2952, %v2930
        %2964 = vst.msk [vmem:[%s216 + $0x58] sm:$0xff] %vm2952, %v2931
        %2965 = vst.msk [vmem:[%s216 + $0x60] sm:$0xff] %vm2952, %v2932
        %2966 = vst.msk [vmem:[%s216 + $0x68] sm:$0xff] %vm2952, %v2933
        %2967 = vst.msk [vmem:[%s216 + $0x70] sm:$0xff] %vm2952, %v2934
        %2968 = vst.msk [vmem:[%s216 + $0x78] sm:$0xff] %vm2952, %v2935
        %2969 = vst.msk [vmem:[%s216 + $0x80] sm:$0xff] %vm2952, %v2936
        %2970 = vst.msk [vmem:[%s216 + $0x88] sm:$0xff] %vm2952, %v2937
        %2971 = vst.msk [vmem:[%s216 + $0x90] sm:$0xff] %vm2952, %v2938
        %2972 = vst.msk [vmem:[%s216 + $0x98] sm:$0xff] %vm2952, %v2939
        %2973 = vst.msk [vmem:[%s216 + $0xa0] sm:$0xff] %vm2952, %v2940
        %2974 = vst.msk [vmem:[%s216 + $0xa8] sm:$0xff] %vm2952, %v2941
        %2975 = vst.msk [vmem:[%s216 + $0xb0] sm:$0xff] %vm2952, %v2942
        %2976 = vst.msk [vmem:[%s216 + $0xb8] sm:$0xff] %vm2952, %v2943
        %2977 = vst.msk [vmem:[%s216 + $0xc0] sm:$0xff] %vm2952, %v2944
        %2978 = vst.msk [vmem:[%s216 + $0xc8] sm:$0xff] %vm2952, %v2945
        %2979 = vst.msk [vmem:[%s216 + $0xd0] sm:$0xff] %vm2952, %v2946
        %2980 = vst.msk [vmem:[%s216 + $0xd8] sm:$0xff] %vm2952, %v2947
        %2981 = vst.msk [vmem:[%s216 + $0xe0] sm:$0xff] %vm2952, %v2948
        %2982 = vst.msk [vmem:[%s216 + $0xe8] sm:$0xff] %vm2952, %v2949
        %2983 = vst.msk [vmem:[%s216 + $0xf0] sm:$0xff] %vm2952, %v2950
        %2984 = vst.msk [vmem:[%s216 + $0xf8] sm:$0xff] %vm2952, %v2951
        %v2985 = vsel %vm2952, %v2920, 0.0
        %v2986 = vsel %vm2952, %v2921, 0.0
        %v2987 = vadd.f32 %v2985, %v2986
        %v2988 = vsel %vm2952, %v2922, 0.0
        %v2989 = vadd.f32 %v2987, %v2988
        %v2990 = vsel %vm2952, %v2923, 0.0
        %v2991 = vadd.f32 %v2989, %v2990
        %v2992 = vsel %vm2952, %v2924, 0.0
        %v2993 = vadd.f32 %v2991, %v2992
        %v2994 = vsel %vm2952, %v2925, 0.0
        %v2995 = vadd.f32 %v2993, %v2994
        %v2996 = vsel %vm2952, %v2926, 0.0
        %v2997 = vadd.f32 %v2995, %v2996
        %v2998 = vsel %vm2952, %v2927, 0.0
        %v2999 = vadd.f32 %v2997, %v2998
        %v3000 = vsel %vm2952, %v2928, 0.0
        %v3001 = vadd.f32 %v2999, %v3000
        %v3002 = vsel %vm2952, %v2929, 0.0
        %v3003 = vadd.f32 %v3001, %v3002
        %v3004 = vsel %vm2952, %v2930, 0.0
        %v3005 = vadd.f32 %v3003, %v3004
        %v3006 = vsel %vm2952, %v2931, 0.0
        %v3007 = vadd.f32 %v3005, %v3006
        %v3008 = vsel %vm2952, %v2932, 0.0
        %v3009 = vadd.f32 %v3007, %v3008
        %v3010 = vsel %vm2952, %v2933, 0.0
        %v3011 = vadd.f32 %v3009, %v3010
        %v3012 = vsel %vm2952, %v2934, 0.0
        %v3013 = vadd.f32 %v3011, %v3012
        %v3014 = vsel %vm2952, %v2935, 0.0
        %v3015 = vadd.f32 %v3013, %v3014
        %v3016 = vsel %vm2952, %v2936, 0.0
        %v3017 = vadd.f32 %v3015, %v3016
        %v3018 = vsel %vm2952, %v2937, 0.0
        %v3019 = vadd.f32 %v3017, %v3018
        %v3020 = vsel %vm2952, %v2938, 0.0
        %v3021 = vadd.f32 %v3019, %v3020
        %v3022 = vsel %vm2952, %v2939, 0.0
        %v3023 = vadd.f32 %v3021, %v3022
        %v3024 = vsel %vm2952, %v2940, 0.0
        %v3025 = vadd.f32 %v3023, %v3024
        %v3026 = vsel %vm2952, %v2941, 0.0
        %v3027 = vadd.f32 %v3025, %v3026
        %v3028 = vsel %vm2952, %v2942, 0.0
        %v3029 = vadd.f32 %v3027, %v3028
        %v3030 = vsel %vm2952, %v2943, 0.0
        %v3031 = vadd.f32 %v3029, %v3030
        %v3032 = vsel %vm2952, %v2944, 0.0
        %v3033 = vadd.f32 %v3031, %v3032
        %v3034 = vsel %vm2952, %v2945, 0.0
        %v3035 = vadd.f32 %v3033, %v3034
        %v3036 = vsel %vm2952, %v2946, 0.0
        %v3037 = vadd.f32 %v3035, %v3036
        %v3038 = vsel %vm2952, %v2947, 0.0
        %v3039 = vadd.f32 %v3037, %v3038
        %v3040 = vsel %vm2952, %v2948, 0.0
        %v3041 = vadd.f32 %v3039, %v3040
        %v3042 = vsel %vm2952, %v2949, 0.0
        %v3043 = vadd.f32 %v3041, %v3042
        %v3044 = vsel %vm2952, %v2950, 0.0
        %v3045 = vadd.f32 %v3043, %v3044
        %v3046 = vsel %vm2952, %v2951, 0.0
        %v3047 = vadd.f32 %v3045, %v3046
        %v3048 = vrot.slane %v3047, 4
        %v3049 = vadd.f32 %v3047, %v3048
        %v3050 = vrot.slane %v3049, 2
        %v3051 = vadd.f32 %v3049, %v3050
        %v3052 = vrot.slane %v3051, 1
        %v3053 = vadd.f32 %v3051, %v3052
        %vm3054 = vcmask 57344
        %3055 = vst.msk [vmem:[%s200] sm:$0x1] %vm3054, %v3053
        %v3056 = vmul.f32 %v2920, %v2920
        %v3057 = vmul.f32 %v2921, %v2921
        %v3058 = vmul.f32 %v2922, %v2922
        %v3059 = vmul.f32 %v2923, %v2923
        %v3060 = vmul.f32 %v2924, %v2924
        %v3061 = vmul.f32 %v2925, %v2925
        %v3062 = vmul.f32 %v2926, %v2926
        %v3063 = vmul.f32 %v2927, %v2927
        %v3064 = vmul.f32 %v2928, %v2928
        %v3065 = vmul.f32 %v2929, %v2929
        %v3066 = vmul.f32 %v2930, %v2930
        %v3067 = vmul.f32 %v2931, %v2931
        %v3068 = vmul.f32 %v2932, %v2932
        %v3069 = vmul.f32 %v2933, %v2933
        %v3070 = vmul.f32 %v2934, %v2934
        %v3071 = vmul.f32 %v2935, %v2935
        %v3072 = vmul.f32 %v2936, %v2936
        %v3073 = vmul.f32 %v2937, %v2937
        %v3074 = vmul.f32 %v2938, %v2938
        %v3075 = vmul.f32 %v2939, %v2939
        %v3076 = vmul.f32 %v2940, %v2940
        %v3077 = vmul.f32 %v2941, %v2941
        %v3078 = vmul.f32 %v2942, %v2942
        %v3079 = vmul.f32 %v2943, %v2943
        %v3080 = vmul.f32 %v2944, %v2944
        %v3081 = vmul.f32 %v2945, %v2945
        %v3082 = vmul.f32 %v2946, %v2946
        %v3083 = vmul.f32 %v2947, %v2947
        %v3084 = vmul.f32 %v2948, %v2948
        %v3085 = vmul.f32 %v2949, %v2949
        %v3086 = vmul.f32 %v2950, %v2950
        %v3087 = vmul.f32 %v2951, %v2951
        %v3088 = vsel %vm2952, %v3056, 0.0
        %v3089 = vsel %vm2952, %v3057, 0.0
        %v3090 = vadd.f32 %v3088, %v3089
        %v3091 = vsel %vm2952, %v3058, 0.0
        %v3092 = vadd.f32 %v3090, %v3091
        %v3093 = vsel %vm2952, %v3059, 0.0
        %v3094 = vadd.f32 %v3092, %v3093
        %v3095 = vsel %vm2952, %v3060, 0.0
        %v3096 = vadd.f32 %v3094, %v3095
        %v3097 = vsel %vm2952, %v3061, 0.0
        %v3098 = vadd.f32 %v3096, %v3097
        %v3099 = vsel %vm2952, %v3062, 0.0
        %v3100 = vadd.f32 %v3098, %v3099
        %v3101 = vsel %vm2952, %v3063, 0.0
        %v3102 = vadd.f32 %v3100, %v3101
        %v3103 = vsel %vm2952, %v3064, 0.0
        %v3104 = vadd.f32 %v3102, %v3103
        %v3105 = vsel %vm2952, %v3065, 0.0
        %v3106 = vadd.f32 %v3104, %v3105
        %v3107 = vsel %vm2952, %v3066, 0.0
        %v3108 = vadd.f32 %v3106, %v3107
        %v3109 = vsel %vm2952, %v3067, 0.0
        %v3110 = vadd.f32 %v3108, %v3109
        %v3111 = vsel %vm2952, %v3068, 0.0
        %v3112 = vadd.f32 %v3110, %v3111
        %v3113 = vsel %vm2952, %v3069, 0.0
        %v3114 = vadd.f32 %v3112, %v3113
        %v3115 = vsel %vm2952, %v3070, 0.0
        %v3116 = vadd.f32 %v3114, %v3115
        %v3117 = vsel %vm2952, %v3071, 0.0
        %v3118 = vadd.f32 %v3116, %v3117
        %v3119 = vsel %vm2952, %v3072, 0.0
        %v3120 = vadd.f32 %v3118, %v3119
        %v3121 = vsel %vm2952, %v3073, 0.0
        %v3122 = vadd.f32 %v3120, %v3121
        %v3123 = vsel %vm2952, %v3074, 0.0
        %v3124 = vadd.f32 %v3122, %v3123
        %v3125 = vsel %vm2952, %v3075, 0.0
        %v3126 = vadd.f32 %v3124, %v3125
        %v3127 = vsel %vm2952, %v3076, 0.0
        %v3128 = vadd.f32 %v3126, %v3127
        %v3129 = vsel %vm2952, %v3077, 0.0
        %v3130 = vadd.f32 %v3128, %v3129
        %v3131 = vsel %vm2952, %v3078, 0.0
        %v3132 = vadd.f32 %v3130, %v3131
        %v3133 = vsel %vm2952, %v3079, 0.0
        %v3134 = vadd.f32 %v3132, %v3133
        %v3135 = vsel %vm2952, %v3080, 0.0
        %v3136 = vadd.f32 %v3134, %v3135
        %v3137 = vsel %vm2952, %v3081, 0.0
        %v3138 = vadd.f32 %v3136, %v3137
        %v3139 = vsel %vm2952, %v3082, 0.0
        %v3140 = vadd.f32 %v3138, %v3139
        %v3141 = vsel %vm2952, %v3083, 0.0
        %v3142 = vadd.f32 %v3140, %v3141
        %v3143 = vsel %vm2952, %v3084, 0.0
        %v3144 = vadd.f32 %v3142, %v3143
        %v3145 = vsel %vm2952, %v3085, 0.0
        %v3146 = vadd.f32 %v3144, %v3145
        %v3147 = vsel %vm2952, %v3086, 0.0
        %v3148 = vadd.f32 %v3146, %v3147
        %v3149 = vsel %vm2952, %v3087, 0.0
        %v3150 = vadd.f32 %v3148, %v3149
        %v3151 = vrot.slane %v3150, 4
        %v3152 = vadd.f32 %v3150, %v3151
        %v3153 = vrot.slane %v3152, 2
        %v3154 = vadd.f32 %v3152, %v3153
        %v3155 = vrot.slane %v3154, 1
        %v3156 = vadd.f32 %v3154, %v3155
        %3157 = vst.msk [vmem:[%s206] sm:$0x1] %vm3054, %v3156
        %p3158 = scmp.lt.s32.totalorder %s22, 1
        %s3159 = scalar_select %p3158, %s22, 1
        %s3160 = smul.addr %s3159, 32
        %s3161 = smul.addr %s3160, 8
        %s3162 = scalar_lea.vmem %s2, %s3161
        %s3163 = sand.u32 %s103, 1
        %s3164 = scalar_lea.sflag [#allocation4], %s3163
        %s3165 = sand.u32 %s103, 1
        %s3166 = scalar_lea.vmem [#allocation3], %s3165
        %s3167 = sand.u32 %s129, 1
        %s3168 = scalar_lea.sflag [#allocation6], %s3167
        %s3169 = sand.u32 %s129, 1
        %s3170 = scalar_lea.vmem [#allocation5], %s3169
        // Predicated region
        $region29: #{tpu_custom_call.1} parent=27 // pred_check
          %p3171 = pneg %p87
        $region30: #{tpu_custom_call.1} parent=27 // pred_check_branch
          %3173 = sbr.rel (%p3171) target = $region32
        $region31: #{tpu_custom_call.1} parent=27 // pred_region
          _
        $region32: #{tpu_custom_call.1} parent=27 // pred_fallthru
          _
        // Predicated region
        $region33: #{tpu_custom_call.1} parent=27 // pred_check
          %p3174 = pneg %p113
        $region34: #{tpu_custom_call.1} parent=27 // pred_check_branch
          %3176 = sbr.rel (%p3174) target = $region36
        $region35: #{tpu_custom_call.1} parent=27 // pred_region
          %s3178 = ssub.s32 16, 16
          %3179 = vsyncadd %s3164, %s3178
          %s3180 = smul.addr %s22, 16
          %s3181 = scalar_lea.hbm %s3, %s3180
          %s3183 = sshll.u32 %s3166, 4
          %s3184 = int_to_ptr.vmem [resolvable:$true] %s3183
          %3186 = dma.vmem_to_hbm [thread:$0]  %s3184, 16, %s3181, %s3164
        $region36: #{tpu_custom_call.1} parent=27 // pred_fallthru
          _
        // Predicated region
        $region37: #{tpu_custom_call.1} parent=27 // pred_check
          %p3187 = pneg %p139
        $region38: #{tpu_custom_call.1} parent=27 // pred_check_branch
          %3189 = sbr.rel (%p3187) target = $region40
        $region39: #{tpu_custom_call.1} parent=27 // pred_region
          %s3191 = ssub.s32 16, 16
          %3192 = vsyncadd %s3168, %s3191
          %s3193 = smul.addr %s22, 16
          %s3194 = scalar_lea.hbm %s4, %s3193
          %s3196 = sshll.u32 %s3170, 4
          %s3197 = int_to_ptr.vmem [resolvable:$true] %s3196
          %3199 = dma.vmem_to_hbm [thread:$0]  %s3197, 16, %s3194, %s3168
        $region40: #{tpu_custom_call.1} parent=27 // pred_fallthru
          _
      $region28: #{tpu_custom_call.1} parent=5 // pred_fallthru
        _
      %p3200 = scmp.le.s32.totalorder 2, %s17
      // Predicated region
      $region41: #{tpu_custom_call.1} parent=5 // pred_check
        %p3201 = pneg %p3200
      $region42: #{tpu_custom_call.1} parent=5 // pred_check_branch
        %3203 = sbr.rel (%p3201) target = $region44
      $region43: #{tpu_custom_call.1} parent=5 // pred_region
        %s3204 = ssub.s32 %s17, 2
        // Predicated region
        $region45: #{tpu_custom_call.1} parent=43 // pred_check
          %p3205 = pneg %p93
        $region46: #{tpu_custom_call.1} parent=43 // pred_check_branch
          %3207 = sbr.rel (%p3205) target = $region48
        $region47: #{tpu_custom_call.1} parent=43 // pred_region
          %p3208 = scmp.lt.s32.totalorder %s23, 1
          %s3209 = scalar_select %p3208, %s23, 1
          %s3210 = smul.addr %s3209, 32
          %s3211 = smul.addr %s3210, 8
          %s3212 = scalar_lea.vmem %s2, %s3211
        $region48: #{tpu_custom_call.1} parent=43 // pred_fallthru
          _
        // Predicated region
        $region49: #{tpu_custom_call.1} parent=43 // pred_check
          %p3213 = pneg %p119
        $region50: #{tpu_custom_call.1} parent=43 // pred_check_branch
          %3215 = sbr.rel (%p3213) target = $region52
        $region51: #{tpu_custom_call.1} parent=43 // pred_region
          %s3216 = sand.u32 %s104, 1
          %s3217 = scalar_lea.sflag [#allocation4], %s3216
          %s3218 = sand.u32 %s104, 1
          %s3219 = scalar_lea.vmem [#allocation3], %s3218
          %3220 = dma.done %s3217, 16
        $region52: #{tpu_custom_call.1} parent=43 // pred_fallthru
          _
        // Predicated region
        $region53: #{tpu_custom_call.1} parent=43 // pred_check
          %p3221 = pneg %p145
        $region54: #{tpu_custom_call.1} parent=43 // pred_check_branch
          %3223 = sbr.rel (%p3221) target = $region56
        $region55: #{tpu_custom_call.1} parent=43 // pred_region
          %s3224 = sand.u32 %s130, 1
          %s3225 = scalar_lea.sflag [#allocation6], %s3224
          %s3226 = sand.u32 %s130, 1
          %s3227 = scalar_lea.vmem [#allocation5], %s3226
          %3228 = dma.done %s3225, 16
        $region56: #{tpu_custom_call.1} parent=43 // pred_fallthru
          _
      $region44: #{tpu_custom_call.1} parent=5 // pred_fallthru
        _
    $region6: #{tpu_custom_call.1} parent=1 // loop_footer
      %s21 = sadd.s32 1, %s17
    $region7: #{tpu_custom_call.1} parent=1 // loop_footer_branch
      %16 = sbr.rel target = $region3
    $region8: #{tpu_custom_call.1} parent=1 // loop_exit
      _
    %3229 = vsyncpa [#allocation4], 1
    %s3230 = scalar_lea.sflag [#allocation4], 1
    %3231 = vsyncpa %s3230, 1
    %3232 = vsyncpa [#allocation6], 1
    %s3233 = scalar_lea.sflag [#allocation6], 1
    %3234 = vsyncpa %s3233, 1

</llo_original>
